<compile_context>
chip_gen: v6e
topology: v6e:2x2x1
jax: 0.10.0
libtpu: 0.0.40
codegen_flags: <defaults>
</compile_context>

<pallas_src>
import functools
import math

import jax
import jax.numpy as jnp
from jax.experimental import pallas as pl
from jax.experimental.pallas import tpu as pltpu  # noqa: F401  (no TPU-specific params needed)

# ----------------------------- hyper-parameters ------------------------------
QUERY_KEYS = ("trans", "rot")
QUERY_DIMS = (3, 6)
LATENT = 32          # latent_dim
FF_SIZE = 64         # dim_feedforward (small for the demo)
NUM_LAYERS = 2       # number of transformer encoder layers (small for the demo)
NUM_HEADS = 4
MAX_LEN = 1000       # positional-encoding table length
QIN = 16             # packed query-input width (sum(QUERY_DIMS)=9, padded to 16)

BATCH = 2
NFRAMES = 8          # query sequence length
IMG_TOKENS = 4       # image-feature sequence length


# ============================ static slab layouts =============================
def _slab_layouts():
    D, FF = LATENT, FF_SIZE
    w_entries = [("wqe", QIN, D), ("tm1", D, D), ("tm2", D, D)]
    for l in range(NUM_LAYERS):
        w_entries += [(f"wqkv{l}", D, 3 * D), (f"wo{l}", D, D),
                      (f"ff1{l}", D, FF), (f"ff2{l}", FF, D)]
    w_entries += [("h1", D, D), ("h2", D, D), ("h3", D, 128)]
    woff, r = {}, 0
    for name, rows, cols in w_entries:
        woff[name] = (r, rows, cols)
        r += ((rows + 15) // 16) * 16          # bf16 sublane-pack friendly offsets
    w_rows = r

    b_entries = [("tm1_b", D), ("tm2_b", D)]
    for l in range(NUM_LAYERS):
        b_entries += [(f"bqkv{l}", 3 * D), (f"bo{l}", D),
                      (f"ff1b{l}", FF), (f"ff2b{l}", D),
                      (f"ln1g{l}", D), (f"ln1b{l}", D),
                      (f"ln2g{l}", D), (f"ln2b{l}", D)]
    b_entries += [("h1b", D), ("h2b", D), ("h3b", 128)]
    boff = {name: (i, cols) for i, (name, cols) in enumerate(b_entries)}
    b_rows = ((len(b_entries) + 7) // 8) * 8
    return woff, w_rows, boff, b_rows


W_OFF, W_ROWS, B_OFF, B_ROWS = _slab_layouts()


# ================================ fused kernel ================================
def _fused_predictor_kernel(din_ref, w_ref, b_ref, out_ref, *, BT):
    """din: [BT, 96+BT] f32 data slab; w: [W_ROWS,128] bf16; b: [B_ROWS,128] f32."""
    D, H, Dh, FF = LATENT, NUM_HEADS, LATENT // NUM_HEADS, FF_SIZE
    f32, bf16 = jnp.float32, jnp.bfloat16

    def W(name):                       # static slice of the bf16 weight slab (free)
        r, rows, cols = W_OFF[name]
        return w_ref[r:r + rows, 0:cols]

    def Bv(name):                      # static [1, cols] slice of the f32 bias slab
        r, cols = B_OFF[name]
        return b_ref[r:r + 1, 0:cols]

    def mm(a, w):                      # bf16 MXU matmul, f32 accumulation
        return jnp.dot(a.astype(bf16), w, preferred_element_type=f32)

    def ln(v, g, b):                   # LayerNorm, eps=1e-5 (PyTorch default)
        mu = jnp.mean(v, axis=-1, keepdims=True)
        var = jnp.mean(jnp.square(v - mu), axis=-1, keepdims=True)
        return (v - mu) * jax.lax.rsqrt(var + 1e-5) * g + b

    din = din_ref[...]
    qp = din[:, 0:QIN]                         # packed query features (zero elsewhere)
    feat = din[:, QIN:QIN + D]                 # pe[t] on the time row / img tokens
    pe = din[:, QIN + D:QIN + 2 * D]           # positional enc (+ query-emb bias)
    tmask = din[:, QIN + 2 * D:QIN + 2 * D + 1]  # 1.0 on time rows
    amask = din[:, 96:96 + BT]                 # block-diagonal batch attention mask

    # ---- Query_emb_model + StepEncoding, row-wise on the whole slab ----
    # TODO(synk): Query_emb_model / StepEncoding sources not provided; per-key
    # linear embedding summed over keys and pe[t] -> Linear -> SiLU -> Linear
    # (MDM-style) are assumed.
    emb = mm(qp, W("wqe"))                                        # zero on non-query rows
    t = jax.nn.silu(mm(feat, W("tm1")) + Bv("tm1_b"))
    t = mm(t, W("tm2")) + Bv("tm2_b")
    base = emb + feat
    x = base + tmask * (t - base) + pe                            # [BT, D]

    # ---- seqTransEncoder (post-norm, gelu, dropout=0) ----
    for l in range(NUM_LAYERS):
        qkv = mm(x, W(f"wqkv{l}")) + Bv(f"bqkv{l}")               # [BT, 3D]; q pre-scaled

        def split_heads(off):                                     # [BT, D] -> [H, BT, Dh]
            return jnp.stack(
                [qkv[:, off + h * Dh: off + (h + 1) * Dh] for h in range(H)], axis=0)

        qh, kh, vh = split_heads(0), split_heads(D), split_heads(2 * D)
        s = jnp.einsum('hqd,hkd->hqk', qh.astype(bf16), kh.astype(bf16),
                       preferred_element_type=f32) + amask        # [H, BT, BT]
        s = s - jnp.max(s, axis=-1, keepdims=True)
        p = jnp.exp(s)
        p = p * pl.reciprocal(jnp.sum(p, axis=-1, keepdims=True), approx=True)
        o = jnp.einsum('hqk,hkd->hqd', p.astype(bf16), vh.astype(bf16),
                       preferred_element_type=f32)                # [H, BT, Dh]
        o_cat = jnp.concatenate([o[h] for h in range(H)], axis=-1)  # [BT, D] head-major
        attn = mm(o_cat, W(f"wo{l}")) + Bv(f"bo{l}")

        x = ln(x + attn, Bv(f"ln1g{l}"), Bv(f"ln1b{l}"))
        ff = jax.nn.gelu(mm(x, W(f"ff1{l}")) + Bv(f"ff1b{l}"), approximate=True)
        ff = mm(ff, W(f"ff2{l}")) + Bv(f"ff2b{l}")
        x = ln(x + ff, Bv(f"ln2g{l}"), Bv(f"ln2b{l}"))

    # ---- packed output heads (row-wise; wrapper gathers the motion rows) ----
    h = jax.nn.gelu(mm(x, W("h1")) + Bv("h1b"), approximate=True)
    h = jax.nn.gelu(mm(h, W("h2")) + Bv("h2b"), approximate=True)
    out_ref[...] = mm(h, W("h3")) + Bv("h3b")                     # [BT, 128] lane-dense


# ============================== parameter setup ===============================
def _linear_init(key, fan_in, fan_out):
    k1, k2 = jax.random.split(key)
    bound = 1.0 / math.sqrt(fan_in)
    w = jax.random.uniform(k1, (fan_in, fan_out), jnp.float32, -bound, bound)
    b = jax.random.uniform(k2, (fan_out,), jnp.float32, -bound, bound)
    return w, b


def _sinusoidal_pe(max_len, d):
    pos = jnp.arange(max_len, dtype=jnp.float32)[:, None]
    div = jnp.exp(jnp.arange(0, d, 2, dtype=jnp.float32) * (-math.log(10000.0) / d))
    pe = jnp.zeros((max_len, d), jnp.float32)
    pe = pe.at[:, 0::2].set(jnp.sin(pos * div))
    pe = pe.at[:, 1::2].set(jnp.cos(pos * div))
    return pe


def _block_diag(mats):
    rows = sum(m.shape[0] for m in mats)
    cols = sum(m.shape[1] for m in mats)
    out = jnp.zeros((rows, cols), jnp.float32)
    r = c = 0
    for m in mats:
        out = out.at[r:r + m.shape[0], c:c + m.shape[1]].set(m)
        r += m.shape[0]
        c += m.shape[1]
    return out


def init_params(key):
    D, FF, half, Dh = LATENT, FF_SIZE, LATENT // 2, LATENT // NUM_HEADS
    kqe, ktm, klay, khead = jax.random.split(key, 4)

    wslab = jnp.zeros((W_ROWS, 128), jnp.float32)
    bslab = jnp.zeros((B_ROWS, 128), jnp.float32)

    def put_w(s, name, a):
        r, _, _ = W_OFF[name]
        return s.at[r:r + a.shape[0], 0:a.shape[1]].set(a)

    def put_b(s, name, v):
        r, _ = B_OFF[name]
        return s.at[r, 0:v.shape[0]].set(v)

    # Query_emb_model: per-key Linear(dim_k -> latent), summed over keys, packed
    # into one [QIN, D] matmul (sum of linears == concat matmul).  Its bias is
    # folded into the positional-encoding columns of the data slab (wrapper side).
    qe = [_linear_init(kk, d, D)
          for d, kk in zip(QUERY_DIMS, jax.random.split(kqe, len(QUERY_KEYS)))]
    wqe = jnp.concatenate([w for w, _ in qe], axis=0)                 # [9, D]
    wqe = jnp.pad(wqe, ((0, QIN - wqe.shape[0]), (0, 0)))             # [QIN, D]
    bqe = sum(b for _, b in qe)                                       # [D]
    wslab = put_w(wslab, "wqe", wqe)

    # StepEncoding (MDM TimestepEmbedder): pe[t] -> Linear -> SiLU -> Linear
    k1, k2 = jax.random.split(ktm)
    w1, b1 = _linear_init(k1, D, D)
    w2, b2 = _linear_init(k2, D, D)
    wslab = put_w(wslab, "tm1", w1)
    wslab = put_w(wslab, "tm2", w2)
    bslab = put_b(bslab, "tm1_b", b1)
    bslab = put_b(bslab, "tm2_b", b2)

    # Transformer encoder layers.  Q|K|V packed head-major along columns; the
    # 1/sqrt(Dh) attention scale is folded into the Q columns / bias at init.
    scale = 1.0 / math.sqrt(Dh)
    for l, lk in enumerate(jax.random.split(klay, NUM_LAYERS)):
        ka, kb, kc, kd = jax.random.split(lk, 4)
        w_in, b_in = _linear_init(ka, D, 3 * D)
        w_in = w_in.at[:, 0:D].multiply(scale)
        b_in = b_in.at[0:D].multiply(scale)
        wo, bo = _linear_init(kb, D, D)
        w1f, b1f = _linear_init(kc, D, FF)
        w2f, b2f = _linear_init(kd, FF, D)
        wslab = put_w(wslab, f"wqkv{l}", w_in)
        wslab = put_w(wslab, f"wo{l}", wo)
        wslab = put_w(wslab, f"ff1{l}", w1f)
        wslab = put_w(wslab, f"ff2{l}", w2f)
        bslab = put_b(bslab, f"bqkv{l}", b_in)
        bslab = put_b(bslab, f"bo{l}", bo)
        bslab = put_b(bslab, f"ff1b{l}", b1f)
        bslab = put_b(bslab, f"ff2b{l}", b2f)
        bslab = put_b(bslab, f"ln1g{l}", jnp.ones((D,), jnp.float32))
        bslab = put_b(bslab, f"ln2g{l}", jnp.ones((D,), jnp.float32))
        # ln biases stay zero (slab initialised to zeros)

    # Output heads: per key LinearBlock(D,D/2,gelu) -> (D/2,D/2,gelu) -> (D/2,dim),
    # packed across keys into block-diagonal matmuls; last layer padded to 128 lanes.
    # TODO(synk): LinearBlock source not provided; Linear + activation is assumed.
    h1w, h1b, h2w, h2b, h3w, h3b = [], [], [], [], [], []
    for d, hk in zip(QUERY_DIMS, jax.random.split(khead, len(QUERY_KEYS))):
        ka, kb, kc = jax.random.split(hk, 3)
        w, b = _linear_init(ka, D, half); h1w.append(w); h1b.append(b)
        w, b = _linear_init(kb, half, half); h2w.append(w); h2b.append(b)
        w, b = _linear_init(kc, half, d); h3w.append(w); h3b.append(b)
    n_out = sum(QUERY_DIMS)
    wslab = put_w(wslab, "h1", jnp.concatenate(h1w, axis=1))
    wslab = put_w(wslab, "h2", _block_diag(h2w))
    wslab = put_w(wslab, "h3", jnp.pad(_block_diag(h3w), ((0, 0), (0, 128 - n_out))))
    bslab = put_b(bslab, "h1b", jnp.concatenate(h1b))
    bslab = put_b(bslab, "h2b", jnp.concatenate(h2b))
    bslab = put_b(bslab, "h3b", jnp.pad(jnp.concatenate(h3b), (0, 128 - n_out)))

    return {"pe": _sinusoidal_pe(MAX_LEN, LATENT),
            "bqe": bqe,
            "wslab": wslab.astype(jnp.bfloat16),
            "bslab": bslab}


# ================================ forward pass ================================
@jax.jit
def transformer_predictor_forward(params, img_feature, query, time_step):
    """img_feature: [S_img, B, D]; query[key]: [B, S, dim_k]; time_step: [B] int32."""
    D = LATENT
    B, S, _ = query[QUERY_KEYS[0]].shape
    S_img = img_feature.shape[0]
    T = S + 1 + S_img                    # query tokens + time token + image tokens
    BT = B * T
    BTp = ((BT + 7) // 8) * 8            # pad merged rows to a sublane multiple

    pe = params["pe"]

    # ---- build the single [BTp, 96+BTp] f32 data slab (one DMA) ----
    qp = jnp.concatenate([query[k] for k in QUERY_KEYS], axis=-1)        # [B, S, 9]
    n_in = qp.shape[-1]
    col_q = jnp.zeros((B, T, QIN), jnp.float32).at[:, :S, :n_in].set(qp)

    feat = jnp.zeros((B, T, D), jnp.float32)
    feat = feat.at[:, S, :].set(pe[time_step])                           # time-MLP input
    feat = feat.at[:, S + 1:, :].set(jnp.transpose(img_feature, (1, 0, 2)))

    # Positional encodings: pe[0:S+1] on [query|time] tokens and pe[0:S_img] on the
    # image tokens — the reference applies sequence_pos_encoder to each group
    # separately before concatenation.  The query-embedding bias is folded in here.
    pecol = jnp.zeros((B, T, D), jnp.float32)
    pecol = pecol.at[:, :S + 1, :].set(jnp.broadcast_to(pe[:S + 1][None], (B, S + 1, D)))
    pecol = pecol.at[:, :S, :].add(params["bqe"][None, None, :])
    pecol = pecol.at[:, S + 1:, :].set(jnp.broadcast_to(pe[:S_img][None], (B, S_img, D)))

    tmask = jnp.zeros((B, T, 1), jnp.float32).at[:, S, 0].set(1.0)

    din = jnp.concatenate([col_q, feat, pecol, tmask], axis=-1).reshape(BT, QIN + 2 * D + 1)
    din = jnp.pad(din, ((0, BTp - BT), (0, 96 - (QIN + 2 * D + 1))))

    # Block-diagonal attention mask keeps the merged-batch attention per-batch;
    # pad rows land in group >= B and are fully isolated from real rows.
    gid = jnp.arange(BTp) // T
    amask = jnp.where(gid[:, None] == gid[None, :], 0.0, -1e30).astype(jnp.float32)
    din = jnp.concatenate([din, amask], axis=-1)                         # [BTp, 96+BTp]

    fused = pl.pallas_call(
        functools.partial(_fused_predictor_kernel, BT=BTp),
        out_shape=jax.ShapeDtypeStruct((BTp, 128), jnp.float32),
    )(din, params["wslab"], params["bslab"])

    # img_guidance_rate = 1.0 -> image tokens are always concatenated (handled above).
    out = {}
    off = 0
    for kname, d in zip(QUERY_KEYS, QUERY_DIMS):
        head = jnp.stack([fused[b * T: b * T + S, off:off + d] for b in range(B)], axis=0)
        out[kname] = query[kname] + head
        off += d
    return out


# ===================================== main ===================================
if __name__ == "__main__":
    root = jax.random.PRNGKey(0)
    k_param, k_img, k_q1, k_q2 = jax.random.split(root, 4)

    params = init_params(k_param)

    img_feature = jax.random.normal(k_img, (IMG_TOKENS, BATCH, LATENT), jnp.float32)
    query = {
        "trans": jax.random.normal(k_q1, (BATCH, NFRAMES, QUERY_DIMS[0]), jnp.float32),
        "rot":   jax.random.normal(k_q2, (BATCH, NFRAMES, QUERY_DIMS[1]), jnp.float32),
    }
    time_step = jnp.array([10, 250], dtype=jnp.int32)

    pred = transformer_predictor_forward(params, img_feature, query, time_step)
    jax.block_until_ready(pred)

    assert pred["trans"].shape == (BATCH, NFRAMES, QUERY_DIMS[0])
    assert pred["rot"].shape == (BATCH, NFRAMES, QUERY_DIMS[1])
    assert all(bool(jnp.all(jnp.isfinite(v))) for v in pred.values())
    print("KERNEL_OK")
</pallas_src>

<mosaic_0001>
module attributes {stable_mosaic.version = 11 : i64} {
  func.func @_fused_predictor_kernel(%arg0: memref<32x128xf32, #tpu.memory_space<vmem>>, %arg1: memref<496x128xbf16, #tpu.memory_space<vmem>>, %arg2: memref<24x128xf32, #tpu.memory_space<vmem>>, %arg3: memref<32x128xf32, #tpu.memory_space<vmem>>) attributes {dimension_semantics = [], scalar_prefetch = 0 : i64, scratch_operands = 0 : i64, tpu.core_type = #tpu.core_type<tc>} {
    %c0 = arith.constant 0 : index
    %c0_0 = arith.constant 0 : index
    %0 = vector.load %arg0[%c0, %c0_0] : memref<32x128xf32, #tpu.memory_space<vmem>>, vector<32x128xf32>
    %1 = vector.extract_strided_slice %0 {offsets = [0, 0], sizes = [32, 16], strides = [1, 1]} : vector<32x128xf32> to vector<32x16xf32>
    %2 = vector.extract_strided_slice %0 {offsets = [0, 16], sizes = [32, 32], strides = [1, 1]} : vector<32x128xf32> to vector<32x32xf32>
    %3 = vector.extract_strided_slice %0 {offsets = [0, 48], sizes = [32, 32], strides = [1, 1]} : vector<32x128xf32> to vector<32x32xf32>
    %4 = vector.extract_strided_slice %0 {offsets = [0, 80], sizes = [32, 1], strides = [1, 1]} : vector<32x128xf32> to vector<32x1xf32>
    %5 = vector.extract_strided_slice %0 {offsets = [0, 96], sizes = [32, 32], strides = [1, 1]} : vector<32x128xf32> to vector<32x32xf32>
    %c0_1 = arith.constant 0 : index
    %c0_2 = arith.constant 0 : index
    %6 = vector.load %arg1[%c0_1, %c0_2] : memref<496x128xbf16, #tpu.memory_space<vmem>>, vector<16x32xbf16>
    %7 = arith.truncf %1 : vector<32x16xf32> to vector<32x16xbf16>
    %cst = arith.constant dense<0.000000e+00> : vector<32x32xf32>
    %8 = tpu.matmul %7, %6, %cst {dimension_numbers = #tpu.dot_dimension_numbers<[1], [0], [0], [1], [0, 0, 1, 1], [], []>} : vector<32x16xbf16>, vector<16x32xbf16>, vector<32x32xf32> -> vector<32x32xf32>
    %c16 = arith.constant 16 : index
    %c0_3 = arith.constant 0 : index
    %9 = vector.load %arg1[%c16, %c0_3] : memref<496x128xbf16, #tpu.memory_space<vmem>>, vector<32x32xbf16>
    %10 = arith.truncf %2 : vector<32x32xf32> to vector<32x32xbf16>
    %cst_4 = arith.constant dense<0.000000e+00> : vector<32x32xf32>
    %11 = tpu.matmul %10, %9, %cst_4 {dimension_numbers = #tpu.dot_dimension_numbers<[1], [0], [0], [1], [0, 0, 1, 1], [], []>} : vector<32x32xbf16>, vector<32x32xbf16>, vector<32x32xf32> -> vector<32x32xf32>
    %c0_5 = arith.constant 0 : index
    %c0_6 = arith.constant 0 : index
    %12 = vector.load %arg2[%c0_5, %c0_6] : memref<24x128xf32, #tpu.memory_space<vmem>>, vector<1x32xf32>
    %13 = vector.broadcast %12 : vector<1x32xf32> to vector<32x32xf32>
    %14 = arith.addf %11, %13 : vector<32x32xf32>
    %15 = arith.negf %14 : vector<32x32xf32>
    %16 = math.exp %15 : vector<32x32xf32>
    %cst_7 = arith.constant 1.000000e+00 : f32
    %17 = vector.broadcast %cst_7 : f32 to vector<32x32xf32>
    %18 = arith.addf %17, %16 : vector<32x32xf32>
    %19 = arith.divf %17, %18 : vector<32x32xf32>
    %20 = arith.mulf %14, %19 : vector<32x32xf32>
    %c48 = arith.constant 48 : index
    %c0_8 = arith.constant 0 : index
    %21 = vector.load %arg1[%c48, %c0_8] : memref<496x128xbf16, #tpu.memory_space<vmem>>, vector<32x32xbf16>
    %22 = arith.truncf %20 : vector<32x32xf32> to vector<32x32xbf16>
    %cst_9 = arith.constant dense<0.000000e+00> : vector<32x32xf32>
    %23 = tpu.matmul %22, %21, %cst_9 {dimension_numbers = #tpu.dot_dimension_numbers<[1], [0], [0], [1], [0, 0, 1, 1], [], []>} : vector<32x32xbf16>, vector<32x32xbf16>, vector<32x32xf32> -> vector<32x32xf32>
    %c1 = arith.constant 1 : index
    %c0_10 = arith.constant 0 : index
    %24 = vector.load %arg2[%c1, %c0_10] : memref<24x128xf32, #tpu.memory_space<vmem>>, vector<1x32xf32>
    %25 = vector.broadcast %24 : vector<1x32xf32> to vector<32x32xf32>
    %26 = arith.addf %23, %25 : vector<32x32xf32>
    %27 = arith.addf %8, %2 : vector<32x32xf32>
    %28 = arith.subf %26, %27 : vector<32x32xf32>
    %29 = vector.broadcast %4 : vector<32x1xf32> to vector<32x32xf32>
    %30 = arith.mulf %29, %28 : vector<32x32xf32>
    %31 = arith.addf %27, %30 : vector<32x32xf32>
    %32 = arith.addf %31, %3 : vector<32x32xf32>
    %c80 = arith.constant 80 : index
    %c0_11 = arith.constant 0 : index
    %33 = vector.load %arg1[%c80, %c0_11] : memref<496x128xbf16, #tpu.memory_space<vmem>>, vector<32x96xbf16>
    %34 = arith.truncf %32 : vector<32x32xf32> to vector<32x32xbf16>
    %cst_12 = arith.constant dense<0.000000e+00> : vector<32x96xf32>
    %35 = tpu.matmul %34, %33, %cst_12 {dimension_numbers = #tpu.dot_dimension_numbers<[1], [0], [0], [1], [0, 0, 1, 1], [], []>} : vector<32x32xbf16>, vector<32x96xbf16>, vector<32x96xf32> -> vector<32x96xf32>
    %c2 = arith.constant 2 : index
    %c0_13 = arith.constant 0 : index
    %36 = vector.load %arg2[%c2, %c0_13] : memref<24x128xf32, #tpu.memory_space<vmem>>, vector<1x96xf32>
    %37 = vector.broadcast %36 : vector<1x96xf32> to vector<32x96xf32>
    %38 = arith.addf %35, %37 : vector<32x96xf32>
    %39 = vector.extract_strided_slice %38 {offsets = [0, 0], sizes = [32, 8], strides = [1, 1]} : vector<32x96xf32> to vector<32x8xf32>
    %40 = vector.extract_strided_slice %38 {offsets = [0, 8], sizes = [32, 8], strides = [1, 1]} : vector<32x96xf32> to vector<32x8xf32>
    %41 = vector.extract_strided_slice %38 {offsets = [0, 16], sizes = [32, 8], strides = [1, 1]} : vector<32x96xf32> to vector<32x8xf32>
    %42 = vector.extract_strided_slice %38 {offsets = [0, 24], sizes = [32, 8], strides = [1, 1]} : vector<32x96xf32> to vector<32x8xf32>
    %43 = vector.shape_cast %39 : vector<32x8xf32> to vector<1x32x8xf32>
    %44 = vector.shape_cast %40 : vector<32x8xf32> to vector<1x32x8xf32>
    %45 = vector.shape_cast %41 : vector<32x8xf32> to vector<1x32x8xf32>
    %46 = vector.shape_cast %42 : vector<32x8xf32> to vector<1x32x8xf32>
    %47 = tpu.concatenate %43, %44, %45, %46 in 0 : vector<1x32x8xf32>, vector<1x32x8xf32>, vector<1x32x8xf32>, vector<1x32x8xf32> -> vector<4x32x8xf32>
    %48 = vector.extract_strided_slice %38 {offsets = [0, 32], sizes = [32, 8], strides = [1, 1]} : vector<32x96xf32> to vector<32x8xf32>
    %49 = vector.extract_strided_slice %38 {offsets = [0, 40], sizes = [32, 8], strides = [1, 1]} : vector<32x96xf32> to vector<32x8xf32>
    %50 = vector.extract_strided_slice %38 {offsets = [0, 48], sizes = [32, 8], strides = [1, 1]} : vector<32x96xf32> to vector<32x8xf32>
    %51 = vector.extract_strided_slice %38 {offsets = [0, 56], sizes = [32, 8], strides = [1, 1]} : vector<32x96xf32> to vector<32x8xf32>
    %52 = vector.shape_cast %48 : vector<32x8xf32> to vector<1x32x8xf32>
    %53 = vector.shape_cast %49 : vector<32x8xf32> to vector<1x32x8xf32>
    %54 = vector.shape_cast %50 : vector<32x8xf32> to vector<1x32x8xf32>
    %55 = vector.shape_cast %51 : vector<32x8xf32> to vector<1x32x8xf32>
    %56 = tpu.concatenate %52, %53, %54, %55 in 0 : vector<1x32x8xf32>, vector<1x32x8xf32>, vector<1x32x8xf32>, vector<1x32x8xf32> -> vector<4x32x8xf32>
    %57 = vector.extract_strided_slice %38 {offsets = [0, 64], sizes = [32, 8], strides = [1, 1]} : vector<32x96xf32> to vector<32x8xf32>
    %58 = vector.extract_strided_slice %38 {offsets = [0, 72], sizes = [32, 8], strides = [1, 1]} : vector<32x96xf32> to vector<32x8xf32>
    %59 = vector.extract_strided_slice %38 {offsets = [0, 80], sizes = [32, 8], strides = [1, 1]} : vector<32x96xf32> to vector<32x8xf32>
    %60 = vector.extract_strided_slice %38 {offsets = [0, 88], sizes = [32, 8], strides = [1, 1]} : vector<32x96xf32> to vector<32x8xf32>
    %61 = vector.shape_cast %57 : vector<32x8xf32> to vector<1x32x8xf32>
    %62 = vector.shape_cast %58 : vector<32x8xf32> to vector<1x32x8xf32>
    %63 = vector.shape_cast %59 : vector<32x8xf32> to vector<1x32x8xf32>
    %64 = vector.shape_cast %60 : vector<32x8xf32> to vector<1x32x8xf32>
    %65 = tpu.concatenate %61, %62, %63, %64 in 0 : vector<1x32x8xf32>, vector<1x32x8xf32>, vector<1x32x8xf32>, vector<1x32x8xf32> -> vector<4x32x8xf32>
    %66 = arith.truncf %47 : vector<4x32x8xf32> to vector<4x32x8xbf16>
    %67 = arith.truncf %56 : vector<4x32x8xf32> to vector<4x32x8xbf16>
    "tpu.trace_start"() <{level = 10 : i32, message = "hqd,hkd->hqk"}> : () -> ()
    %cst_14 = arith.constant dense<0.000000e+00> : vector<4x32x32xf32>
    %68 = tpu.matmul %66, %67, %cst_14 {dimension_numbers = #tpu.dot_dimension_numbers<[2], [2], [1], [1], [0, 0, 0, 1, 1, 1], [0], [0]>} : vector<4x32x8xbf16>, vector<4x32x8xbf16>, vector<4x32x32xf32> -> vector<4x32x32xf32>
    "tpu.trace_stop"() : () -> ()
    %69 = vector.shape_cast %5 : vector<32x32xf32> to vector<1x32x32xf32>
    %70 = vector.broadcast %69 : vector<1x32x32xf32> to vector<4x32x32xf32>
    %71 = arith.addf %68, %70 : vector<4x32x32xf32>
    %cst_15 = arith.constant dense<0xFF800000> : vector<4x32xf32>
    %72 = vector.multi_reduction <maximumf>, %71, %cst_15 [2] : vector<4x32x32xf32> to vector<4x32xf32>
    %73 = vector.shape_cast %72 : vector<4x32xf32> to vector<4x32x1xf32>
    %74 = vector.broadcast %73 : vector<4x32x1xf32> to vector<4x32x32xf32>
    %75 = arith.subf %71, %74 : vector<4x32x32xf32>
    %76 = math.exp %75 : vector<4x32x32xf32>
    %cst_16 = arith.constant dense<0.000000e+00> : vector<4x32xf32>
    %77 = vector.multi_reduction <add>, %76, %cst_16 [2] : vector<4x32x32xf32> to vector<4x32xf32>
    %78 = vector.shape_cast %77 : vector<4x32xf32> to vector<4x32x1xf32>
    %79 = tpu.reciprocal %78 {approx = true} : vector<4x32x1xf32> -> vector<4x32x1xf32>
    %80 = vector.broadcast %79 : vector<4x32x1xf32> to vector<4x32x32xf32>
    %81 = arith.mulf %76, %80 : vector<4x32x32xf32>
    %82 = arith.truncf %81 : vector<4x32x32xf32> to vector<4x32x32xbf16>
    %83 = arith.truncf %65 : vector<4x32x8xf32> to vector<4x32x8xbf16>
    "tpu.trace_start"() <{level = 10 : i32, message = "hqk,hkd->hqd"}> : () -> ()
    %cst_17 = arith.constant dense<0.000000e+00> : vector<4x32x8xf32>
    %84 = tpu.matmul %82, %83, %cst_17 {dimension_numbers = #tpu.dot_dimension_numbers<[2], [1], [1], [2], [0, 0, 0, 1, 1, 2], [0], [0]>} : vector<4x32x32xbf16>, vector<4x32x8xbf16>, vector<4x32x8xf32> -> vector<4x32x8xf32>
    "tpu.trace_stop"() : () -> ()
    %85 = vector.extract_strided_slice %84 {offsets = [0, 0, 0], sizes = [1, 32, 8], strides = [1, 1, 1]} : vector<4x32x8xf32> to vector<1x32x8xf32>
    %86 = vector.shape_cast %85 : vector<1x32x8xf32> to vector<32x8xf32>
    %87 = vector.extract_strided_slice %84 {offsets = [1, 0, 0], sizes = [1, 32, 8], strides = [1, 1, 1]} : vector<4x32x8xf32> to vector<1x32x8xf32>
    %88 = vector.shape_cast %87 : vector<1x32x8xf32> to vector<32x8xf32>
    %89 = vector.extract_strided_slice %84 {offsets = [2, 0, 0], sizes = [1, 32, 8], strides = [1, 1, 1]} : vector<4x32x8xf32> to vector<1x32x8xf32>
    %90 = vector.shape_cast %89 : vector<1x32x8xf32> to vector<32x8xf32>
    %91 = vector.extract_strided_slice %84 {offsets = [3, 0, 0], sizes = [1, 32, 8], strides = [1, 1, 1]} : vector<4x32x8xf32> to vector<1x32x8xf32>
    %92 = vector.shape_cast %91 : vector<1x32x8xf32> to vector<32x8xf32>
    %93 = tpu.concatenate %86, %88, %90, %92 in 1 : vector<32x8xf32>, vector<32x8xf32>, vector<32x8xf32>, vector<32x8xf32> -> vector<32x32xf32>
    %c112 = arith.constant 112 : index
    %c0_18 = arith.constant 0 : index
    %94 = vector.load %arg1[%c112, %c0_18] : memref<496x128xbf16, #tpu.memory_space<vmem>>, vector<32x32xbf16>
    %95 = arith.truncf %93 : vector<32x32xf32> to vector<32x32xbf16>
    %cst_19 = arith.constant dense<0.000000e+00> : vector<32x32xf32>
    %96 = tpu.matmul %95, %94, %cst_19 {dimension_numbers = #tpu.dot_dimension_numbers<[1], [0], [0], [1], [0, 0, 1, 1], [], []>} : vector<32x32xbf16>, vector<32x32xbf16>, vector<32x32xf32> -> vector<32x32xf32>
    %c3 = arith.constant 3 : index
    %c0_20 = arith.constant 0 : index
    %97 = vector.load %arg2[%c3, %c0_20] : memref<24x128xf32, #tpu.memory_space<vmem>>, vector<1x32xf32>
    %98 = vector.broadcast %97 : vector<1x32xf32> to vector<32x32xf32>
    %99 = arith.addf %96, %98 : vector<32x32xf32>
    %100 = arith.addf %32, %99 : vector<32x32xf32>
    %c6 = arith.constant 6 : index
    %c0_21 = arith.constant 0 : index
    %101 = vector.load %arg2[%c6, %c0_21] : memref<24x128xf32, #tpu.memory_space<vmem>>, vector<1x32xf32>
    %c7 = arith.constant 7 : index
    %c0_22 = arith.constant 0 : index
    %102 = vector.load %arg2[%c7, %c0_22] : memref<24x128xf32, #tpu.memory_space<vmem>>, vector<1x32xf32>
    %cst_23 = arith.constant dense<0.000000e+00> : vector<32xf32>
    %103 = vector.multi_reduction <add>, %100, %cst_23 [1] : vector<32x32xf32> to vector<32xf32>
    %104 = vector.shape_cast %103 : vector<32xf32> to vector<32x1xf32>
    %cst_24 = arith.constant 3.200000e+01 : f32
    %105 = vector.broadcast %cst_24 : f32 to vector<32x1xf32>
    %106 = arith.divf %104, %105 : vector<32x1xf32>
    %107 = vector.broadcast %106 : vector<32x1xf32> to vector<32x32xf32>
    %108 = arith.subf %100, %107 : vector<32x32xf32>
    %109 = arith.mulf %108, %108 : vector<32x32xf32>
    %cst_25 = arith.constant dense<0.000000e+00> : vector<32xf32>
    %110 = vector.multi_reduction <add>, %109, %cst_25 [1] : vector<32x32xf32> to vector<32xf32>
    %111 = vector.shape_cast %110 : vector<32xf32> to vector<32x1xf32>
    %cst_26 = arith.constant 3.200000e+01 : f32
    %112 = vector.broadcast %cst_26 : f32 to vector<32x1xf32>
    %113 = arith.divf %111, %112 : vector<32x1xf32>
    %114 = vector.broadcast %106 : vector<32x1xf32> to vector<32x32xf32>
    %115 = arith.subf %100, %114 : vector<32x32xf32>
    %cst_27 = arith.constant 9.99999974E-6 : f32
    %116 = vector.broadcast %cst_27 : f32 to vector<32x1xf32>
    %117 = arith.addf %113, %116 : vector<32x1xf32>
    %118 = math.rsqrt %117 : vector<32x1xf32>
    %119 = vector.broadcast %118 : vector<32x1xf32> to vector<32x32xf32>
    %120 = arith.mulf %115, %119 : vector<32x32xf32>
    %121 = vector.broadcast %101 : vector<1x32xf32> to vector<32x32xf32>
    %122 = arith.mulf %120, %121 : vector<32x32xf32>
    %123 = vector.broadcast %102 : vector<1x32xf32> to vector<32x32xf32>
    %124 = arith.addf %122, %123 : vector<32x32xf32>
    %c144 = arith.constant 144 : index
    %c0_28 = arith.constant 0 : index
    %125 = vector.load %arg1[%c144, %c0_28] : memref<496x128xbf16, #tpu.memory_space<vmem>>, vector<32x64xbf16>
    %126 = arith.truncf %124 : vector<32x32xf32> to vector<32x32xbf16>
    %cst_29 = arith.constant dense<0.000000e+00> : vector<32x64xf32>
    %127 = tpu.matmul %126, %125, %cst_29 {dimension_numbers = #tpu.dot_dimension_numbers<[1], [0], [0], [1], [0, 0, 1, 1], [], []>} : vector<32x32xbf16>, vector<32x64xbf16>, vector<32x64xf32> -> vector<32x64xf32>
    %c4 = arith.constant 4 : index
    %c0_30 = arith.constant 0 : index
    %128 = vector.load %arg2[%c4, %c0_30] : memref<24x128xf32, #tpu.memory_space<vmem>>, vector<1x64xf32>
    %129 = vector.broadcast %128 : vector<1x64xf32> to vector<32x64xf32>
    %130 = arith.addf %127, %129 : vector<32x64xf32>
    %131 = arith.mulf %130, %130 : vector<32x64xf32>
    %132 = arith.mulf %130, %131 : vector<32x64xf32>
    %cst_31 = arith.constant 4.471500e-02 : f32
    %133 = vector.broadcast %cst_31 : f32 to vector<32x64xf32>
    %134 = arith.mulf %133, %132 : vector<32x64xf32>
    %135 = arith.addf %130, %134 : vector<32x64xf32>
    %cst_32 = arith.constant 0.797884583 : f32
    %136 = vector.broadcast %cst_32 : f32 to vector<32x64xf32>
    %137 = arith.mulf %136, %135 : vector<32x64xf32>
    %138 = math.tanh %137 : vector<32x64xf32>
    %cst_33 = arith.constant 1.000000e+00 : f32
    %139 = vector.broadcast %cst_33 : f32 to vector<32x64xf32>
    %140 = arith.addf %139, %138 : vector<32x64xf32>
    %cst_34 = arith.constant 5.000000e-01 : f32
    %141 = vector.broadcast %cst_34 : f32 to vector<32x64xf32>
    %142 = arith.mulf %141, %140 : vector<32x64xf32>
    %143 = arith.mulf %130, %142 : vector<32x64xf32>
    %c176 = arith.constant 176 : index
    %c0_35 = arith.constant 0 : index
    %144 = vector.load %arg1[%c176, %c0_35] : memref<496x128xbf16, #tpu.memory_space<vmem>>, vector<64x32xbf16>
    %145 = arith.truncf %143 : vector<32x64xf32> to vector<32x64xbf16>
    %cst_36 = arith.constant dense<0.000000e+00> : vector<32x32xf32>
    %146 = tpu.matmul %145, %144, %cst_36 {dimension_numbers = #tpu.dot_dimension_numbers<[1], [0], [0], [1], [0, 0, 1, 1], [], []>} : vector<32x64xbf16>, vector<64x32xbf16>, vector<32x32xf32> -> vector<32x32xf32>
    %c5 = arith.constant 5 : index
    %c0_37 = arith.constant 0 : index
    %147 = vector.load %arg2[%c5, %c0_37] : memref<24x128xf32, #tpu.memory_space<vmem>>, vector<1x32xf32>
    %148 = vector.broadcast %147 : vector<1x32xf32> to vector<32x32xf32>
    %149 = arith.addf %146, %148 : vector<32x32xf32>
    %150 = arith.addf %124, %149 : vector<32x32xf32>
    %c8 = arith.constant 8 : index
    %c0_38 = arith.constant 0 : index
    %151 = vector.load %arg2[%c8, %c0_38] : memref<24x128xf32, #tpu.memory_space<vmem>>, vector<1x32xf32>
    %c9 = arith.constant 9 : index
    %c0_39 = arith.constant 0 : index
    %152 = vector.load %arg2[%c9, %c0_39] : memref<24x128xf32, #tpu.memory_space<vmem>>, vector<1x32xf32>
    %cst_40 = arith.constant dense<0.000000e+00> : vector<32xf32>
    %153 = vector.multi_reduction <add>, %150, %cst_40 [1] : vector<32x32xf32> to vector<32xf32>
    %154 = vector.shape_cast %153 : vector<32xf32> to vector<32x1xf32>
    %cst_41 = arith.constant 3.200000e+01 : f32
    %155 = vector.broadcast %cst_41 : f32 to vector<32x1xf32>
    %156 = arith.divf %154, %155 : vector<32x1xf32>
    %157 = vector.broadcast %156 : vector<32x1xf32> to vector<32x32xf32>
    %158 = arith.subf %150, %157 : vector<32x32xf32>
    %159 = arith.mulf %158, %158 : vector<32x32xf32>
    %cst_42 = arith.constant dense<0.000000e+00> : vector<32xf32>
    %160 = vector.multi_reduction <add>, %159, %cst_42 [1] : vector<32x32xf32> to vector<32xf32>
    %161 = vector.shape_cast %160 : vector<32xf32> to vector<32x1xf32>
    %cst_43 = arith.constant 3.200000e+01 : f32
    %162 = vector.broadcast %cst_43 : f32 to vector<32x1xf32>
    %163 = arith.divf %161, %162 : vector<32x1xf32>
    %164 = vector.broadcast %156 : vector<32x1xf32> to vector<32x32xf32>
    %165 = arith.subf %150, %164 : vector<32x32xf32>
    %cst_44 = arith.constant 9.99999974E-6 : f32
    %166 = vector.broadcast %cst_44 : f32 to vector<32x1xf32>
    %167 = arith.addf %163, %166 : vector<32x1xf32>
    %168 = math.rsqrt %167 : vector<32x1xf32>
    %169 = vector.broadcast %168 : vector<32x1xf32> to vector<32x32xf32>
    %170 = arith.mulf %165, %169 : vector<32x32xf32>
    %171 = vector.broadcast %151 : vector<1x32xf32> to vector<32x32xf32>
    %172 = arith.mulf %170, %171 : vector<32x32xf32>
    %173 = vector.broadcast %152 : vector<1x32xf32> to vector<32x32xf32>
    %174 = arith.addf %172, %173 : vector<32x32xf32>
    %c240 = arith.constant 240 : index
    %c0_45 = arith.constant 0 : index
    %175 = vector.load %arg1[%c240, %c0_45] : memref<496x128xbf16, #tpu.memory_space<vmem>>, vector<32x96xbf16>
    %176 = arith.truncf %174 : vector<32x32xf32> to vector<32x32xbf16>
    %cst_46 = arith.constant dense<0.000000e+00> : vector<32x96xf32>
    %177 = tpu.matmul %176, %175, %cst_46 {dimension_numbers = #tpu.dot_dimension_numbers<[1], [0], [0], [1], [0, 0, 1, 1], [], []>} : vector<32x32xbf16>, vector<32x96xbf16>, vector<32x96xf32> -> vector<32x96xf32>
    %c10 = arith.constant 10 : index
    %c0_47 = arith.constant 0 : index
    %178 = vector.load %arg2[%c10, %c0_47] : memref<24x128xf32, #tpu.memory_space<vmem>>, vector<1x96xf32>
    %179 = vector.broadcast %178 : vector<1x96xf32> to vector<32x96xf32>
    %180 = arith.addf %177, %179 : vector<32x96xf32>
    %181 = vector.extract_strided_slice %180 {offsets = [0, 0], sizes = [32, 8], strides = [1, 1]} : vector<32x96xf32> to vector<32x8xf32>
    %182 = vector.extract_strided_slice %180 {offsets = [0, 8], sizes = [32, 8], strides = [1, 1]} : vector<32x96xf32> to vector<32x8xf32>
    %183 = vector.extract_strided_slice %180 {offsets = [0, 16], sizes = [32, 8], strides = [1, 1]} : vector<32x96xf32> to vector<32x8xf32>
    %184 = vector.extract_strided_slice %180 {offsets = [0, 24], sizes = [32, 8], strides = [1, 1]} : vector<32x96xf32> to vector<32x8xf32>
    %185 = vector.shape_cast %181 : vector<32x8xf32> to vector<1x32x8xf32>
    %186 = vector.shape_cast %182 : vector<32x8xf32> to vector<1x32x8xf32>
    %187 = vector.shape_cast %183 : vector<32x8xf32> to vector<1x32x8xf32>
    %188 = vector.shape_cast %184 : vector<32x8xf32> to vector<1x32x8xf32>
    %189 = tpu.concatenate %185, %186, %187, %188 in 0 : vector<1x32x8xf32>, vector<1x32x8xf32>, vector<1x32x8xf32>, vector<1x32x8xf32> -> vector<4x32x8xf32>
    %190 = vector.extract_strided_slice %180 {offsets = [0, 32], sizes = [32, 8], strides = [1, 1]} : vector<32x96xf32> to vector<32x8xf32>
    %191 = vector.extract_strided_slice %180 {offsets = [0, 40], sizes = [32, 8], strides = [1, 1]} : vector<32x96xf32> to vector<32x8xf32>
    %192 = vector.extract_strided_slice %180 {offsets = [0, 48], sizes = [32, 8], strides = [1, 1]} : vector<32x96xf32> to vector<32x8xf32>
    %193 = vector.extract_strided_slice %180 {offsets = [0, 56], sizes = [32, 8], strides = [1, 1]} : vector<32x96xf32> to vector<32x8xf32>
    %194 = vector.shape_cast %190 : vector<32x8xf32> to vector<1x32x8xf32>
    %195 = vector.shape_cast %191 : vector<32x8xf32> to vector<1x32x8xf32>
    %196 = vector.shape_cast %192 : vector<32x8xf32> to vector<1x32x8xf32>
    %197 = vector.shape_cast %193 : vector<32x8xf32> to vector<1x32x8xf32>
    %198 = tpu.concatenate %194, %195, %196, %197 in 0 : vector<1x32x8xf32>, vector<1x32x8xf32>, vector<1x32x8xf32>, vector<1x32x8xf32> -> vector<4x32x8xf32>
    %199 = vector.extract_strided_slice %180 {offsets = [0, 64], sizes = [32, 8], strides = [1, 1]} : vector<32x96xf32> to vector<32x8xf32>
    %200 = vector.extract_strided_slice %180 {offsets = [0, 72], sizes = [32, 8], strides = [1, 1]} : vector<32x96xf32> to vector<32x8xf32>
    %201 = vector.extract_strided_slice %180 {offsets = [0, 80], sizes = [32, 8], strides = [1, 1]} : vector<32x96xf32> to vector<32x8xf32>
    %202 = vector.extract_strided_slice %180 {offsets = [0, 88], sizes = [32, 8], strides = [1, 1]} : vector<32x96xf32> to vector<32x8xf32>
    %203 = vector.shape_cast %199 : vector<32x8xf32> to vector<1x32x8xf32>
    %204 = vector.shape_cast %200 : vector<32x8xf32> to vector<1x32x8xf32>
    %205 = vector.shape_cast %201 : vector<32x8xf32> to vector<1x32x8xf32>
    %206 = vector.shape_cast %202 : vector<32x8xf32> to vector<1x32x8xf32>
    %207 = tpu.concatenate %203, %204, %205, %206 in 0 : vector<1x32x8xf32>, vector<1x32x8xf32>, vector<1x32x8xf32>, vector<1x32x8xf32> -> vector<4x32x8xf32>
    %208 = arith.truncf %189 : vector<4x32x8xf32> to vector<4x32x8xbf16>
    %209 = arith.truncf %198 : vector<4x32x8xf32> to vector<4x32x8xbf16>
    "tpu.trace_start"() <{level = 10 : i32, message = "hqd,hkd->hqk"}> : () -> ()
    %cst_48 = arith.constant dense<0.000000e+00> : vector<4x32x32xf32>
    %210 = tpu.matmul %208, %209, %cst_48 {dimension_numbers = #tpu.dot_dimension_numbers<[2], [2], [1], [1], [0, 0, 0, 1, 1, 1], [0], [0]>} : vector<4x32x8xbf16>, vector<4x32x8xbf16>, vector<4x32x32xf32> -> vector<4x32x32xf32>
    "tpu.trace_stop"() : () -> ()
    %211 = vector.shape_cast %5 : vector<32x32xf32> to vector<1x32x32xf32>
    %212 = vector.broadcast %211 : vector<1x32x32xf32> to vector<4x32x32xf32>
    %213 = arith.addf %210, %212 : vector<4x32x32xf32>
    %cst_49 = arith.constant dense<0xFF800000> : vector<4x32xf32>
    %214 = vector.multi_reduction <maximumf>, %213, %cst_49 [2] : vector<4x32x32xf32> to vector<4x32xf32>
    %215 = vector.shape_cast %214 : vector<4x32xf32> to vector<4x32x1xf32>
    %216 = vector.broadcast %215 : vector<4x32x1xf32> to vector<4x32x32xf32>
    %217 = arith.subf %213, %216 : vector<4x32x32xf32>
    %218 = math.exp %217 : vector<4x32x32xf32>
    %cst_50 = arith.constant dense<0.000000e+00> : vector<4x32xf32>
    %219 = vector.multi_reduction <add>, %218, %cst_50 [2] : vector<4x32x32xf32> to vector<4x32xf32>
    %220 = vector.shape_cast %219 : vector<4x32xf32> to vector<4x32x1xf32>
    %221 = tpu.reciprocal %220 {approx = true} : vector<4x32x1xf32> -> vector<4x32x1xf32>
    %222 = vector.broadcast %221 : vector<4x32x1xf32> to vector<4x32x32xf32>
    %223 = arith.mulf %218, %222 : vector<4x32x32xf32>
    %224 = arith.truncf %223 : vector<4x32x32xf32> to vector<4x32x32xbf16>
    %225 = arith.truncf %207 : vector<4x32x8xf32> to vector<4x32x8xbf16>
    "tpu.trace_start"() <{level = 10 : i32, message = "hqk,hkd->hqd"}> : () -> ()
    %cst_51 = arith.constant dense<0.000000e+00> : vector<4x32x8xf32>
    %226 = tpu.matmul %224, %225, %cst_51 {dimension_numbers = #tpu.dot_dimension_numbers<[2], [1], [1], [2], [0, 0, 0, 1, 1, 2], [0], [0]>} : vector<4x32x32xbf16>, vector<4x32x8xbf16>, vector<4x32x8xf32> -> vector<4x32x8xf32>
    "tpu.trace_stop"() : () -> ()
    %227 = vector.extract_strided_slice %226 {offsets = [0, 0, 0], sizes = [1, 32, 8], strides = [1, 1, 1]} : vector<4x32x8xf32> to vector<1x32x8xf32>
    %228 = vector.shape_cast %227 : vector<1x32x8xf32> to vector<32x8xf32>
    %229 = vector.extract_strided_slice %226 {offsets = [1, 0, 0], sizes = [1, 32, 8], strides = [1, 1, 1]} : vector<4x32x8xf32> to vector<1x32x8xf32>
    %230 = vector.shape_cast %229 : vector<1x32x8xf32> to vector<32x8xf32>
    %231 = vector.extract_strided_slice %226 {offsets = [2, 0, 0], sizes = [1, 32, 8], strides = [1, 1, 1]} : vector<4x32x8xf32> to vector<1x32x8xf32>
    %232 = vector.shape_cast %231 : vector<1x32x8xf32> to vector<32x8xf32>
    %233 = vector.extract_strided_slice %226 {offsets = [3, 0, 0], sizes = [1, 32, 8], strides = [1, 1, 1]} : vector<4x32x8xf32> to vector<1x32x8xf32>
    %234 = vector.shape_cast %233 : vector<1x32x8xf32> to vector<32x8xf32>
    %235 = tpu.concatenate %228, %230, %232, %234 in 1 : vector<32x8xf32>, vector<32x8xf32>, vector<32x8xf32>, vector<32x8xf32> -> vector<32x32xf32>
    %c272 = arith.constant 272 : index
    %c0_52 = arith.constant 0 : index
    %236 = vector.load %arg1[%c272, %c0_52] : memref<496x128xbf16, #tpu.memory_space<vmem>>, vector<32x32xbf16>
    %237 = arith.truncf %235 : vector<32x32xf32> to vector<32x32xbf16>
    %cst_53 = arith.constant dense<0.000000e+00> : vector<32x32xf32>
    %238 = tpu.matmul %237, %236, %cst_53 {dimension_numbers = #tpu.dot_dimension_numbers<[1], [0], [0], [1], [0, 0, 1, 1], [], []>} : vector<32x32xbf16>, vector<32x32xbf16>, vector<32x32xf32> -> vector<32x32xf32>
    %c11 = arith.constant 11 : index
    %c0_54 = arith.constant 0 : index
    %239 = vector.load %arg2[%c11, %c0_54] : memref<24x128xf32, #tpu.memory_space<vmem>>, vector<1x32xf32>
    %240 = vector.broadcast %239 : vector<1x32xf32> to vector<32x32xf32>
    %241 = arith.addf %238, %240 : vector<32x32xf32>
    %242 = arith.addf %174, %241 : vector<32x32xf32>
    %c14 = arith.constant 14 : index
    %c0_55 = arith.constant 0 : index
    %243 = vector.load %arg2[%c14, %c0_55] : memref<24x128xf32, #tpu.memory_space<vmem>>, vector<1x32xf32>
    %c15 = arith.constant 15 : index
    %c0_56 = arith.constant 0 : index
    %244 = vector.load %arg2[%c15, %c0_56] : memref<24x128xf32, #tpu.memory_space<vmem>>, vector<1x32xf32>
    %cst_57 = arith.constant dense<0.000000e+00> : vector<32xf32>
    %245 = vector.multi_reduction <add>, %242, %cst_57 [1] : vector<32x32xf32> to vector<32xf32>
    %246 = vector.shape_cast %245 : vector<32xf32> to vector<32x1xf32>
    %cst_58 = arith.constant 3.200000e+01 : f32
    %247 = vector.broadcast %cst_58 : f32 to vector<32x1xf32>
    %248 = arith.divf %246, %247 : vector<32x1xf32>
    %249 = vector.broadcast %248 : vector<32x1xf32> to vector<32x32xf32>
    %250 = arith.subf %242, %249 : vector<32x32xf32>
    %251 = arith.mulf %250, %250 : vector<32x32xf32>
    %cst_59 = arith.constant dense<0.000000e+00> : vector<32xf32>
    %252 = vector.multi_reduction <add>, %251, %cst_59 [1] : vector<32x32xf32> to vector<32xf32>
    %253 = vector.shape_cast %252 : vector<32xf32> to vector<32x1xf32>
    %cst_60 = arith.constant 3.200000e+01 : f32
    %254 = vector.broadcast %cst_60 : f32 to vector<32x1xf32>
    %255 = arith.divf %253, %254 : vector<32x1xf32>
    %256 = vector.broadcast %248 : vector<32x1xf32> to vector<32x32xf32>
    %257 = arith.subf %242, %256 : vector<32x32xf32>
    %cst_61 = arith.constant 9.99999974E-6 : f32
    %258 = vector.broadcast %cst_61 : f32 to vector<32x1xf32>
    %259 = arith.addf %255, %258 : vector<32x1xf32>
    %260 = math.rsqrt %259 : vector<32x1xf32>
    %261 = vector.broadcast %260 : vector<32x1xf32> to vector<32x32xf32>
    %262 = arith.mulf %257, %261 : vector<32x32xf32>
    %263 = vector.broadcast %243 : vector<1x32xf32> to vector<32x32xf32>
    %264 = arith.mulf %262, %263 : vector<32x32xf32>
    %265 = vector.broadcast %244 : vector<1x32xf32> to vector<32x32xf32>
    %266 = arith.addf %264, %265 : vector<32x32xf32>
    %c304 = arith.constant 304 : index
    %c0_62 = arith.constant 0 : index
    %267 = vector.load %arg1[%c304, %c0_62] : memref<496x128xbf16, #tpu.memory_space<vmem>>, vector<32x64xbf16>
    %268 = arith.truncf %266 : vector<32x32xf32> to vector<32x32xbf16>
    %cst_63 = arith.constant dense<0.000000e+00> : vector<32x64xf32>
    %269 = tpu.matmul %268, %267, %cst_63 {dimension_numbers = #tpu.dot_dimension_numbers<[1], [0], [0], [1], [0, 0, 1, 1], [], []>} : vector<32x32xbf16>, vector<32x64xbf16>, vector<32x64xf32> -> vector<32x64xf32>
    %c12 = arith.constant 12 : index
    %c0_64 = arith.constant 0 : index
    %270 = vector.load %arg2[%c12, %c0_64] : memref<24x128xf32, #tpu.memory_space<vmem>>, vector<1x64xf32>
    %271 = vector.broadcast %270 : vector<1x64xf32> to vector<32x64xf32>
    %272 = arith.addf %269, %271 : vector<32x64xf32>
    %273 = arith.mulf %272, %272 : vector<32x64xf32>
    %274 = arith.mulf %272, %273 : vector<32x64xf32>
    %cst_65 = arith.constant 4.471500e-02 : f32
    %275 = vector.broadcast %cst_65 : f32 to vector<32x64xf32>
    %276 = arith.mulf %275, %274 : vector<32x64xf32>
    %277 = arith.addf %272, %276 : vector<32x64xf32>
    %cst_66 = arith.constant 0.797884583 : f32
    %278 = vector.broadcast %cst_66 : f32 to vector<32x64xf32>
    %279 = arith.mulf %278, %277 : vector<32x64xf32>
    %280 = math.tanh %279 : vector<32x64xf32>
    %cst_67 = arith.constant 1.000000e+00 : f32
    %281 = vector.broadcast %cst_67 : f32 to vector<32x64xf32>
    %282 = arith.addf %281, %280 : vector<32x64xf32>
    %cst_68 = arith.constant 5.000000e-01 : f32
    %283 = vector.broadcast %cst_68 : f32 to vector<32x64xf32>
    %284 = arith.mulf %283, %282 : vector<32x64xf32>
    %285 = arith.mulf %272, %284 : vector<32x64xf32>
    %c336 = arith.constant 336 : index
    %c0_69 = arith.constant 0 : index
    %286 = vector.load %arg1[%c336, %c0_69] : memref<496x128xbf16, #tpu.memory_space<vmem>>, vector<64x32xbf16>
    %287 = arith.truncf %285 : vector<32x64xf32> to vector<32x64xbf16>
    %cst_70 = arith.constant dense<0.000000e+00> : vector<32x32xf32>
    %288 = tpu.matmul %287, %286, %cst_70 {dimension_numbers = #tpu.dot_dimension_numbers<[1], [0], [0], [1], [0, 0, 1, 1], [], []>} : vector<32x64xbf16>, vector<64x32xbf16>, vector<32x32xf32> -> vector<32x32xf32>
    %c13 = arith.constant 13 : index
    %c0_71 = arith.constant 0 : index
    %289 = vector.load %arg2[%c13, %c0_71] : memref<24x128xf32, #tpu.memory_space<vmem>>, vector<1x32xf32>
    %290 = vector.broadcast %289 : vector<1x32xf32> to vector<32x32xf32>
    %291 = arith.addf %288, %290 : vector<32x32xf32>
    %292 = arith.addf %266, %291 : vector<32x32xf32>
    %c16_72 = arith.constant 16 : index
    %c0_73 = arith.constant 0 : index
    %293 = vector.load %arg2[%c16_72, %c0_73] : memref<24x128xf32, #tpu.memory_space<vmem>>, vector<1x32xf32>
    %c17 = arith.constant 17 : index
    %c0_74 = arith.constant 0 : index
    %294 = vector.load %arg2[%c17, %c0_74] : memref<24x128xf32, #tpu.memory_space<vmem>>, vector<1x32xf32>
    %cst_75 = arith.constant dense<0.000000e+00> : vector<32xf32>
    %295 = vector.multi_reduction <add>, %292, %cst_75 [1] : vector<32x32xf32> to vector<32xf32>
    %296 = vector.shape_cast %295 : vector<32xf32> to vector<32x1xf32>
    %cst_76 = arith.constant 3.200000e+01 : f32
    %297 = vector.broadcast %cst_76 : f32 to vector<32x1xf32>
    %298 = arith.divf %296, %297 : vector<32x1xf32>
    %299 = vector.broadcast %298 : vector<32x1xf32> to vector<32x32xf32>
    %300 = arith.subf %292, %299 : vector<32x32xf32>
    %301 = arith.mulf %300, %300 : vector<32x32xf32>
    %cst_77 = arith.constant dense<0.000000e+00> : vector<32xf32>
    %302 = vector.multi_reduction <add>, %301, %cst_77 [1] : vector<32x32xf32> to vector<32xf32>
    %303 = vector.shape_cast %302 : vector<32xf32> to vector<32x1xf32>
    %cst_78 = arith.constant 3.200000e+01 : f32
    %304 = vector.broadcast %cst_78 : f32 to vector<32x1xf32>
    %305 = arith.divf %303, %304 : vector<32x1xf32>
    %306 = vector.broadcast %298 : vector<32x1xf32> to vector<32x32xf32>
    %307 = arith.subf %292, %306 : vector<32x32xf32>
    %cst_79 = arith.constant 9.99999974E-6 : f32
    %308 = vector.broadcast %cst_79 : f32 to vector<32x1xf32>
    %309 = arith.addf %305, %308 : vector<32x1xf32>
    %310 = math.rsqrt %309 : vector<32x1xf32>
    %311 = vector.broadcast %310 : vector<32x1xf32> to vector<32x32xf32>
    %312 = arith.mulf %307, %311 : vector<32x32xf32>
    %313 = vector.broadcast %293 : vector<1x32xf32> to vector<32x32xf32>
    %314 = arith.mulf %312, %313 : vector<32x32xf32>
    %315 = vector.broadcast %294 : vector<1x32xf32> to vector<32x32xf32>
    %316 = arith.addf %314, %315 : vector<32x32xf32>
    %c400 = arith.constant 400 : index
    %c0_80 = arith.constant 0 : index
    %317 = vector.load %arg1[%c400, %c0_80] : memref<496x128xbf16, #tpu.memory_space<vmem>>, vector<32x32xbf16>
    %318 = arith.truncf %316 : vector<32x32xf32> to vector<32x32xbf16>
    %cst_81 = arith.constant dense<0.000000e+00> : vector<32x32xf32>
    %319 = tpu.matmul %318, %317, %cst_81 {dimension_numbers = #tpu.dot_dimension_numbers<[1], [0], [0], [1], [0, 0, 1, 1], [], []>} : vector<32x32xbf16>, vector<32x32xbf16>, vector<32x32xf32> -> vector<32x32xf32>
    %c18 = arith.constant 18 : index
    %c0_82 = arith.constant 0 : index
    %320 = vector.load %arg2[%c18, %c0_82] : memref<24x128xf32, #tpu.memory_space<vmem>>, vector<1x32xf32>
    %321 = vector.broadcast %320 : vector<1x32xf32> to vector<32x32xf32>
    %322 = arith.addf %319, %321 : vector<32x32xf32>
    %323 = arith.mulf %322, %322 : vector<32x32xf32>
    %324 = arith.mulf %322, %323 : vector<32x32xf32>
    %cst_83 = arith.constant 4.471500e-02 : f32
    %325 = vector.broadcast %cst_83 : f32 to vector<32x32xf32>
    %326 = arith.mulf %325, %324 : vector<32x32xf32>
    %327 = arith.addf %322, %326 : vector<32x32xf32>
    %cst_84 = arith.constant 0.797884583 : f32
    %328 = vector.broadcast %cst_84 : f32 to vector<32x32xf32>
    %329 = arith.mulf %328, %327 : vector<32x32xf32>
    %330 = math.tanh %329 : vector<32x32xf32>
    %cst_85 = arith.constant 1.000000e+00 : f32
    %331 = vector.broadcast %cst_85 : f32 to vector<32x32xf32>
    %332 = arith.addf %331, %330 : vector<32x32xf32>
    %cst_86 = arith.constant 5.000000e-01 : f32
    %333 = vector.broadcast %cst_86 : f32 to vector<32x32xf32>
    %334 = arith.mulf %333, %332 : vector<32x32xf32>
    %335 = arith.mulf %322, %334 : vector<32x32xf32>
    %c432 = arith.constant 432 : index
    %c0_87 = arith.constant 0 : index
    %336 = vector.load %arg1[%c432, %c0_87] : memref<496x128xbf16, #tpu.memory_space<vmem>>, vector<32x32xbf16>
    %337 = arith.truncf %335 : vector<32x32xf32> to vector<32x32xbf16>
    %cst_88 = arith.constant dense<0.000000e+00> : vector<32x32xf32>
    %338 = tpu.matmul %337, %336, %cst_88 {dimension_numbers = #tpu.dot_dimension_numbers<[1], [0], [0], [1], [0, 0, 1, 1], [], []>} : vector<32x32xbf16>, vector<32x32xbf16>, vector<32x32xf32> -> vector<32x32xf32>
    %c19 = arith.constant 19 : index
    %c0_89 = arith.constant 0 : index
    %339 = vector.load %arg2[%c19, %c0_89] : memref<24x128xf32, #tpu.memory_space<vmem>>, vector<1x32xf32>
    %340 = vector.broadcast %339 : vector<1x32xf32> to vector<32x32xf32>
    %341 = arith.addf %338, %340 : vector<32x32xf32>
    %342 = arith.mulf %341, %341 : vector<32x32xf32>
    %343 = arith.mulf %341, %342 : vector<32x32xf32>
    %cst_90 = arith.constant 4.471500e-02 : f32
    %344 = vector.broadcast %cst_90 : f32 to vector<32x32xf32>
    %345 = arith.mulf %344, %343 : vector<32x32xf32>
    %346 = arith.addf %341, %345 : vector<32x32xf32>
    %cst_91 = arith.constant 0.797884583 : f32
    %347 = vector.broadcast %cst_91 : f32 to vector<32x32xf32>
    %348 = arith.mulf %347, %346 : vector<32x32xf32>
    %349 = math.tanh %348 : vector<32x32xf32>
    %cst_92 = arith.constant 1.000000e+00 : f32
    %350 = vector.broadcast %cst_92 : f32 to vector<32x32xf32>
    %351 = arith.addf %350, %349 : vector<32x32xf32>
    %cst_93 = arith.constant 5.000000e-01 : f32
    %352 = vector.broadcast %cst_93 : f32 to vector<32x32xf32>
    %353 = arith.mulf %352, %351 : vector<32x32xf32>
    %354 = arith.mulf %341, %353 : vector<32x32xf32>
    %c464 = arith.constant 464 : index
    %c0_94 = arith.constant 0 : index
    %355 = vector.load %arg1[%c464, %c0_94] : memref<496x128xbf16, #tpu.memory_space<vmem>>, vector<32x128xbf16>
    %356 = arith.truncf %354 : vector<32x32xf32> to vector<32x32xbf16>
    %cst_95 = arith.constant dense<0.000000e+00> : vector<32x128xf32>
    %357 = tpu.matmul %356, %355, %cst_95 {dimension_numbers = #tpu.dot_dimension_numbers<[1], [0], [0], [1], [0, 0, 1, 1], [], []>} : vector<32x32xbf16>, vector<32x128xbf16>, vector<32x128xf32> -> vector<32x128xf32>
    %c20 = arith.constant 20 : index
    %c0_96 = arith.constant 0 : index
    %358 = vector.load %arg2[%c20, %c0_96] : memref<24x128xf32, #tpu.memory_space<vmem>>, vector<1x128xf32>
    %359 = vector.broadcast %358 : vector<1x128xf32> to vector<32x128xf32>
    %360 = arith.addf %357, %359 : vector<32x128xf32>
    %c0_97 = arith.constant 0 : index
    %c0_98 = arith.constant 0 : index
    %361 = vector.load %arg3[%c0_97, %c0_98] : memref<32x128xf32, #tpu.memory_space<vmem>>, vector<32x128xf32>
    tpu.vector_store %arg3[%c0_97, %c0_98], %360 {strides = array<i32>} : memref<32x128xf32, #tpu.memory_space<vmem>>, vector<32x128xf32>,
    return
  }
}

</mosaic_0001>

<llo_original>
// kernel: transformer_predictor_forward.1
$region0: #{transformer_predictor_forward.1}
  #allocation0 [shape = 'u32[]', space=smem, size = 0x4, offset = 0x4, fixed_abs, tag = 'smem constant byte address 0x4 - core index']
  #allocation1 [shape = 'u32[144,128]{1,0:T(1,128)}', space=vmem, size = 0x12000, scoped, tag = 'internal scratch']
  %s0 = inlined_call_operand.vmem [shape: f32[32,128], index: 0, kind: input, shape index: {}]
  %s1 = inlined_call_operand.vmem [shape: bf16[496,128], index: 1, kind: input, shape index: {}]
  %s2 = inlined_call_operand.vmem [shape: f32[24,128], index: 2, kind: input, shape index: {}]
  %s3 = inlined_call_operand.vmem [shape: f32[32,128], index: 3, kind: output, shape index: {}]
  %s4 = sld [smem:[#allocation0]]
  $region22: #{transformer_predictor_forward.1} parent=0
    _
  %s6 = ssub.s32 1, %s4
  %s7 = scalar_select 0, %s6, %s4
  // Predicated region
  $region2: #{transformer_predictor_forward.1} parent=0 // pred_check
    _
  $region3: #{transformer_predictor_forward.1} parent=0 // pred_check_branch
    %9 = sbr.rel (0) target = $region5
  $region4: #{transformer_predictor_forward.1} parent=0 // pred_region
    _
  $region5: #{transformer_predictor_forward.1} parent=0 // pred_fallthru
    _
  // Predicated region
  $region6: #{transformer_predictor_forward.1} parent=0 // pred_check
    _
  $region7: #{transformer_predictor_forward.1} parent=0 // pred_check_branch
    %11 = sbr.rel (0) target = $region9
  $region8: #{transformer_predictor_forward.1} parent=0 // pred_region
    _
  $region9: #{transformer_predictor_forward.1} parent=0 // pred_fallthru
    _
  // Predicated region
  $region10: #{transformer_predictor_forward.1} parent=0 // pred_check
    _
  $region11: #{transformer_predictor_forward.1} parent=0 // pred_check_branch
    %13 = sbr.rel (0) target = $region13
  $region12: #{transformer_predictor_forward.1} parent=0 // pred_region
    _
  $region13: #{transformer_predictor_forward.1} parent=0 // pred_fallthru
    _
  %v15 = vld [vmem:[%s0] sm:$0xff]
  %v16 = vld [vmem:[%s0 + $0x8] sm:$0xff]
  %v17 = vld [vmem:[%s0 + $0x10] sm:$0xff]
  %v18 = vld [vmem:[%s0 + $0x18] sm:$0xff]
  %v19 = vld [vmem:[%s1] sm:$0xf]
  %v20 = vld [vmem:[%s1 + $0x4] sm:$0xf]
  %v21 = vpack.c.bf16 %v16, %v15
  %v22 = vpack.c.bf16 %v18, %v17
  %v23 = vld [vmem:[%s1 + $0x8] sm:$0xf]
  %v24 = vld [vmem:[%s1 + $0xc] sm:$0xf]
  %v25 = vld [vmem:[%s1 + $0x10] sm:$0xf]
  %v26 = vld [vmem:[%s1 + $0x14] sm:$0xf]
  %v27 = vld [vmem:[%s2] sm:$0x1]
  %v28 = vlaneseq
  %v29 = vshrl.u32 %v28, 7
  %v30 = vsub.s32 0, %v29
  %v31 = vrot.slane %v27, %v30
  %34 = vrot.lane.b32.xlu0 %v21, 112
  %v35 = vpop.permute.xlu0 %34
  %36 = vrot.lane.b32.xlu0 %v22, 112
  %v37 = vpop.permute.xlu0 %36
  %v42 = vunpack.c.l.b16 %v23
  %v43 = vunpack.c.l.b16 %v24
  %v44 = vunpack.c.l.b16 %v25
  %v45 = vunpack.c.l.b16 %v26
  %v46 = vpack.c.b16 %v43, %v42
  %v47 = vpack.c.b16 %v45, %v44
  %vm50 = vcmask 261120
  %v52 = vsel %vm50, %v35, 0
  %v55 = vsel %vm50, %v37, 0
  %57 = vmatprep.subr.bf16.mxu0 0
  %58 = vmatpush1.bf16.msra.mxu0 0
  %59 = vmatprep.subr.bf16.mxu0 0
  %60 = vmatpush1.bf16.msra.mxu0 0
  %61 = vmatprep.subr.bf16.mxu0 0
  %62 = vmatpush1.bf16.msra.mxu0 0
  %63 = vmatprep.subr.bf16.mxu0 0
  %64 = vmatpush1.bf16.msra.mxu0 0
  %65 = vmatprep.subr.bf16.mxu0 0
  %66 = vmatpush1.bf16.msra.mxu0 0
  %67 = vmatprep.subr.bf16.mxu0 0
  %68 = vmatpush1.bf16.msra.mxu0 0
  %69 = vmatprep.subr.bf16.mxu0 0
  %70 = vmatpush1.bf16.msra.mxu0 %v47
  %71 = vmatprep.subr.bf16.mxu0 0
  %72 = vmatpush1.bf16.msra.mxu0 %v46
  %73 = vmatprep.subr.bf16.mxu0 0
  %74 = vmatpush2.bf16.msra.mxu0 0
  %75 = vmatprep.subr.bf16.mxu0 0
  %76 = vmatpush2.bf16.msra.mxu0 0
  %77 = vmatprep.subr.bf16.mxu0 0
  %78 = vmatpush2.bf16.msra.mxu0 0
  %79 = vmatprep.subr.bf16.mxu0 0
  %80 = vmatpush2.bf16.msra.mxu0 0
  %81 = vmatprep.subr.bf16.mxu0 0
  %82 = vmatpush2.bf16.msra.mxu0 0
  %83 = vmatprep.subr.bf16.mxu0 0
  %84 = vmatpush2.bf16.msra.mxu0 0
  %85 = vmatprep.subr.bf16.mxu0 0
  %86 = vmatpush2.bf16.msra.mxu0 0
  %87 = vmatprep.subr.bf16.mxu0 0
  %88 = vmatpush2.bf16.msra.mxu0 0
  %89 = vmatprep.mubr.bf16.mxu0 0
  %90 = vmatmul.mubr.bf16.gmra.mxu0 %v52
  %v91 = vpop.f32.mrf.mxu0
  %v92 = vadd.f32 %v31, %v91
  %v93 = vpop.f32.mrf.mxu0
  %v94 = vpop.f32.mrf.mxu0
  %v95 = vadd.f32 %v31, %v94
  %v96 = vpop.f32.mrf.mxu0
  %97 = vmatprep.mubr.bf16.mxu0 0
  %98 = vmatmul.mubr.bf16.gmra.mxu0 %v55
  %v99 = vpop.f32.mrf.mxu0
  %v100 = vadd.f32 %v31, %v99
  %v101 = vpop.f32.mrf.mxu0
  %v102 = vpop.f32.mrf.mxu0
  %v103 = vadd.f32 %v31, %v102
  %v104 = vpop.f32.mrf.mxu0
  %105 = vdwg.mxu0
  %v106 = vxor.u32 %v92, 2147483648
  %v107 = vxor.u32 %v95, 2147483648
  %v108 = vxor.u32 %v100, 2147483648
  %v109 = vxor.u32 %v103, 2147483648
  %v110 = vmul.f32 %v106, 1.442695
  %v111 = vpow.pop %v110
  %v112 = vmul.f32 %v107, 1.442695
  %v113 = vpow.pop %v112
  %v114 = vmul.f32 %v108, 1.442695
  %v115 = vpow.pop %v114
  %v116 = vmul.f32 %v109, 1.442695
  %v117 = vpow.pop %v116
  %v118 = vadd.f32 %v111, 1.0
  %v119 = vadd.f32 %v113, 1.0
  %v120 = vadd.f32 %v115, 1.0
  %v121 = vadd.f32 %v117, 1.0
  %v122 = vrcp.pop %v118
  %v123 = vmul.f32 1.0, %v122
  %v124 = vrcp.pop %v119
  %v125 = vmul.f32 1.0, %v124
  %v126 = vrcp.pop %v120
  %v127 = vmul.f32 1.0, %v126
  %v128 = vrcp.pop %v121
  %v129 = vmul.f32 1.0, %v128
  %v130 = vmul.f32 %v92, %v123
  %v131 = vmul.f32 %v95, %v125
  %v132 = vmul.f32 %v100, %v127
  %v133 = vmul.f32 %v103, %v129
  %v134 = vld [vmem:[%s1 + $0x18] sm:$0xf]
  %v135 = vld [vmem:[%s1 + $0x1c] sm:$0xf]
  %v136 = vld [vmem:[%s1 + $0x20] sm:$0xf]
  %v137 = vld [vmem:[%s1 + $0x24] sm:$0xf]
  %v138 = vpack.c.bf16 %v131, %v130
  %v139 = vpack.c.bf16 %v133, %v132
  %v140 = vld [vmem:[%s2 + $0x1] sm:$0x1]
  %v141 = vlaneseq
  %v142 = vshrl.u32 %v141, 7
  %v143 = vsub.s32 0, %v142
  %v144 = vrot.slane %v140, %v143
  %v149 = vunpack.c.l.b16 %v134
  %v150 = vunpack.c.l.b16 %v135
  %v151 = vunpack.c.l.b16 %v136
  %v152 = vunpack.c.l.b16 %v137
  %v153 = vpack.c.b16 %v150, %v149
  %v154 = vpack.c.b16 %v152, %v151
  %v158 = vsel %vm50, %v138, 0
  %v161 = vsel %vm50, %v139, 0
  %163 = vmatprep.subr.bf16.mxu0 0
  %164 = vmatpush1.bf16.msra.mxu0 0
  %165 = vmatprep.subr.bf16.mxu0 0
  %166 = vmatpush1.bf16.msra.mxu0 0
  %167 = vmatprep.subr.bf16.mxu0 0
  %168 = vmatpush1.bf16.msra.mxu0 0
  %169 = vmatprep.subr.bf16.mxu0 0
  %170 = vmatpush1.bf16.msra.mxu0 0
  %171 = vmatprep.subr.bf16.mxu0 0
  %172 = vmatpush1.bf16.msra.mxu0 0
  %173 = vmatprep.subr.bf16.mxu0 0
  %174 = vmatpush1.bf16.msra.mxu0 0
  %175 = vmatprep.subr.bf16.mxu0 0
  %176 = vmatpush1.bf16.msra.mxu0 %v154
  %177 = vmatprep.subr.bf16.mxu0 0
  %178 = vmatpush1.bf16.msra.mxu0 %v153
  %179 = vmatprep.subr.bf16.mxu0 0
  %180 = vmatpush2.bf16.msra.mxu0 0
  %181 = vmatprep.subr.bf16.mxu0 0
  %182 = vmatpush2.bf16.msra.mxu0 0
  %183 = vmatprep.subr.bf16.mxu0 0
  %184 = vmatpush2.bf16.msra.mxu0 0
  %185 = vmatprep.subr.bf16.mxu0 0
  %186 = vmatpush2.bf16.msra.mxu0 0
  %187 = vmatprep.subr.bf16.mxu0 0
  %188 = vmatpush2.bf16.msra.mxu0 0
  %189 = vmatprep.subr.bf16.mxu0 0
  %190 = vmatpush2.bf16.msra.mxu0 0
  %191 = vmatprep.subr.bf16.mxu0 0
  %192 = vmatpush2.bf16.msra.mxu0 0
  %193 = vmatprep.subr.bf16.mxu0 0
  %194 = vmatpush2.bf16.msra.mxu0 0
  %195 = vmatprep.mubr.bf16.mxu0 0
  %196 = vmatmul.mubr.bf16.gmra.mxu0 %v158
  %v197 = vpop.f32.mrf.mxu0
  %v198 = vadd.f32 %v144, %v197
  %v199 = vpop.f32.mrf.mxu0
  %v200 = vpop.f32.mrf.mxu0
  %v201 = vadd.f32 %v144, %v200
  %v202 = vpop.f32.mrf.mxu0
  %203 = vmatprep.mubr.bf16.mxu0 0
  %204 = vmatmul.mubr.bf16.gmra.mxu0 %v161
  %v205 = vpop.f32.mrf.mxu0
  %v206 = vadd.f32 %v144, %v205
  %v207 = vpop.f32.mrf.mxu0
  %v208 = vpop.f32.mrf.mxu0
  %v209 = vadd.f32 %v144, %v208
  %v210 = vpop.f32.mrf.mxu0
  %211 = vdwg.mxu0
  %v214 = vunpack.c.l.b16 %v19
  %v215 = vunpack.c.l.b16 %v20
  %v216 = vpack.c.b16 %v215, %v214
  %222 = vrot.lane.b32.xlu0 %v15, 112
  %v223 = vpop.permute.xlu0 %222
  %224 = vrot.lane.b32.xlu0 %v16, 112
  %v225 = vpop.permute.xlu0 %224
  %226 = vrot.lane.b32.xlu0 %v17, 112
  %v227 = vpop.permute.xlu0 %226
  %228 = vrot.lane.b32.xlu0 %v18, 112
  %v229 = vpop.permute.xlu0 %228
  %vm234 = vcmask 130048
  %v236 = vsel %vm234, %v21, 0
  %v239 = vsel %vm234, %v22, 0
  %241 = vmatprep.subr.bf16.mxu0 0
  %242 = vmatpush1.bf16.msra.mxu0 0
  %243 = vmatprep.subr.bf16.mxu0 0
  %244 = vmatpush1.bf16.msra.mxu0 0
  %245 = vmatprep.subr.bf16.mxu0 0
  %246 = vmatpush1.bf16.msra.mxu0 0
  %247 = vmatprep.subr.bf16.mxu0 0
  %248 = vmatpush1.bf16.msra.mxu0 0
  %249 = vmatprep.subr.bf16.mxu0 0
  %250 = vmatpush1.bf16.msra.mxu0 0
  %251 = vmatprep.subr.bf16.mxu0 0
  %252 = vmatpush1.bf16.msra.mxu0 0
  %253 = vmatprep.subr.bf16.mxu0 0
  %254 = vmatpush1.bf16.msra.mxu0 0
  %255 = vmatprep.subr.bf16.mxu0 0
  %256 = vmatpush1.bf16.msra.mxu0 %v216
  %257 = vmatprep.subr.bf16.mxu0 0
  %258 = vmatpush2.bf16.msra.mxu0 0
  %259 = vmatprep.subr.bf16.mxu0 0
  %260 = vmatpush2.bf16.msra.mxu0 0
  %261 = vmatprep.subr.bf16.mxu0 0
  %262 = vmatpush2.bf16.msra.mxu0 0
  %263 = vmatprep.subr.bf16.mxu0 0
  %264 = vmatpush2.bf16.msra.mxu0 0
  %265 = vmatprep.subr.bf16.mxu0 0
  %266 = vmatpush2.bf16.msra.mxu0 0
  %267 = vmatprep.subr.bf16.mxu0 0
  %268 = vmatpush2.bf16.msra.mxu0 0
  %269 = vmatprep.subr.bf16.mxu0 0
  %270 = vmatpush2.bf16.msra.mxu0 0
  %271 = vmatprep.subr.bf16.mxu0 0
  %272 = vmatpush2.bf16.msra.mxu0 0
  %273 = vmatprep.mubr.bf16.mxu0 0
  %274 = vmatmul.mubr.bf16.gmra.mxu0 %v236
  %v275 = vpop.f32.mrf.mxu0
  %v276 = vadd.f32 %v223, %v275
  %v277 = vpop.f32.mrf.mxu0
  %v278 = vpop.f32.mrf.mxu0
  %v279 = vadd.f32 %v225, %v278
  %v280 = vpop.f32.mrf.mxu0
  %281 = vmatprep.mubr.bf16.mxu0 0
  %282 = vmatmul.mubr.bf16.gmra.mxu0 %v239
  %v283 = vpop.f32.mrf.mxu0
  %v284 = vadd.f32 %v227, %v283
  %v285 = vpop.f32.mrf.mxu0
  %v286 = vpop.f32.mrf.mxu0
  %v287 = vadd.f32 %v229, %v286
  %v288 = vpop.f32.mrf.mxu0
  %289 = vdwg.mxu0
  %v290 = vsub.f32 %v198, %v276
  %v291 = vsub.f32 %v201, %v279
  %v292 = vsub.f32 %v206, %v284
  %v293 = vsub.f32 %v209, %v287
  %294 = vset.pattern.permute.xlu0 80
  %295 = vperm.xlu0 %294, %v15
  %v296 = vpop.permute.xlu0 %295
  %298 = vset.pattern.permute.xlu0 80
  %299 = vperm.xlu0 %298, %v16
  %v300 = vpop.permute.xlu0 %299
  %302 = vset.pattern.permute.xlu0 80
  %303 = vperm.xlu0 %302, %v17
  %v304 = vpop.permute.xlu0 %303
  %306 = vset.pattern.permute.xlu0 80
  %307 = vperm.xlu0 %306, %v18
  %v308 = vpop.permute.xlu0 %307
  %v310 = vmul.f32 %v296, %v290
  %v311 = vmul.f32 %v300, %v291
  %v312 = vmul.f32 %v304, %v292
  %v313 = vmul.f32 %v308, %v293
  %v314 = vadd.f32 %v276, %v310
  %v315 = vadd.f32 %v279, %v311
  %v316 = vadd.f32 %v284, %v312
  %v317 = vadd.f32 %v287, %v313
  %318 = vrot.lane.b32.xlu0 %v15, 80
  %v319 = vpop.permute.xlu0 %318
  %320 = vrot.lane.b32.xlu0 %v16, 80
  %v321 = vpop.permute.xlu0 %320
  %322 = vrot.lane.b32.xlu0 %v17, 80
  %v323 = vpop.permute.xlu0 %322
  %324 = vrot.lane.b32.xlu0 %v18, 80
  %v325 = vpop.permute.xlu0 %324
  %v330 = vadd.f32 %v314, %v319
  %v331 = vadd.f32 %v315, %v321
  %v332 = vadd.f32 %v316, %v323
  %v333 = vadd.f32 %v317, %v325
  %v334 = vld [vmem:[%s1 + $0x28] sm:$0xf]
  %v335 = vld [vmem:[%s1 + $0x2c] sm:$0xf]
  %v336 = vld [vmem:[%s1 + $0x30] sm:$0xf]
  %v337 = vld [vmem:[%s1 + $0x34] sm:$0xf]
  %v338 = vpack.c.bf16 %v331, %v330
  %v339 = vpack.c.bf16 %v333, %v332
  %v340 = vld [vmem:[%s2 + $0x2] sm:$0x1]
  %v341 = vlaneseq
  %v342 = vshrl.u32 %v341, 7
  %v343 = vsub.s32 0, %v342
  %v344 = vrot.slane %v340, %v343
  %v349 = vunpack.c.l.b16 %v334
  %v350 = vunpack.c.l.b16 %v335
  %v351 = vunpack.c.l.b16 %v336
  %v352 = vunpack.c.l.b16 %v337
  %v353 = vpack.c.b16 %v350, %v349
  %v354 = vpack.c.b16 %v352, %v351
  %v358 = vsel %vm50, %v338, 0
  %v361 = vsel %vm50, %v339, 0
  %363 = vmatprep.subr.bf16.mxu0 0
  %364 = vmatpush1.bf16.msra.mxu0 0
  %365 = vmatprep.subr.bf16.mxu0 0
  %366 = vmatpush1.bf16.msra.mxu0 0
  %367 = vmatprep.subr.bf16.mxu0 0
  %368 = vmatpush1.bf16.msra.mxu0 0
  %369 = vmatprep.subr.bf16.mxu0 0
  %370 = vmatpush1.bf16.msra.mxu0 0
  %371 = vmatprep.subr.bf16.mxu0 0
  %372 = vmatpush1.bf16.msra.mxu0 0
  %373 = vmatprep.subr.bf16.mxu0 0
  %374 = vmatpush1.bf16.msra.mxu0 0
  %375 = vmatprep.subr.bf16.mxu0 0
  %376 = vmatpush1.bf16.msra.mxu0 %v354
  %377 = vmatprep.subr.bf16.mxu0 0
  %378 = vmatpush1.bf16.msra.mxu0 %v353
  %379 = vmatprep.subr.bf16.mxu0 0
  %380 = vmatpush2.bf16.msra.mxu0 0
  %381 = vmatprep.subr.bf16.mxu0 0
  %382 = vmatpush2.bf16.msra.mxu0 0
  %383 = vmatprep.subr.bf16.mxu0 0
  %384 = vmatpush2.bf16.msra.mxu0 0
  %385 = vmatprep.subr.bf16.mxu0 0
  %386 = vmatpush2.bf16.msra.mxu0 0
  %387 = vmatprep.subr.bf16.mxu0 0
  %388 = vmatpush2.bf16.msra.mxu0 0
  %389 = vmatprep.subr.bf16.mxu0 0
  %390 = vmatpush2.bf16.msra.mxu0 0
  %391 = vmatprep.subr.bf16.mxu0 0
  %392 = vmatpush2.bf16.msra.mxu0 0
  %393 = vmatprep.subr.bf16.mxu0 0
  %394 = vmatpush2.bf16.msra.mxu0 0
  %395 = vmatprep.mubr.bf16.mxu0 0
  %396 = vmatmul.mubr.bf16.gmra.mxu0 %v358
  %v397 = vpop.f32.mrf.mxu0
  %v398 = vadd.f32 %v344, %v397
  %v399 = vpop.f32.mrf.mxu0
  %v400 = vpop.f32.mrf.mxu0
  %v401 = vadd.f32 %v344, %v400
  %v402 = vpop.f32.mrf.mxu0
  %403 = vmatprep.mubr.bf16.mxu0 0
  %404 = vmatmul.mubr.bf16.gmra.mxu0 %v361
  %v405 = vpop.f32.mrf.mxu0
  %v406 = vadd.f32 %v344, %v405
  %v407 = vpop.f32.mrf.mxu0
  %v408 = vpop.f32.mrf.mxu0
  %v409 = vadd.f32 %v344, %v408
  %v410 = vpop.f32.mrf.mxu0
  %411 = vdwg.mxu0
  %416 = vrot.lane.b32.xlu0 %v398, 120
  %v417 = vpop.permute.xlu0 %416
  %418 = vrot.lane.b32.xlu0 %v401, 120
  %v419 = vpop.permute.xlu0 %418
  %420 = vrot.lane.b32.xlu0 %v406, 120
  %v421 = vpop.permute.xlu0 %420
  %422 = vrot.lane.b32.xlu0 %v409, 120
  %v423 = vpop.permute.xlu0 %422
  %428 = vrot.lane.b32.xlu0 %v398, 112
  %v429 = vpop.permute.xlu0 %428
  %430 = vrot.lane.b32.xlu0 %v401, 112
  %v431 = vpop.permute.xlu0 %430
  %432 = vrot.lane.b32.xlu0 %v406, 112
  %v433 = vpop.permute.xlu0 %432
  %434 = vrot.lane.b32.xlu0 %v409, 112
  %v435 = vpop.permute.xlu0 %434
  %440 = vrot.lane.b32.xlu0 %v398, 104
  %v441 = vpop.permute.xlu0 %440
  %442 = vrot.lane.b32.xlu0 %v401, 104
  %v443 = vpop.permute.xlu0 %442
  %444 = vrot.lane.b32.xlu0 %v406, 104
  %v445 = vpop.permute.xlu0 %444
  %446 = vrot.lane.b32.xlu0 %v409, 104
  %v447 = vpop.permute.xlu0 %446
  %v452 = vpack.c.bf16 %v401, %v398
  %v453 = vpack.c.bf16 %v409, %v406
  %v454 = vpack.c.bf16 %v419, %v417
  %v455 = vpack.c.bf16 %v423, %v421
  %v456 = vpack.c.bf16 %v431, %v429
  %v457 = vpack.c.bf16 %v435, %v433
  %v458 = vpack.c.bf16 %v443, %v441
  %v459 = vpack.c.bf16 %v447, %v445
  %462 = vrot.lane.b32.xlu0 %v452, 96
  %v463 = vpop.permute.xlu0 %462
  %464 = vrot.lane.b32.xlu0 %v453, 96
  %v465 = vpop.permute.xlu0 %464
  %466 = vrot.lane.b32.xlu0 %v15, 32
  %v467 = vpop.permute.xlu0 %466
  %468 = vrot.lane.b32.xlu0 %v16, 32
  %v469 = vpop.permute.xlu0 %468
  %470 = vrot.lane.b32.xlu0 %v17, 32
  %v471 = vpop.permute.xlu0 %470
  %472 = vrot.lane.b32.xlu0 %v18, 32
  %v473 = vpop.permute.xlu0 %472
  %vm478 = vcmask 64512
  %v480 = vsel %vm478, %v452, 0
  %v483 = vsel %vm478, %v453, 0
  %v486 = vsel %vm478, %v463, 0
  %v489 = vsel %vm478, %v465, 0
  %491 = vmatprep.subr.bf16.mxu0 0
  %492 = vmatpush1.bf16.xpose.msra.mxu0 0
  %493 = vmatprep.subr.bf16.mxu0 0
  %494 = vmatpush1.bf16.xpose.msra.mxu0 0
  %495 = vmatprep.subr.bf16.mxu0 0
  %496 = vmatpush1.bf16.xpose.msra.mxu0 0
  %497 = vmatprep.subr.bf16.mxu0 0
  %498 = vmatpush1.bf16.xpose.msra.mxu0 0
  %499 = vmatprep.subr.bf16.mxu0 0
  %500 = vmatpush1.bf16.xpose.msra.mxu0 0
  %501 = vmatprep.subr.bf16.mxu0 0
  %502 = vmatpush1.bf16.xpose.msra.mxu0 0
  %503 = vmatprep.subr.bf16.mxu0 0
  %504 = vmatpush1.bf16.xpose.msra.mxu0 %v489
  %505 = vmatprep.subr.bf16.mxu0 0
  %506 = vmatpush1.bf16.xpose.msra.mxu0 %v486
  %507 = vmatprep.subr.bf16.mxu0 0
  %508 = vmatpush2.bf16.xpose.msra.mxu0 0
  %509 = vmatprep.subr.bf16.mxu0 0
  %510 = vmatpush2.bf16.xpose.msra.mxu0 0
  %511 = vmatprep.subr.bf16.mxu0 0
  %512 = vmatpush2.bf16.xpose.msra.mxu0 0
  %513 = vmatprep.subr.bf16.mxu0 0
  %514 = vmatpush2.bf16.xpose.msra.mxu0 0
  %515 = vmatprep.subr.bf16.mxu0 0
  %516 = vmatpush2.bf16.xpose.msra.mxu0 0
  %517 = vmatprep.subr.bf16.mxu0 0
  %518 = vmatpush2.bf16.xpose.msra.mxu0 0
  %519 = vmatprep.subr.bf16.mxu0 0
  %520 = vmatpush2.bf16.xpose.msra.mxu0 0
  %521 = vmatprep.subr.bf16.mxu0 0
  %522 = vmatpush2.bf16.xpose.msra.mxu0 0
  %523 = vmatprep.mubr.bf16.mxu0 0
  %524 = vmatmul.mubr.bf16.gmra.mxu0 %v480
  %v525 = vpop.f32.mrf.mxu0
  %v526 = vadd.f32 %v467, %v525
  %v527 = vpop.f32.mrf.mxu0
  %v528 = vpop.f32.mrf.mxu0
  %v529 = vadd.f32 %v469, %v528
  %v530 = vpop.f32.mrf.mxu0
  %531 = vmatprep.mubr.bf16.mxu0 0
  %532 = vmatmul.mubr.bf16.gmra.mxu0 %v483
  %v533 = vpop.f32.mrf.mxu0
  %v534 = vadd.f32 %v471, %v533
  %v535 = vpop.f32.mrf.mxu0
  %v536 = vpop.f32.mrf.mxu0
  %v537 = vadd.f32 %v473, %v536
  %v538 = vpop.f32.mrf.mxu0
  %539 = vdwg.mxu0
  %542 = vrot.lane.b32.xlu0 %v454, 96
  %v543 = vpop.permute.xlu0 %542
  %544 = vrot.lane.b32.xlu0 %v455, 96
  %v545 = vpop.permute.xlu0 %544
  %v547 = vsel %vm478, %v454, 0
  %v550 = vsel %vm478, %v455, 0
  %v553 = vsel %vm478, %v543, 0
  %v556 = vsel %vm478, %v545, 0
  %558 = vmatprep.subr.bf16.mxu0 0
  %559 = vmatpush1.bf16.xpose.msra.mxu0 0
  %560 = vmatprep.subr.bf16.mxu0 0
  %561 = vmatpush1.bf16.xpose.msra.mxu0 0
  %562 = vmatprep.subr.bf16.mxu0 0
  %563 = vmatpush1.bf16.xpose.msra.mxu0 0
  %564 = vmatprep.subr.bf16.mxu0 0
  %565 = vmatpush1.bf16.xpose.msra.mxu0 0
  %566 = vmatprep.subr.bf16.mxu0 0
  %567 = vmatpush1.bf16.xpose.msra.mxu0 0
  %568 = vmatprep.subr.bf16.mxu0 0
  %569 = vmatpush1.bf16.xpose.msra.mxu0 0
  %570 = vmatprep.subr.bf16.mxu0 0
  %571 = vmatpush1.bf16.xpose.msra.mxu0 %v556
  %572 = vmatprep.subr.bf16.mxu0 0
  %573 = vmatpush1.bf16.xpose.msra.mxu0 %v553
  %574 = vmatprep.subr.bf16.mxu0 0
  %575 = vmatpush2.bf16.xpose.msra.mxu0 0
  %576 = vmatprep.subr.bf16.mxu0 0
  %577 = vmatpush2.bf16.xpose.msra.mxu0 0
  %578 = vmatprep.subr.bf16.mxu0 0
  %579 = vmatpush2.bf16.xpose.msra.mxu0 0
  %580 = vmatprep.subr.bf16.mxu0 0
  %581 = vmatpush2.bf16.xpose.msra.mxu0 0
  %582 = vmatprep.subr.bf16.mxu0 0
  %583 = vmatpush2.bf16.xpose.msra.mxu0 0
  %584 = vmatprep.subr.bf16.mxu0 0
  %585 = vmatpush2.bf16.xpose.msra.mxu0 0
  %586 = vmatprep.subr.bf16.mxu0 0
  %587 = vmatpush2.bf16.xpose.msra.mxu0 0
  %588 = vmatprep.subr.bf16.mxu0 0
  %589 = vmatpush2.bf16.xpose.msra.mxu0 0
  %590 = vmatprep.mubr.bf16.mxu0 0
  %591 = vmatmul.mubr.bf16.gmra.mxu0 %v547
  %v592 = vpop.f32.mrf.mxu0
  %v593 = vadd.f32 %v467, %v592
  %v594 = vpop.f32.mrf.mxu0
  %v595 = vpop.f32.mrf.mxu0
  %v596 = vadd.f32 %v469, %v595
  %v597 = vpop.f32.mrf.mxu0
  %598 = vmatprep.mubr.bf16.mxu0 0
  %599 = vmatmul.mubr.bf16.gmra.mxu0 %v550
  %v600 = vpop.f32.mrf.mxu0
  %v601 = vadd.f32 %v471, %v600
  %v602 = vpop.f32.mrf.mxu0
  %v603 = vpop.f32.mrf.mxu0
  %v604 = vadd.f32 %v473, %v603
  %v605 = vpop.f32.mrf.mxu0
  %606 = vdwg.mxu0
  %609 = vrot.lane.b32.xlu0 %v456, 96
  %v610 = vpop.permute.xlu0 %609
  %611 = vrot.lane.b32.xlu0 %v457, 96
  %v612 = vpop.permute.xlu0 %611
  %v614 = vsel %vm478, %v456, 0
  %v617 = vsel %vm478, %v457, 0
  %v620 = vsel %vm478, %v610, 0
  %v623 = vsel %vm478, %v612, 0
  %625 = vmatprep.subr.bf16.mxu0 0
  %626 = vmatpush1.bf16.xpose.msra.mxu0 0
  %627 = vmatprep.subr.bf16.mxu0 0
  %628 = vmatpush1.bf16.xpose.msra.mxu0 0
  %629 = vmatprep.subr.bf16.mxu0 0
  %630 = vmatpush1.bf16.xpose.msra.mxu0 0
  %631 = vmatprep.subr.bf16.mxu0 0
  %632 = vmatpush1.bf16.xpose.msra.mxu0 0
  %633 = vmatprep.subr.bf16.mxu0 0
  %634 = vmatpush1.bf16.xpose.msra.mxu0 0
  %635 = vmatprep.subr.bf16.mxu0 0
  %636 = vmatpush1.bf16.xpose.msra.mxu0 0
  %637 = vmatprep.subr.bf16.mxu0 0
  %638 = vmatpush1.bf16.xpose.msra.mxu0 %v623
  %639 = vmatprep.subr.bf16.mxu0 0
  %640 = vmatpush1.bf16.xpose.msra.mxu0 %v620
  %641 = vmatprep.subr.bf16.mxu0 0
  %642 = vmatpush2.bf16.xpose.msra.mxu0 0
  %643 = vmatprep.subr.bf16.mxu0 0
  %644 = vmatpush2.bf16.xpose.msra.mxu0 0
  %645 = vmatprep.subr.bf16.mxu0 0
  %646 = vmatpush2.bf16.xpose.msra.mxu0 0
  %647 = vmatprep.subr.bf16.mxu0 0
  %648 = vmatpush2.bf16.xpose.msra.mxu0 0
  %649 = vmatprep.subr.bf16.mxu0 0
  %650 = vmatpush2.bf16.xpose.msra.mxu0 0
  %651 = vmatprep.subr.bf16.mxu0 0
  %652 = vmatpush2.bf16.xpose.msra.mxu0 0
  %653 = vmatprep.subr.bf16.mxu0 0
  %654 = vmatpush2.bf16.xpose.msra.mxu0 0
  %655 = vmatprep.subr.bf16.mxu0 0
  %656 = vmatpush2.bf16.xpose.msra.mxu0 0
  %657 = vmatprep.mubr.bf16.mxu0 0
  %658 = vmatmul.mubr.bf16.gmra.mxu0 %v614
  %v659 = vpop.f32.mrf.mxu0
  %v660 = vadd.f32 %v467, %v659
  %v661 = vpop.f32.mrf.mxu0
  %v662 = vpop.f32.mrf.mxu0
  %v663 = vadd.f32 %v469, %v662
  %v664 = vpop.f32.mrf.mxu0
  %665 = vmatprep.mubr.bf16.mxu0 0
  %666 = vmatmul.mubr.bf16.gmra.mxu0 %v617
  %v667 = vpop.f32.mrf.mxu0
  %v668 = vadd.f32 %v471, %v667
  %v669 = vpop.f32.mrf.mxu0
  %v670 = vpop.f32.mrf.mxu0
  %v671 = vadd.f32 %v473, %v670
  %v672 = vpop.f32.mrf.mxu0
  %673 = vdwg.mxu0
  %676 = vrot.lane.b32.xlu0 %v458, 96
  %v677 = vpop.permute.xlu0 %676
  %678 = vrot.lane.b32.xlu0 %v459, 96
  %v679 = vpop.permute.xlu0 %678
  %v681 = vsel %vm478, %v458, 0
  %v684 = vsel %vm478, %v459, 0
  %v687 = vsel %vm478, %v677, 0
  %v690 = vsel %vm478, %v679, 0
  %692 = vmatprep.subr.bf16.mxu0 0
  %693 = vmatpush1.bf16.xpose.msra.mxu0 0
  %694 = vmatprep.subr.bf16.mxu0 0
  %695 = vmatpush1.bf16.xpose.msra.mxu0 0
  %696 = vmatprep.subr.bf16.mxu0 0
  %697 = vmatpush1.bf16.xpose.msra.mxu0 0
  %698 = vmatprep.subr.bf16.mxu0 0
  %699 = vmatpush1.bf16.xpose.msra.mxu0 0
  %700 = vmatprep.subr.bf16.mxu0 0
  %701 = vmatpush1.bf16.xpose.msra.mxu0 0
  %702 = vmatprep.subr.bf16.mxu0 0
  %703 = vmatpush1.bf16.xpose.msra.mxu0 0
  %704 = vmatprep.subr.bf16.mxu0 0
  %705 = vmatpush1.bf16.xpose.msra.mxu0 %v690
  %706 = vmatprep.subr.bf16.mxu0 0
  %707 = vmatpush1.bf16.xpose.msra.mxu0 %v687
  %708 = vmatprep.subr.bf16.mxu0 0
  %709 = vmatpush2.bf16.xpose.msra.mxu0 0
  %710 = vmatprep.subr.bf16.mxu0 0
  %711 = vmatpush2.bf16.xpose.msra.mxu0 0
  %712 = vmatprep.subr.bf16.mxu0 0
  %713 = vmatpush2.bf16.xpose.msra.mxu0 0
  %714 = vmatprep.subr.bf16.mxu0 0
  %715 = vmatpush2.bf16.xpose.msra.mxu0 0
  %716 = vmatprep.subr.bf16.mxu0 0
  %717 = vmatpush2.bf16.xpose.msra.mxu0 0
  %718 = vmatprep.subr.bf16.mxu0 0
  %719 = vmatpush2.bf16.xpose.msra.mxu0 0
  %720 = vmatprep.subr.bf16.mxu0 0
  %721 = vmatpush2.bf16.xpose.msra.mxu0 0
  %722 = vmatprep.subr.bf16.mxu0 0
  %723 = vmatpush2.bf16.xpose.msra.mxu0 0
  %724 = vmatprep.mubr.bf16.mxu0 0
  %725 = vmatmul.mubr.bf16.gmra.mxu0 %v681
  %v726 = vpop.f32.mrf.mxu0
  %v727 = vadd.f32 %v467, %v726
  %v728 = vpop.f32.mrf.mxu0
  %v729 = vpop.f32.mrf.mxu0
  %v730 = vadd.f32 %v469, %v729
  %v731 = vpop.f32.mrf.mxu0
  %732 = vmatprep.mubr.bf16.mxu0 0
  %733 = vmatmul.mubr.bf16.gmra.mxu0 %v684
  %v734 = vpop.f32.mrf.mxu0
  %v735 = vadd.f32 %v471, %v734
  %v736 = vpop.f32.mrf.mxu0
  %v737 = vpop.f32.mrf.mxu0
  %v738 = vadd.f32 %v473, %v737
  %v739 = vpop.f32.mrf.mxu0
  %740 = vdwg.mxu0
  %v741 = vsel %vm50, %v526, -inf
  %742 = vmax.xlane.f32.xlu0 %v741
  %v743 = vpop.xlane.xlu0 %742
  %v744 = vsel %vm50, %v529, -inf
  %745 = vmax.xlane.f32.xlu0 %v744
  %v746 = vpop.xlane.xlu0 %745
  %v747 = vsel %vm50, %v534, -inf
  %748 = vmax.xlane.f32.xlu0 %v747
  %v749 = vpop.xlane.xlu0 %748
  %v750 = vsel %vm50, %v537, -inf
  %751 = vmax.xlane.f32.xlu0 %v750
  %v752 = vpop.xlane.xlu0 %751
  %v753 = vsel %vm50, %v593, -inf
  %754 = vmax.xlane.f32.xlu0 %v753
  %v755 = vpop.xlane.xlu0 %754
  %v756 = vsel %vm50, %v596, -inf
  %757 = vmax.xlane.f32.xlu0 %v756
  %v758 = vpop.xlane.xlu0 %757
  %v759 = vsel %vm50, %v601, -inf
  %760 = vmax.xlane.f32.xlu0 %v759
  %v761 = vpop.xlane.xlu0 %760
  %v762 = vsel %vm50, %v604, -inf
  %763 = vmax.xlane.f32.xlu0 %v762
  %v764 = vpop.xlane.xlu0 %763
  %v765 = vsel %vm50, %v660, -inf
  %766 = vmax.xlane.f32.xlu0 %v765
  %v767 = vpop.xlane.xlu0 %766
  %v768 = vsel %vm50, %v663, -inf
  %769 = vmax.xlane.f32.xlu0 %v768
  %v770 = vpop.xlane.xlu0 %769
  %v771 = vsel %vm50, %v668, -inf
  %772 = vmax.xlane.f32.xlu0 %v771
  %v773 = vpop.xlane.xlu0 %772
  %v774 = vsel %vm50, %v671, -inf
  %775 = vmax.xlane.f32.xlu0 %v774
  %v776 = vpop.xlane.xlu0 %775
  %v777 = vsel %vm50, %v727, -inf
  %778 = vmax.xlane.f32.xlu0 %v777
  %v779 = vpop.xlane.xlu0 %778
  %v780 = vsel %vm50, %v730, -inf
  %781 = vmax.xlane.f32.xlu0 %v780
  %v782 = vpop.xlane.xlu0 %781
  %v783 = vsel %vm50, %v735, -inf
  %784 = vmax.xlane.f32.xlu0 %v783
  %v785 = vpop.xlane.xlu0 %784
  %v786 = vsel %vm50, %v738, -inf
  %787 = vmax.xlane.f32.xlu0 %v786
  %v788 = vpop.xlane.xlu0 %787
  %v789 = vsub.f32 %v526, %v743
  %v790 = vsub.f32 %v529, %v746
  %v791 = vsub.f32 %v534, %v749
  %v792 = vsub.f32 %v537, %v752
  %v793 = vsub.f32 %v593, %v755
  %v794 = vsub.f32 %v596, %v758
  %v795 = vsub.f32 %v601, %v761
  %v796 = vsub.f32 %v604, %v764
  %v797 = vsub.f32 %v660, %v767
  %v798 = vsub.f32 %v663, %v770
  %v799 = vsub.f32 %v668, %v773
  %v800 = vsub.f32 %v671, %v776
  %v801 = vsub.f32 %v727, %v779
  %v802 = vsub.f32 %v730, %v782
  %v803 = vsub.f32 %v735, %v785
  %v804 = vsub.f32 %v738, %v788
  %v805 = vmul.f32 %v789, 1.442695
  %v806 = vpow.pop %v805
  %v807 = vmul.f32 %v790, 1.442695
  %v808 = vpow.pop %v807
  %v809 = vmul.f32 %v791, 1.442695
  %v810 = vpow.pop %v809
  %v811 = vmul.f32 %v792, 1.442695
  %v812 = vpow.pop %v811
  %v813 = vmul.f32 %v793, 1.442695
  %v814 = vpow.pop %v813
  %v815 = vmul.f32 %v794, 1.442695
  %v816 = vpow.pop %v815
  %v817 = vmul.f32 %v795, 1.442695
  %v818 = vpow.pop %v817
  %v819 = vmul.f32 %v796, 1.442695
  %v820 = vpow.pop %v819
  %v821 = vmul.f32 %v797, 1.442695
  %v822 = vpow.pop %v821
  %v823 = vmul.f32 %v798, 1.442695
  %v824 = vpow.pop %v823
  %v825 = vmul.f32 %v799, 1.442695
  %v826 = vpow.pop %v825
  %v827 = vmul.f32 %v800, 1.442695
  %v828 = vpow.pop %v827
  %v829 = vmul.f32 %v801, 1.442695
  %v830 = vpow.pop %v829
  %v831 = vmul.f32 %v802, 1.442695
  %v832 = vpow.pop %v831
  %v833 = vmul.f32 %v803, 1.442695
  %v834 = vpow.pop %v833
  %v835 = vmul.f32 %v804, 1.442695
  %v836 = vpow.pop %v835
  %v837 = vsel %vm50, %v806, 0.0
  %838 = vadd.xlane.f32.xlu0 %v837
  %v839 = vpop.xlane.xlu0 %838
  %v840 = vsel %vm50, %v808, 0.0
  %841 = vadd.xlane.f32.xlu0 %v840
  %v842 = vpop.xlane.xlu0 %841
  %v843 = vsel %vm50, %v810, 0.0
  %844 = vadd.xlane.f32.xlu0 %v843
  %v845 = vpop.xlane.xlu0 %844
  %v846 = vsel %vm50, %v812, 0.0
  %847 = vadd.xlane.f32.xlu0 %v846
  %v848 = vpop.xlane.xlu0 %847
  %v849 = vsel %vm50, %v814, 0.0
  %850 = vadd.xlane.f32.xlu0 %v849
  %v851 = vpop.xlane.xlu0 %850
  %v852 = vsel %vm50, %v816, 0.0
  %853 = vadd.xlane.f32.xlu0 %v852
  %v854 = vpop.xlane.xlu0 %853
  %v855 = vsel %vm50, %v818, 0.0
  %856 = vadd.xlane.f32.xlu0 %v855
  %v857 = vpop.xlane.xlu0 %856
  %v858 = vsel %vm50, %v820, 0.0
  %859 = vadd.xlane.f32.xlu0 %v858
  %v860 = vpop.xlane.xlu0 %859
  %v861 = vsel %vm50, %v822, 0.0
  %862 = vadd.xlane.f32.xlu0 %v861
  %v863 = vpop.xlane.xlu0 %862
  %v864 = vsel %vm50, %v824, 0.0
  %865 = vadd.xlane.f32.xlu0 %v864
  %v866 = vpop.xlane.xlu0 %865
  %v867 = vsel %vm50, %v826, 0.0
  %868 = vadd.xlane.f32.xlu0 %v867
  %v869 = vpop.xlane.xlu0 %868
  %v870 = vsel %vm50, %v828, 0.0
  %871 = vadd.xlane.f32.xlu0 %v870
  %v872 = vpop.xlane.xlu0 %871
  %v873 = vsel %vm50, %v830, 0.0
  %874 = vadd.xlane.f32.xlu0 %v873
  %v875 = vpop.xlane.xlu0 %874
  %v876 = vsel %vm50, %v832, 0.0
  %877 = vadd.xlane.f32.xlu0 %v876
  %v878 = vpop.xlane.xlu0 %877
  %v879 = vsel %vm50, %v834, 0.0
  %880 = vadd.xlane.f32.xlu0 %v879
  %v881 = vpop.xlane.xlu0 %880
  %v882 = vsel %vm50, %v836, 0.0
  %883 = vadd.xlane.f32.xlu0 %v882
  %v884 = vpop.xlane.xlu0 %883
  %v885 = vrcp.pop %v839
  %v886 = vrcp.pop %v842
  %v887 = vrcp.pop %v845
  %v888 = vrcp.pop %v848
  %v889 = vrcp.pop %v851
  %v890 = vrcp.pop %v854
  %v891 = vrcp.pop %v857
  %v892 = vrcp.pop %v860
  %v893 = vrcp.pop %v863
  %v894 = vrcp.pop %v866
  %v895 = vrcp.pop %v869
  %v896 = vrcp.pop %v872
  %v897 = vrcp.pop %v875
  %v898 = vrcp.pop %v878
  %v899 = vrcp.pop %v881
  %v900 = vrcp.pop %v884
  %v901 = vmul.f32 %v806, %v885
  %v902 = vmul.f32 %v808, %v886
  %v903 = vmul.f32 %v810, %v887
  %v904 = vmul.f32 %v812, %v888
  %v905 = vmul.f32 %v814, %v889
  %v906 = vmul.f32 %v816, %v890
  %v907 = vmul.f32 %v818, %v891
  %v908 = vmul.f32 %v820, %v892
  %v909 = vmul.f32 %v822, %v893
  %v910 = vmul.f32 %v824, %v894
  %v911 = vmul.f32 %v826, %v895
  %v912 = vmul.f32 %v828, %v896
  %v913 = vmul.f32 %v830, %v897
  %v914 = vmul.f32 %v832, %v898
  %v915 = vmul.f32 %v834, %v899
  %v916 = vmul.f32 %v836, %v900
  %v917 = vpack.c.bf16 %v902, %v901
  %v918 = vpack.c.bf16 %v904, %v903
  %v919 = vpack.c.bf16 %v906, %v905
  %v920 = vpack.c.bf16 %v908, %v907
  %v921 = vpack.c.bf16 %v910, %v909
  %v922 = vpack.c.bf16 %v912, %v911
  %v923 = vpack.c.bf16 %v914, %v913
  %v924 = vpack.c.bf16 %v916, %v915
  %925 = vrot.lane.b32.xlu0 %v452, 64
  %v926 = vpop.permute.xlu0 %925
  %927 = vrot.lane.b32.xlu0 %v453, 64
  %v928 = vpop.permute.xlu0 %927
  %v932 = vsel %vm50, %v917, 0
  %v935 = vsel %vm50, %v918, 0
  %937 = vmatprep.subr.bf16.mxu0 0
  %938 = vmatpush1.bf16.msra.mxu0 0
  %939 = vmatprep.subr.bf16.mxu0 0
  %940 = vmatpush1.bf16.msra.mxu0 0
  %941 = vmatprep.subr.bf16.mxu0 0
  %942 = vmatpush1.bf16.msra.mxu0 0
  %943 = vmatprep.subr.bf16.mxu0 0
  %944 = vmatpush1.bf16.msra.mxu0 0
  %945 = vmatprep.subr.bf16.mxu0 0
  %946 = vmatpush1.bf16.msra.mxu0 0
  %947 = vmatprep.subr.bf16.mxu0 0
  %948 = vmatpush1.bf16.msra.mxu0 0
  %949 = vmatprep.subr.bf16.mxu0 0
  %950 = vmatpush1.bf16.msra.mxu0 %v928
  %951 = vmatprep.subr.bf16.mxu0 0
  %952 = vmatpush1.bf16.msra.mxu0 %v926
  %953 = vmatprep.subr.bf16.mxu0 0
  %954 = vmatpush2.bf16.msra.mxu0 0
  %955 = vmatprep.subr.bf16.mxu0 0
  %956 = vmatpush2.bf16.msra.mxu0 0
  %957 = vmatprep.subr.bf16.mxu0 0
  %958 = vmatpush2.bf16.msra.mxu0 0
  %959 = vmatprep.subr.bf16.mxu0 0
  %960 = vmatpush2.bf16.msra.mxu0 0
  %961 = vmatprep.subr.bf16.mxu0 0
  %962 = vmatpush2.bf16.msra.mxu0 0
  %963 = vmatprep.subr.bf16.mxu0 0
  %964 = vmatpush2.bf16.msra.mxu0 0
  %965 = vmatprep.subr.bf16.mxu0 0
  %966 = vmatpush2.bf16.msra.mxu0 0
  %967 = vmatprep.subr.bf16.mxu0 0
  %968 = vmatpush2.bf16.msra.mxu0 0
  %969 = vmatprep.mubr.bf16.mxu0 0
  %970 = vmatmul.mubr.bf16.gmra.mxu0 %v932
  %v971 = vpop.f32.mrf.mxu0
  %v972 = vadd.f32 0.0, %v971
  %v973 = vpop.f32.mrf.mxu0
  %v974 = vpop.f32.mrf.mxu0
  %v975 = vadd.f32 0.0, %v974
  %v976 = vpop.f32.mrf.mxu0
  %977 = vmatprep.mubr.bf16.mxu0 0
  %978 = vmatmul.mubr.bf16.gmra.mxu0 %v935
  %v979 = vpop.f32.mrf.mxu0
  %v980 = vadd.f32 0.0, %v979
  %v981 = vpop.f32.mrf.mxu0
  %v982 = vpop.f32.mrf.mxu0
  %v983 = vadd.f32 0.0, %v982
  %v984 = vpop.f32.mrf.mxu0
  %985 = vdwg.mxu0
  %986 = vrot.lane.b32.xlu0 %v454, 64
  %v987 = vpop.permute.xlu0 %986
  %988 = vrot.lane.b32.xlu0 %v455, 64
  %v989 = vpop.permute.xlu0 %988
  %v993 = vsel %vm50, %v919, 0
  %v996 = vsel %vm50, %v920, 0
  %998 = vmatprep.subr.bf16.mxu0 0
  %999 = vmatpush1.bf16.msra.mxu0 0
  %1000 = vmatprep.subr.bf16.mxu0 0
  %1001 = vmatpush1.bf16.msra.mxu0 0
  %1002 = vmatprep.subr.bf16.mxu0 0
  %1003 = vmatpush1.bf16.msra.mxu0 0
  %1004 = vmatprep.subr.bf16.mxu0 0
  %1005 = vmatpush1.bf16.msra.mxu0 0
  %1006 = vmatprep.subr.bf16.mxu0 0
  %1007 = vmatpush1.bf16.msra.mxu0 0
  %1008 = vmatprep.subr.bf16.mxu0 0
  %1009 = vmatpush1.bf16.msra.mxu0 0
  %1010 = vmatprep.subr.bf16.mxu0 0
  %1011 = vmatpush1.bf16.msra.mxu0 %v989
  %1012 = vmatprep.subr.bf16.mxu0 0
  %1013 = vmatpush1.bf16.msra.mxu0 %v987
  %1014 = vmatprep.subr.bf16.mxu0 0
  %1015 = vmatpush2.bf16.msra.mxu0 0
  %1016 = vmatprep.subr.bf16.mxu0 0
  %1017 = vmatpush2.bf16.msra.mxu0 0
  %1018 = vmatprep.subr.bf16.mxu0 0
  %1019 = vmatpush2.bf16.msra.mxu0 0
  %1020 = vmatprep.subr.bf16.mxu0 0
  %1021 = vmatpush2.bf16.msra.mxu0 0
  %1022 = vmatprep.subr.bf16.mxu0 0
  %1023 = vmatpush2.bf16.msra.mxu0 0
  %1024 = vmatprep.subr.bf16.mxu0 0
  %1025 = vmatpush2.bf16.msra.mxu0 0
  %1026 = vmatprep.subr.bf16.mxu0 0
  %1027 = vmatpush2.bf16.msra.mxu0 0
  %1028 = vmatprep.subr.bf16.mxu0 0
  %1029 = vmatpush2.bf16.msra.mxu0 0
  %1030 = vmatprep.mubr.bf16.mxu0 0
  %1031 = vmatmul.mubr.bf16.gmra.mxu0 %v993
  %v1032 = vpop.f32.mrf.mxu0
  %v1033 = vadd.f32 0.0, %v1032
  %v1034 = vpop.f32.mrf.mxu0
  %v1035 = vpop.f32.mrf.mxu0
  %v1036 = vadd.f32 0.0, %v1035
  %v1037 = vpop.f32.mrf.mxu0
  %1038 = vmatprep.mubr.bf16.mxu0 0
  %1039 = vmatmul.mubr.bf16.gmra.mxu0 %v996
  %v1040 = vpop.f32.mrf.mxu0
  %v1041 = vadd.f32 0.0, %v1040
  %v1042 = vpop.f32.mrf.mxu0
  %v1043 = vpop.f32.mrf.mxu0
  %v1044 = vadd.f32 0.0, %v1043
  %v1045 = vpop.f32.mrf.mxu0
  %1046 = vdwg.mxu0
  %1047 = vrot.lane.b32.xlu0 %v456, 64
  %v1048 = vpop.permute.xlu0 %1047
  %1049 = vrot.lane.b32.xlu0 %v457, 64
  %v1050 = vpop.permute.xlu0 %1049
  %v1054 = vsel %vm50, %v921, 0
  %v1057 = vsel %vm50, %v922, 0
  %1059 = vmatprep.subr.bf16.mxu0 0
  %1060 = vmatpush1.bf16.msra.mxu0 0
  %1061 = vmatprep.subr.bf16.mxu0 0
  %1062 = vmatpush1.bf16.msra.mxu0 0
  %1063 = vmatprep.subr.bf16.mxu0 0
  %1064 = vmatpush1.bf16.msra.mxu0 0
  %1065 = vmatprep.subr.bf16.mxu0 0
  %1066 = vmatpush1.bf16.msra.mxu0 0
  %1067 = vmatprep.subr.bf16.mxu0 0
  %1068 = vmatpush1.bf16.msra.mxu0 0
  %1069 = vmatprep.subr.bf16.mxu0 0
  %1070 = vmatpush1.bf16.msra.mxu0 0
  %1071 = vmatprep.subr.bf16.mxu0 0
  %1072 = vmatpush1.bf16.msra.mxu0 %v1050
  %1073 = vmatprep.subr.bf16.mxu0 0
  %1074 = vmatpush1.bf16.msra.mxu0 %v1048
  %1075 = vmatprep.subr.bf16.mxu0 0
  %1076 = vmatpush2.bf16.msra.mxu0 0
  %1077 = vmatprep.subr.bf16.mxu0 0
  %1078 = vmatpush2.bf16.msra.mxu0 0
  %1079 = vmatprep.subr.bf16.mxu0 0
  %1080 = vmatpush2.bf16.msra.mxu0 0
  %1081 = vmatprep.subr.bf16.mxu0 0
  %1082 = vmatpush2.bf16.msra.mxu0 0
  %1083 = vmatprep.subr.bf16.mxu0 0
  %1084 = vmatpush2.bf16.msra.mxu0 0
  %1085 = vmatprep.subr.bf16.mxu0 0
  %1086 = vmatpush2.bf16.msra.mxu0 0
  %1087 = vmatprep.subr.bf16.mxu0 0
  %1088 = vmatpush2.bf16.msra.mxu0 0
  %1089 = vmatprep.subr.bf16.mxu0 0
  %1090 = vmatpush2.bf16.msra.mxu0 0
  %1091 = vmatprep.mubr.bf16.mxu0 0
  %1092 = vmatmul.mubr.bf16.gmra.mxu0 %v1054
  %v1093 = vpop.f32.mrf.mxu0
  %v1094 = vadd.f32 0.0, %v1093
  %v1095 = vpop.f32.mrf.mxu0
  %v1096 = vpop.f32.mrf.mxu0
  %v1097 = vadd.f32 0.0, %v1096
  %v1098 = vpop.f32.mrf.mxu0
  %1099 = vmatprep.mubr.bf16.mxu0 0
  %1100 = vmatmul.mubr.bf16.gmra.mxu0 %v1057
  %v1101 = vpop.f32.mrf.mxu0
  %v1102 = vadd.f32 0.0, %v1101
  %v1103 = vpop.f32.mrf.mxu0
  %v1104 = vpop.f32.mrf.mxu0
  %v1105 = vadd.f32 0.0, %v1104
  %v1106 = vpop.f32.mrf.mxu0
  %1107 = vdwg.mxu0
  %1108 = vrot.lane.b32.xlu0 %v458, 64
  %v1109 = vpop.permute.xlu0 %1108
  %1110 = vrot.lane.b32.xlu0 %v459, 64
  %v1111 = vpop.permute.xlu0 %1110
  %v1115 = vsel %vm50, %v923, 0
  %v1118 = vsel %vm50, %v924, 0
  %1120 = vmatprep.subr.bf16.mxu0 0
  %1121 = vmatpush1.bf16.msra.mxu0 0
  %1122 = vmatprep.subr.bf16.mxu0 0
  %1123 = vmatpush1.bf16.msra.mxu0 0
  %1124 = vmatprep.subr.bf16.mxu0 0
  %1125 = vmatpush1.bf16.msra.mxu0 0
  %1126 = vmatprep.subr.bf16.mxu0 0
  %1127 = vmatpush1.bf16.msra.mxu0 0
  %1128 = vmatprep.subr.bf16.mxu0 0
  %1129 = vmatpush1.bf16.msra.mxu0 0
  %1130 = vmatprep.subr.bf16.mxu0 0
  %1131 = vmatpush1.bf16.msra.mxu0 0
  %1132 = vmatprep.subr.bf16.mxu0 0
  %1133 = vmatpush1.bf16.msra.mxu0 %v1111
  %1134 = vmatprep.subr.bf16.mxu0 0
  %1135 = vmatpush1.bf16.msra.mxu0 %v1109
  %1136 = vmatprep.subr.bf16.mxu0 0
  %1137 = vmatpush2.bf16.msra.mxu0 0
  %1138 = vmatprep.subr.bf16.mxu0 0
  %1139 = vmatpush2.bf16.msra.mxu0 0
  %1140 = vmatprep.subr.bf16.mxu0 0
  %1141 = vmatpush2.bf16.msra.mxu0 0
  %1142 = vmatprep.subr.bf16.mxu0 0
  %1143 = vmatpush2.bf16.msra.mxu0 0
  %1144 = vmatprep.subr.bf16.mxu0 0
  %1145 = vmatpush2.bf16.msra.mxu0 0
  %1146 = vmatprep.subr.bf16.mxu0 0
  %1147 = vmatpush2.bf16.msra.mxu0 0
  %1148 = vmatprep.subr.bf16.mxu0 0
  %1149 = vmatpush2.bf16.msra.mxu0 0
  %1150 = vmatprep.subr.bf16.mxu0 0
  %1151 = vmatpush2.bf16.msra.mxu0 0
  %1152 = vmatprep.mubr.bf16.mxu0 0
  %1153 = vmatmul.mubr.bf16.gmra.mxu0 %v1115
  %v1154 = vpop.f32.mrf.mxu0
  %v1155 = vadd.f32 0.0, %v1154
  %v1156 = vpop.f32.mrf.mxu0
  %v1157 = vpop.f32.mrf.mxu0
  %v1158 = vadd.f32 0.0, %v1157
  %v1159 = vpop.f32.mrf.mxu0
  %1160 = vmatprep.mubr.bf16.mxu0 0
  %1161 = vmatmul.mubr.bf16.gmra.mxu0 %v1118
  %v1162 = vpop.f32.mrf.mxu0
  %v1163 = vadd.f32 0.0, %v1162
  %v1164 = vpop.f32.mrf.mxu0
  %v1165 = vpop.f32.mrf.mxu0
  %v1166 = vadd.f32 0.0, %v1165
  %v1167 = vpop.f32.mrf.mxu0
  %1168 = vdwg.mxu0
  %1173 = vrot.lane.b32.xlu0 %v1033, 8
  %v1174 = vpop.permute.xlu0 %1173
  %1175 = vrot.lane.b32.xlu0 %v1036, 8
  %v1176 = vpop.permute.xlu0 %1175
  %1177 = vrot.lane.b32.xlu0 %v1041, 8
  %v1178 = vpop.permute.xlu0 %1177
  %1179 = vrot.lane.b32.xlu0 %v1044, 8
  %v1180 = vpop.permute.xlu0 %1179
  %1189 = vrot.lane.b32.xlu0 %v1094, 16
  %v1190 = vpop.permute.xlu0 %1189
  %1191 = vrot.lane.b32.xlu0 %v1097, 16
  %v1192 = vpop.permute.xlu0 %1191
  %1193 = vrot.lane.b32.xlu0 %v1102, 16
  %v1194 = vpop.permute.xlu0 %1193
  %1195 = vrot.lane.b32.xlu0 %v1105, 16
  %v1196 = vpop.permute.xlu0 %1195
  %1205 = vrot.lane.b32.xlu0 %v1155, 24
  %v1206 = vpop.permute.xlu0 %1205
  %1207 = vrot.lane.b32.xlu0 %v1158, 24
  %v1208 = vpop.permute.xlu0 %1207
  %1209 = vrot.lane.b32.xlu0 %v1163, 24
  %v1210 = vpop.permute.xlu0 %1209
  %1211 = vrot.lane.b32.xlu0 %v1166, 24
  %v1212 = vpop.permute.xlu0 %1211
  %v1217 = vsel %vm478, %v972, %v1174
  %v1218 = vsel %vm478, %v975, %v1176
  %v1219 = vsel %vm478, %v980, %v1178
  %v1220 = vsel %vm478, %v983, %v1180
  %v1221 = vsel %vm234, %v1217, %v1190
  %v1222 = vsel %vm234, %v1218, %v1192
  %v1223 = vsel %vm234, %v1219, %v1194
  %v1224 = vsel %vm234, %v1220, %v1196
  %vm1225 = vcmask 195584
  %v1226 = vsel %vm1225, %v1221, %v1206
  %v1227 = vsel %vm1225, %v1222, %v1208
  %v1228 = vsel %vm1225, %v1223, %v1210
  %v1229 = vsel %vm1225, %v1224, %v1212
  %v1230 = vld [vmem:[%s1 + $0x38] sm:$0xf]
  %v1231 = vld [vmem:[%s1 + $0x3c] sm:$0xf]
  %v1232 = vld [vmem:[%s1 + $0x40] sm:$0xf]
  %v1233 = vld [vmem:[%s1 + $0x44] sm:$0xf]
  %v1234 = vpack.c.bf16 %v1227, %v1226
  %v1235 = vpack.c.bf16 %v1229, %v1228
  %v1236 = vld [vmem:[%s2 + $0x3] sm:$0x1]
  %v1237 = vlaneseq
  %v1238 = vshrl.u32 %v1237, 7
  %v1239 = vsub.s32 0, %v1238
  %v1240 = vrot.slane %v1236, %v1239
  %v1245 = vunpack.c.l.b16 %v1230
  %v1246 = vunpack.c.l.b16 %v1231
  %v1247 = vunpack.c.l.b16 %v1232
  %v1248 = vunpack.c.l.b16 %v1233
  %v1249 = vpack.c.b16 %v1246, %v1245
  %v1250 = vpack.c.b16 %v1248, %v1247
  %v1254 = vsel %vm50, %v1234, 0
  %v1257 = vsel %vm50, %v1235, 0
  %1259 = vmatprep.subr.bf16.mxu0 0
  %1260 = vmatpush1.bf16.msra.mxu0 0
  %1261 = vmatprep.subr.bf16.mxu0 0
  %1262 = vmatpush1.bf16.msra.mxu0 0
  %1263 = vmatprep.subr.bf16.mxu0 0
  %1264 = vmatpush1.bf16.msra.mxu0 0
  %1265 = vmatprep.subr.bf16.mxu0 0
  %1266 = vmatpush1.bf16.msra.mxu0 0
  %1267 = vmatprep.subr.bf16.mxu0 0
  %1268 = vmatpush1.bf16.msra.mxu0 0
  %1269 = vmatprep.subr.bf16.mxu0 0
  %1270 = vmatpush1.bf16.msra.mxu0 0
  %1271 = vmatprep.subr.bf16.mxu0 0
  %1272 = vmatpush1.bf16.msra.mxu0 %v1250
  %1273 = vmatprep.subr.bf16.mxu0 0
  %1274 = vmatpush1.bf16.msra.mxu0 %v1249
  %1275 = vmatprep.subr.bf16.mxu0 0
  %1276 = vmatpush2.bf16.msra.mxu0 0
  %1277 = vmatprep.subr.bf16.mxu0 0
  %1278 = vmatpush2.bf16.msra.mxu0 0
  %1279 = vmatprep.subr.bf16.mxu0 0
  %1280 = vmatpush2.bf16.msra.mxu0 0
  %1281 = vmatprep.subr.bf16.mxu0 0
  %1282 = vmatpush2.bf16.msra.mxu0 0
  %1283 = vmatprep.subr.bf16.mxu0 0
  %1284 = vmatpush2.bf16.msra.mxu0 0
  %1285 = vmatprep.subr.bf16.mxu0 0
  %1286 = vmatpush2.bf16.msra.mxu0 0
  %1287 = vmatprep.subr.bf16.mxu0 0
  %1288 = vmatpush2.bf16.msra.mxu0 0
  %1289 = vmatprep.subr.bf16.mxu0 0
  %1290 = vmatpush2.bf16.msra.mxu0 0
  %1291 = vmatprep.mubr.bf16.mxu0 0
  %1292 = vmatmul.mubr.bf16.gmra.mxu0 %v1254
  %v1293 = vpop.f32.mrf.mxu0
  %v1294 = vadd.f32 %v1240, %v1293
  %v1295 = vpop.f32.mrf.mxu0
  %v1296 = vpop.f32.mrf.mxu0
  %v1297 = vadd.f32 %v1240, %v1296
  %v1298 = vpop.f32.mrf.mxu0
  %1299 = vmatprep.mubr.bf16.mxu0 0
  %1300 = vmatmul.mubr.bf16.gmra.mxu0 %v1257
  %v1301 = vpop.f32.mrf.mxu0
  %v1302 = vadd.f32 %v1240, %v1301
  %v1303 = vpop.f32.mrf.mxu0
  %v1304 = vpop.f32.mrf.mxu0
  %v1305 = vadd.f32 %v1240, %v1304
  %v1306 = vpop.f32.mrf.mxu0
  %1307 = vdwg.mxu0
  %v1308 = vadd.f32 %v330, %v1294
  %v1309 = vadd.f32 %v331, %v1297
  %v1310 = vadd.f32 %v332, %v1302
  %v1311 = vadd.f32 %v333, %v1305
  %v1312 = vld [vmem:[%s2 + $0x6] sm:$0x1]
  %v1313 = vld [vmem:[%s2 + $0x7] sm:$0x1]
  %v1314 = vsel %vm50, %v1308, 0.0
  %1315 = vadd.xlane.f32.xlu0 %v1314
  %v1316 = vpop.xlane.xlu0 %1315
  %v1317 = vsel %vm50, %v1309, 0.0
  %1318 = vadd.xlane.f32.xlu0 %v1317
  %v1319 = vpop.xlane.xlu0 %1318
  %v1320 = vsel %vm50, %v1310, 0.0
  %1321 = vadd.xlane.f32.xlu0 %v1320
  %v1322 = vpop.xlane.xlu0 %1321
  %v1323 = vsel %vm50, %v1311, 0.0
  %1324 = vadd.xlane.f32.xlu0 %v1323
  %v1325 = vpop.xlane.xlu0 %1324
  %v1326 = vrcp.pop 32.0
  %v1327 = vmul.f32 %v1316, %v1326
  %v1328 = vmul.f32 %v1319, %v1326
  %v1329 = vmul.f32 %v1322, %v1326
  %v1330 = vmul.f32 %v1325, %v1326
  %v1331 = vsub.f32 %v1308, %v1327
  %v1332 = vsub.f32 %v1309, %v1328
  %v1333 = vsub.f32 %v1310, %v1329
  %v1334 = vsub.f32 %v1311, %v1330
  %v1335 = vmul.f32 %v1331, %v1331
  %v1336 = vmul.f32 %v1332, %v1332
  %v1337 = vmul.f32 %v1333, %v1333
  %v1338 = vmul.f32 %v1334, %v1334
  %v1339 = vsel %vm50, %v1335, 0.0
  %1340 = vadd.xlane.f32.xlu0 %v1339
  %v1341 = vpop.xlane.xlu0 %1340
  %v1342 = vsel %vm50, %v1336, 0.0
  %1343 = vadd.xlane.f32.xlu0 %v1342
  %v1344 = vpop.xlane.xlu0 %1343
  %v1345 = vsel %vm50, %v1337, 0.0
  %1346 = vadd.xlane.f32.xlu0 %v1345
  %v1347 = vpop.xlane.xlu0 %1346
  %v1348 = vsel %vm50, %v1338, 0.0
  %1349 = vadd.xlane.f32.xlu0 %v1348
  %v1350 = vpop.xlane.xlu0 %1349
  %v1351 = vmul.f32 %v1341, %v1326
  %v1352 = vmul.f32 %v1344, %v1326
  %v1353 = vmul.f32 %v1347, %v1326
  %v1354 = vmul.f32 %v1350, %v1326
  %v1355 = vadd.f32 %v1351, 1e-05
  %v1356 = vadd.f32 %v1352, 1e-05
  %v1357 = vadd.f32 %v1353, 1e-05
  %v1358 = vadd.f32 %v1354, 1e-05
  %v1359 = vrsqrt.pop %v1355
  %v1360 = vrsqrt.pop %v1356
  %v1361 = vrsqrt.pop %v1357
  %v1362 = vrsqrt.pop %v1358
  %v1363 = vmul.f32 %v1331, %v1359
  %v1364 = vmul.f32 %v1332, %v1360
  %v1365 = vmul.f32 %v1333, %v1361
  %v1366 = vmul.f32 %v1334, %v1362
  %v1367 = vlaneseq
  %v1368 = vshrl.u32 %v1367, 7
  %v1369 = vsub.s32 0, %v1368
  %v1370 = vrot.slane %v1312, %v1369
  %v1371 = vmul.f32 %v1363, %v1370
  %v1372 = vmul.f32 %v1364, %v1370
  %v1373 = vmul.f32 %v1365, %v1370
  %v1374 = vmul.f32 %v1366, %v1370
  %v1375 = vlaneseq
  %v1376 = vshrl.u32 %v1375, 7
  %v1377 = vsub.s32 0, %v1376
  %v1378 = vrot.slane %v1313, %v1377
  %v1379 = vadd.f32 %v1371, %v1378
  %v1380 = vadd.f32 %v1372, %v1378
  %v1381 = vadd.f32 %v1373, %v1378
  %v1382 = vadd.f32 %v1374, %v1378
  %v1383 = vld [vmem:[%s1 + $0x48] sm:$0xf]
  %v1384 = vld [vmem:[%s1 + $0x4c] sm:$0xf]
  %v1385 = vld [vmem:[%s1 + $0x50] sm:$0xf]
  %v1386 = vld [vmem:[%s1 + $0x54] sm:$0xf]
  %v1387 = vpack.c.bf16 %v1380, %v1379
  %v1388 = vpack.c.bf16 %v1382, %v1381
  %v1389 = vld [vmem:[%s2 + $0x4] sm:$0x1]
  %v1390 = vlaneseq
  %v1391 = vshrl.u32 %v1390, 7
  %v1392 = vsub.s32 0, %v1391
  %v1393 = vrot.slane %v1389, %v1392
  %v1398 = vunpack.c.l.b16 %v1383
  %v1399 = vunpack.c.l.b16 %v1384
  %v1400 = vunpack.c.l.b16 %v1385
  %v1401 = vunpack.c.l.b16 %v1386
  %v1402 = vpack.c.b16 %v1399, %v1398
  %v1403 = vpack.c.b16 %v1401, %v1400
  %v1407 = vsel %vm50, %v1387, 0
  %v1410 = vsel %vm50, %v1388, 0
  %1412 = vmatprep.subr.bf16.mxu0 0
  %1413 = vmatpush1.bf16.msra.mxu0 0
  %1414 = vmatprep.subr.bf16.mxu0 0
  %1415 = vmatpush1.bf16.msra.mxu0 0
  %1416 = vmatprep.subr.bf16.mxu0 0
  %1417 = vmatpush1.bf16.msra.mxu0 0
  %1418 = vmatprep.subr.bf16.mxu0 0
  %1419 = vmatpush1.bf16.msra.mxu0 0
  %1420 = vmatprep.subr.bf16.mxu0 0
  %1421 = vmatpush1.bf16.msra.mxu0 0
  %1422 = vmatprep.subr.bf16.mxu0 0
  %1423 = vmatpush1.bf16.msra.mxu0 0
  %1424 = vmatprep.subr.bf16.mxu0 0
  %1425 = vmatpush1.bf16.msra.mxu0 %v1403
  %1426 = vmatprep.subr.bf16.mxu0 0
  %1427 = vmatpush1.bf16.msra.mxu0 %v1402
  %1428 = vmatprep.subr.bf16.mxu0 0
  %1429 = vmatpush2.bf16.msra.mxu0 0
  %1430 = vmatprep.subr.bf16.mxu0 0
  %1431 = vmatpush2.bf16.msra.mxu0 0
  %1432 = vmatprep.subr.bf16.mxu0 0
  %1433 = vmatpush2.bf16.msra.mxu0 0
  %1434 = vmatprep.subr.bf16.mxu0 0
  %1435 = vmatpush2.bf16.msra.mxu0 0
  %1436 = vmatprep.subr.bf16.mxu0 0
  %1437 = vmatpush2.bf16.msra.mxu0 0
  %1438 = vmatprep.subr.bf16.mxu0 0
  %1439 = vmatpush2.bf16.msra.mxu0 0
  %1440 = vmatprep.subr.bf16.mxu0 0
  %1441 = vmatpush2.bf16.msra.mxu0 0
  %1442 = vmatprep.subr.bf16.mxu0 0
  %1443 = vmatpush2.bf16.msra.mxu0 0
  %1444 = vmatprep.mubr.bf16.mxu0 0
  %1445 = vmatmul.mubr.bf16.gmra.mxu0 %v1407
  %v1446 = vpop.f32.mrf.mxu0
  %v1447 = vadd.f32 %v1393, %v1446
  %v1448 = vpop.f32.mrf.mxu0
  %v1449 = vpop.f32.mrf.mxu0
  %v1450 = vadd.f32 %v1393, %v1449
  %v1451 = vpop.f32.mrf.mxu0
  %1452 = vmatprep.mubr.bf16.mxu0 0
  %1453 = vmatmul.mubr.bf16.gmra.mxu0 %v1410
  %v1454 = vpop.f32.mrf.mxu0
  %v1455 = vadd.f32 %v1393, %v1454
  %v1456 = vpop.f32.mrf.mxu0
  %v1457 = vpop.f32.mrf.mxu0
  %v1458 = vadd.f32 %v1393, %v1457
  %v1459 = vpop.f32.mrf.mxu0
  %1460 = vdwg.mxu0
  %v1461 = vmul.f32 %v1447, %v1447
  %v1462 = vmul.f32 %v1450, %v1450
  %v1463 = vmul.f32 %v1455, %v1455
  %v1464 = vmul.f32 %v1458, %v1458
  %v1465 = vmul.f32 %v1447, %v1461
  %v1466 = vmul.f32 %v1450, %v1462
  %v1467 = vmul.f32 %v1455, %v1463
  %v1468 = vmul.f32 %v1458, %v1464
  %v1469 = vmul.f32 %v1465, 0.044715
  %v1470 = vmul.f32 %v1466, 0.044715
  %v1471 = vmul.f32 %v1467, 0.044715
  %v1472 = vmul.f32 %v1468, 0.044715
  %v1473 = vadd.f32 %v1447, %v1469
  %v1474 = vadd.f32 %v1450, %v1470
  %v1475 = vadd.f32 %v1455, %v1471
  %v1476 = vadd.f32 %v1458, %v1472
  %v1477 = vmul.f32 %v1473, 0.7978846
  %v1478 = vmul.f32 %v1474, 0.7978846
  %v1479 = vmul.f32 %v1475, 0.7978846
  %v1480 = vmul.f32 %v1476, 0.7978846
  %v1481 = vtanh.pop %v1477
  %v1482 = vtanh.pop %v1478
  %v1483 = vtanh.pop %v1479
  %v1484 = vtanh.pop %v1480
  %v1485 = vadd.f32 %v1481, 1.0
  %v1486 = vadd.f32 %v1482, 1.0
  %v1487 = vadd.f32 %v1483, 1.0
  %v1488 = vadd.f32 %v1484, 1.0
  %v1489 = vmul.f32 %v1485, 0.5
  %v1490 = vmul.f32 %v1486, 0.5
  %v1491 = vmul.f32 %v1487, 0.5
  %v1492 = vmul.f32 %v1488, 0.5
  %v1493 = vmul.f32 %v1447, %v1489
  %v1494 = vmul.f32 %v1450, %v1490
  %v1495 = vmul.f32 %v1455, %v1491
  %v1496 = vmul.f32 %v1458, %v1492
  %v1497 = vld [vmem:[%s1 + $0x58] sm:$0xf]
  %v1498 = vld [vmem:[%s1 + $0x5c] sm:$0xf]
  %v1499 = vld [vmem:[%s1 + $0x60] sm:$0xf]
  %v1500 = vld [vmem:[%s1 + $0x64] sm:$0xf]
  %v1501 = vld [vmem:[%s1 + $0x68] sm:$0xf]
  %v1502 = vld [vmem:[%s1 + $0x6c] sm:$0xf]
  %v1503 = vld [vmem:[%s1 + $0x70] sm:$0xf]
  %v1504 = vld [vmem:[%s1 + $0x74] sm:$0xf]
  %v1505 = vpack.c.bf16 %v1494, %v1493
  %v1506 = vpack.c.bf16 %v1496, %v1495
  %v1507 = vld [vmem:[%s2 + $0x5] sm:$0x1]
  %v1508 = vlaneseq
  %v1509 = vshrl.u32 %v1508, 7
  %v1510 = vsub.s32 0, %v1509
  %v1511 = vrot.slane %v1507, %v1510
  %v1520 = vunpack.c.l.b16 %v1497
  %v1521 = vunpack.c.l.b16 %v1498
  %v1522 = vunpack.c.l.b16 %v1499
  %v1523 = vunpack.c.l.b16 %v1500
  %v1524 = vunpack.c.l.b16 %v1501
  %v1525 = vunpack.c.l.b16 %v1502
  %v1526 = vunpack.c.l.b16 %v1503
  %v1527 = vunpack.c.l.b16 %v1504
  %v1528 = vpack.c.b16 %v1521, %v1520
  %v1529 = vpack.c.b16 %v1523, %v1522
  %v1530 = vpack.c.b16 %v1525, %v1524
  %v1531 = vpack.c.b16 %v1527, %v1526
  %vm1536 = vcmask 523264
  %v1538 = vsel %vm1536, %v1505, 0
  %v1541 = vsel %vm1536, %v1506, 0
  %1543 = vmatprep.subr.bf16.mxu0 0
  %1544 = vmatpush1.bf16.msra.mxu0 0
  %1545 = vmatprep.subr.bf16.mxu0 0
  %1546 = vmatpush1.bf16.msra.mxu0 0
  %1547 = vmatprep.subr.bf16.mxu0 0
  %1548 = vmatpush1.bf16.msra.mxu0 0
  %1549 = vmatprep.subr.bf16.mxu0 0
  %1550 = vmatpush1.bf16.msra.mxu0 0
  %1551 = vmatprep.subr.bf16.mxu0 0
  %1552 = vmatpush1.bf16.msra.mxu0 %v1531
  %1553 = vmatprep.subr.bf16.mxu0 0
  %1554 = vmatpush1.bf16.msra.mxu0 %v1530
  %1555 = vmatprep.subr.bf16.mxu0 0
  %1556 = vmatpush1.bf16.msra.mxu0 %v1529
  %1557 = vmatprep.subr.bf16.mxu0 0
  %1558 = vmatpush1.bf16.msra.mxu0 %v1528
  %1559 = vmatprep.subr.bf16.mxu0 0
  %1560 = vmatpush2.bf16.msra.mxu0 0
  %1561 = vmatprep.subr.bf16.mxu0 0
  %1562 = vmatpush2.bf16.msra.mxu0 0
  %1563 = vmatprep.subr.bf16.mxu0 0
  %1564 = vmatpush2.bf16.msra.mxu0 0
  %1565 = vmatprep.subr.bf16.mxu0 0
  %1566 = vmatpush2.bf16.msra.mxu0 0
  %1567 = vmatprep.subr.bf16.mxu0 0
  %1568 = vmatpush2.bf16.msra.mxu0 0
  %1569 = vmatprep.subr.bf16.mxu0 0
  %1570 = vmatpush2.bf16.msra.mxu0 0
  %1571 = vmatprep.subr.bf16.mxu0 0
  %1572 = vmatpush2.bf16.msra.mxu0 0
  %1573 = vmatprep.subr.bf16.mxu0 0
  %1574 = vmatpush2.bf16.msra.mxu0 0
  %1575 = vmatprep.mubr.bf16.mxu0 0
  %1576 = vmatmul.mubr.bf16.gmra.mxu0 %v1538
  %v1577 = vpop.f32.mrf.mxu0
  %v1578 = vadd.f32 %v1511, %v1577
  %v1579 = vpop.f32.mrf.mxu0
  %v1580 = vpop.f32.mrf.mxu0
  %v1581 = vadd.f32 %v1511, %v1580
  %v1582 = vpop.f32.mrf.mxu0
  %1583 = vmatprep.mubr.bf16.mxu0 0
  %1584 = vmatmul.mubr.bf16.gmra.mxu0 %v1541
  %v1585 = vpop.f32.mrf.mxu0
  %v1586 = vadd.f32 %v1511, %v1585
  %v1587 = vpop.f32.mrf.mxu0
  %v1588 = vpop.f32.mrf.mxu0
  %v1589 = vadd.f32 %v1511, %v1588
  %v1590 = vpop.f32.mrf.mxu0
  %1591 = vdwg.mxu0
  %v1592 = vadd.f32 %v1379, %v1578
  %v1593 = vadd.f32 %v1380, %v1581
  %v1594 = vadd.f32 %v1381, %v1586
  %v1595 = vadd.f32 %v1382, %v1589
  %v1596 = vld [vmem:[%s2 + $0x8] sm:$0x1]
  %v1597 = vld [vmem:[%s2 + $0x9] sm:$0x1]
  %v1598 = vsel %vm50, %v1592, 0.0
  %1599 = vadd.xlane.f32.xlu0 %v1598
  %v1600 = vpop.xlane.xlu0 %1599
  %v1601 = vsel %vm50, %v1593, 0.0
  %1602 = vadd.xlane.f32.xlu0 %v1601
  %v1603 = vpop.xlane.xlu0 %1602
  %v1604 = vsel %vm50, %v1594, 0.0
  %1605 = vadd.xlane.f32.xlu0 %v1604
  %v1606 = vpop.xlane.xlu0 %1605
  %v1607 = vsel %vm50, %v1595, 0.0
  %1608 = vadd.xlane.f32.xlu0 %v1607
  %v1609 = vpop.xlane.xlu0 %1608
  %v1610 = vmul.f32 %v1600, %v1326
  %v1611 = vmul.f32 %v1603, %v1326
  %v1612 = vmul.f32 %v1606, %v1326
  %v1613 = vmul.f32 %v1609, %v1326
  %v1614 = vsub.f32 %v1592, %v1610
  %v1615 = vsub.f32 %v1593, %v1611
  %v1616 = vsub.f32 %v1594, %v1612
  %v1617 = vsub.f32 %v1595, %v1613
  %v1618 = vmul.f32 %v1614, %v1614
  %v1619 = vmul.f32 %v1615, %v1615
  %v1620 = vmul.f32 %v1616, %v1616
  %v1621 = vmul.f32 %v1617, %v1617
  %v1622 = vsel %vm50, %v1618, 0.0
  %1623 = vadd.xlane.f32.xlu0 %v1622
  %v1624 = vpop.xlane.xlu0 %1623
  %v1625 = vsel %vm50, %v1619, 0.0
  %1626 = vadd.xlane.f32.xlu0 %v1625
  %v1627 = vpop.xlane.xlu0 %1626
  %v1628 = vsel %vm50, %v1620, 0.0
  %1629 = vadd.xlane.f32.xlu0 %v1628
  %v1630 = vpop.xlane.xlu0 %1629
  %v1631 = vsel %vm50, %v1621, 0.0
  %1632 = vadd.xlane.f32.xlu0 %v1631
  %v1633 = vpop.xlane.xlu0 %1632
  %v1634 = vmul.f32 %v1624, %v1326
  %v1635 = vmul.f32 %v1627, %v1326
  %v1636 = vmul.f32 %v1630, %v1326
  %v1637 = vmul.f32 %v1633, %v1326
  %v1638 = vadd.f32 %v1634, 1e-05
  %v1639 = vadd.f32 %v1635, 1e-05
  %v1640 = vadd.f32 %v1636, 1e-05
  %v1641 = vadd.f32 %v1637, 1e-05
  %v1642 = vrsqrt.pop %v1638
  %v1643 = vrsqrt.pop %v1639
  %v1644 = vrsqrt.pop %v1640
  %v1645 = vrsqrt.pop %v1641
  %v1646 = vmul.f32 %v1614, %v1642
  %v1647 = vmul.f32 %v1615, %v1643
  %v1648 = vmul.f32 %v1616, %v1644
  %v1649 = vmul.f32 %v1617, %v1645
  %v1650 = vlaneseq
  %v1651 = vshrl.u32 %v1650, 7
  %v1652 = vsub.s32 0, %v1651
  %v1653 = vrot.slane %v1596, %v1652
  %v1654 = vmul.f32 %v1646, %v1653
  %v1655 = vmul.f32 %v1647, %v1653
  %v1656 = vmul.f32 %v1648, %v1653
  %v1657 = vmul.f32 %v1649, %v1653
  %v1658 = vlaneseq
  %v1659 = vshrl.u32 %v1658, 7
  %v1660 = vsub.s32 0, %v1659
  %v1661 = vrot.slane %v1597, %v1660
  %v1662 = vadd.f32 %v1654, %v1661
  %v1663 = vadd.f32 %v1655, %v1661
  %v1664 = vadd.f32 %v1656, %v1661
  %v1665 = vadd.f32 %v1657, %v1661
  %v1666 = vld [vmem:[%s1 + $0x78] sm:$0xf]
  %v1667 = vld [vmem:[%s1 + $0x7c] sm:$0xf]
  %v1668 = vld [vmem:[%s1 + $0x80] sm:$0xf]
  %v1669 = vld [vmem:[%s1 + $0x84] sm:$0xf]
  %v1670 = vpack.c.bf16 %v1663, %v1662
  %v1671 = vpack.c.bf16 %v1665, %v1664
  %v1672 = vld [vmem:[%s2 + $0xa] sm:$0x1]
  %v1673 = vlaneseq
  %v1674 = vshrl.u32 %v1673, 7
  %v1675 = vsub.s32 0, %v1674
  %v1676 = vrot.slane %v1672, %v1675
  %v1681 = vunpack.c.l.b16 %v1666
  %v1682 = vunpack.c.l.b16 %v1667
  %v1683 = vunpack.c.l.b16 %v1668
  %v1684 = vunpack.c.l.b16 %v1669
  %v1685 = vpack.c.b16 %v1682, %v1681
  %v1686 = vpack.c.b16 %v1684, %v1683
  %v1690 = vsel %vm50, %v1670, 0
  %v1693 = vsel %vm50, %v1671, 0
  %1695 = vmatprep.subr.bf16.mxu0 0
  %1696 = vmatpush1.bf16.msra.mxu0 0
  %1697 = vmatprep.subr.bf16.mxu0 0
  %1698 = vmatpush1.bf16.msra.mxu0 0
  %1699 = vmatprep.subr.bf16.mxu0 0
  %1700 = vmatpush1.bf16.msra.mxu0 0
  %1701 = vmatprep.subr.bf16.mxu0 0
  %1702 = vmatpush1.bf16.msra.mxu0 0
  %1703 = vmatprep.subr.bf16.mxu0 0
  %1704 = vmatpush1.bf16.msra.mxu0 0
  %1705 = vmatprep.subr.bf16.mxu0 0
  %1706 = vmatpush1.bf16.msra.mxu0 0
  %1707 = vmatprep.subr.bf16.mxu0 0
  %1708 = vmatpush1.bf16.msra.mxu0 %v1686
  %1709 = vmatprep.subr.bf16.mxu0 0
  %1710 = vmatpush1.bf16.msra.mxu0 %v1685
  %1711 = vmatprep.subr.bf16.mxu0 0
  %1712 = vmatpush2.bf16.msra.mxu0 0
  %1713 = vmatprep.subr.bf16.mxu0 0
  %1714 = vmatpush2.bf16.msra.mxu0 0
  %1715 = vmatprep.subr.bf16.mxu0 0
  %1716 = vmatpush2.bf16.msra.mxu0 0
  %1717 = vmatprep.subr.bf16.mxu0 0
  %1718 = vmatpush2.bf16.msra.mxu0 0
  %1719 = vmatprep.subr.bf16.mxu0 0
  %1720 = vmatpush2.bf16.msra.mxu0 0
  %1721 = vmatprep.subr.bf16.mxu0 0
  %1722 = vmatpush2.bf16.msra.mxu0 0
  %1723 = vmatprep.subr.bf16.mxu0 0
  %1724 = vmatpush2.bf16.msra.mxu0 0
  %1725 = vmatprep.subr.bf16.mxu0 0
  %1726 = vmatpush2.bf16.msra.mxu0 0
  %1727 = vmatprep.mubr.bf16.mxu0 0
  %1728 = vmatmul.mubr.bf16.gmra.mxu0 %v1690
  %v1729 = vpop.f32.mrf.mxu0
  %v1730 = vadd.f32 %v1676, %v1729
  %v1731 = vpop.f32.mrf.mxu0
  %v1732 = vpop.f32.mrf.mxu0
  %v1733 = vadd.f32 %v1676, %v1732
  %v1734 = vpop.f32.mrf.mxu0
  %1735 = vmatprep.mubr.bf16.mxu0 0
  %1736 = vmatmul.mubr.bf16.gmra.mxu0 %v1693
  %v1737 = vpop.f32.mrf.mxu0
  %v1738 = vadd.f32 %v1676, %v1737
  %v1739 = vpop.f32.mrf.mxu0
  %v1740 = vpop.f32.mrf.mxu0
  %v1741 = vadd.f32 %v1676, %v1740
  %v1742 = vpop.f32.mrf.mxu0
  %1743 = vdwg.mxu0
  %1748 = vrot.lane.b32.xlu0 %v1730, 120
  %v1749 = vpop.permute.xlu0 %1748
  %1750 = vrot.lane.b32.xlu0 %v1733, 120
  %v1751 = vpop.permute.xlu0 %1750
  %1752 = vrot.lane.b32.xlu0 %v1738, 120
  %v1753 = vpop.permute.xlu0 %1752
  %1754 = vrot.lane.b32.xlu0 %v1741, 120
  %v1755 = vpop.permute.xlu0 %1754
  %1760 = vrot.lane.b32.xlu0 %v1730, 112
  %v1761 = vpop.permute.xlu0 %1760
  %1762 = vrot.lane.b32.xlu0 %v1733, 112
  %v1763 = vpop.permute.xlu0 %1762
  %1764 = vrot.lane.b32.xlu0 %v1738, 112
  %v1765 = vpop.permute.xlu0 %1764
  %1766 = vrot.lane.b32.xlu0 %v1741, 112
  %v1767 = vpop.permute.xlu0 %1766
  %1772 = vrot.lane.b32.xlu0 %v1730, 104
  %v1773 = vpop.permute.xlu0 %1772
  %1774 = vrot.lane.b32.xlu0 %v1733, 104
  %v1775 = vpop.permute.xlu0 %1774
  %1776 = vrot.lane.b32.xlu0 %v1738, 104
  %v1777 = vpop.permute.xlu0 %1776
  %1778 = vrot.lane.b32.xlu0 %v1741, 104
  %v1779 = vpop.permute.xlu0 %1778
  %v1784 = vpack.c.bf16 %v1733, %v1730
  %v1785 = vpack.c.bf16 %v1741, %v1738
  %v1786 = vpack.c.bf16 %v1751, %v1749
  %v1787 = vpack.c.bf16 %v1755, %v1753
  %v1788 = vpack.c.bf16 %v1763, %v1761
  %v1789 = vpack.c.bf16 %v1767, %v1765
  %v1790 = vpack.c.bf16 %v1775, %v1773
  %v1791 = vpack.c.bf16 %v1779, %v1777
  %1794 = vrot.lane.b32.xlu0 %v1784, 96
  %v1795 = vpop.permute.xlu0 %1794
  %1796 = vrot.lane.b32.xlu0 %v1785, 96
  %v1797 = vpop.permute.xlu0 %1796
  %v1799 = vsel %vm478, %v1784, 0
  %v1802 = vsel %vm478, %v1785, 0
  %v1805 = vsel %vm478, %v1795, 0
  %v1808 = vsel %vm478, %v1797, 0
  %1810 = vmatprep.subr.bf16.mxu0 0
  %1811 = vmatpush1.bf16.xpose.msra.mxu0 0
  %1812 = vmatprep.subr.bf16.mxu0 0
  %1813 = vmatpush1.bf16.xpose.msra.mxu0 0
  %1814 = vmatprep.subr.bf16.mxu0 0
  %1815 = vmatpush1.bf16.xpose.msra.mxu0 0
  %1816 = vmatprep.subr.bf16.mxu0 0
  %1817 = vmatpush1.bf16.xpose.msra.mxu0 0
  %1818 = vmatprep.subr.bf16.mxu0 0
  %1819 = vmatpush1.bf16.xpose.msra.mxu0 0
  %1820 = vmatprep.subr.bf16.mxu0 0
  %1821 = vmatpush1.bf16.xpose.msra.mxu0 0
  %1822 = vmatprep.subr.bf16.mxu0 0
  %1823 = vmatpush1.bf16.xpose.msra.mxu0 %v1808
  %1824 = vmatprep.subr.bf16.mxu0 0
  %1825 = vmatpush1.bf16.xpose.msra.mxu0 %v1805
  %1826 = vmatprep.subr.bf16.mxu0 0
  %1827 = vmatpush2.bf16.xpose.msra.mxu0 0
  %1828 = vmatprep.subr.bf16.mxu0 0
  %1829 = vmatpush2.bf16.xpose.msra.mxu0 0
  %1830 = vmatprep.subr.bf16.mxu0 0
  %1831 = vmatpush2.bf16.xpose.msra.mxu0 0
  %1832 = vmatprep.subr.bf16.mxu0 0
  %1833 = vmatpush2.bf16.xpose.msra.mxu0 0
  %1834 = vmatprep.subr.bf16.mxu0 0
  %1835 = vmatpush2.bf16.xpose.msra.mxu0 0
  %1836 = vmatprep.subr.bf16.mxu0 0
  %1837 = vmatpush2.bf16.xpose.msra.mxu0 0
  %1838 = vmatprep.subr.bf16.mxu0 0
  %1839 = vmatpush2.bf16.xpose.msra.mxu0 0
  %1840 = vmatprep.subr.bf16.mxu0 0
  %1841 = vmatpush2.bf16.xpose.msra.mxu0 0
  %1842 = vmatprep.mubr.bf16.mxu0 0
  %1843 = vmatmul.mubr.bf16.gmra.mxu0 %v1799
  %v1844 = vpop.f32.mrf.mxu0
  %v1845 = vadd.f32 %v467, %v1844
  %v1846 = vpop.f32.mrf.mxu0
  %v1847 = vpop.f32.mrf.mxu0
  %v1848 = vadd.f32 %v469, %v1847
  %v1849 = vpop.f32.mrf.mxu0
  %1850 = vmatprep.mubr.bf16.mxu0 0
  %1851 = vmatmul.mubr.bf16.gmra.mxu0 %v1802
  %v1852 = vpop.f32.mrf.mxu0
  %v1853 = vadd.f32 %v471, %v1852
  %v1854 = vpop.f32.mrf.mxu0
  %v1855 = vpop.f32.mrf.mxu0
  %v1856 = vadd.f32 %v473, %v1855
  %v1857 = vpop.f32.mrf.mxu0
  %1858 = vdwg.mxu0
  %1861 = vrot.lane.b32.xlu0 %v1786, 96
  %v1862 = vpop.permute.xlu0 %1861
  %1863 = vrot.lane.b32.xlu0 %v1787, 96
  %v1864 = vpop.permute.xlu0 %1863
  %v1866 = vsel %vm478, %v1786, 0
  %v1869 = vsel %vm478, %v1787, 0
  %v1872 = vsel %vm478, %v1862, 0
  %v1875 = vsel %vm478, %v1864, 0
  %1877 = vmatprep.subr.bf16.mxu0 0
  %1878 = vmatpush1.bf16.xpose.msra.mxu0 0
  %1879 = vmatprep.subr.bf16.mxu0 0
  %1880 = vmatpush1.bf16.xpose.msra.mxu0 0
  %1881 = vmatprep.subr.bf16.mxu0 0
  %1882 = vmatpush1.bf16.xpose.msra.mxu0 0
  %1883 = vmatprep.subr.bf16.mxu0 0
  %1884 = vmatpush1.bf16.xpose.msra.mxu0 0
  %1885 = vmatprep.subr.bf16.mxu0 0
  %1886 = vmatpush1.bf16.xpose.msra.mxu0 0
  %1887 = vmatprep.subr.bf16.mxu0 0
  %1888 = vmatpush1.bf16.xpose.msra.mxu0 0
  %1889 = vmatprep.subr.bf16.mxu0 0
  %1890 = vmatpush1.bf16.xpose.msra.mxu0 %v1875
  %1891 = vmatprep.subr.bf16.mxu0 0
  %1892 = vmatpush1.bf16.xpose.msra.mxu0 %v1872
  %1893 = vmatprep.subr.bf16.mxu0 0
  %1894 = vmatpush2.bf16.xpose.msra.mxu0 0
  %1895 = vmatprep.subr.bf16.mxu0 0
  %1896 = vmatpush2.bf16.xpose.msra.mxu0 0
  %1897 = vmatprep.subr.bf16.mxu0 0
  %1898 = vmatpush2.bf16.xpose.msra.mxu0 0
  %1899 = vmatprep.subr.bf16.mxu0 0
  %1900 = vmatpush2.bf16.xpose.msra.mxu0 0
  %1901 = vmatprep.subr.bf16.mxu0 0
  %1902 = vmatpush2.bf16.xpose.msra.mxu0 0
  %1903 = vmatprep.subr.bf16.mxu0 0
  %1904 = vmatpush2.bf16.xpose.msra.mxu0 0
  %1905 = vmatprep.subr.bf16.mxu0 0
  %1906 = vmatpush2.bf16.xpose.msra.mxu0 0
  %1907 = vmatprep.subr.bf16.mxu0 0
  %1908 = vmatpush2.bf16.xpose.msra.mxu0 0
  %1909 = vmatprep.mubr.bf16.mxu0 0
  %1910 = vmatmul.mubr.bf16.gmra.mxu0 %v1866
  %v1911 = vpop.f32.mrf.mxu0
  %v1912 = vadd.f32 %v467, %v1911
  %v1913 = vpop.f32.mrf.mxu0
  %v1914 = vpop.f32.mrf.mxu0
  %v1915 = vadd.f32 %v469, %v1914
  %v1916 = vpop.f32.mrf.mxu0
  %1917 = vmatprep.mubr.bf16.mxu0 0
  %1918 = vmatmul.mubr.bf16.gmra.mxu0 %v1869
  %v1919 = vpop.f32.mrf.mxu0
  %v1920 = vadd.f32 %v471, %v1919
  %v1921 = vpop.f32.mrf.mxu0
  %v1922 = vpop.f32.mrf.mxu0
  %v1923 = vadd.f32 %v473, %v1922
  %v1924 = vpop.f32.mrf.mxu0
  %1925 = vdwg.mxu0
  %1928 = vrot.lane.b32.xlu0 %v1788, 96
  %v1929 = vpop.permute.xlu0 %1928
  %1930 = vrot.lane.b32.xlu0 %v1789, 96
  %v1931 = vpop.permute.xlu0 %1930
  %v1933 = vsel %vm478, %v1788, 0
  %v1936 = vsel %vm478, %v1789, 0
  %v1939 = vsel %vm478, %v1929, 0
  %v1942 = vsel %vm478, %v1931, 0
  %1944 = vmatprep.subr.bf16.mxu0 0
  %1945 = vmatpush1.bf16.xpose.msra.mxu0 0
  %1946 = vmatprep.subr.bf16.mxu0 0
  %1947 = vmatpush1.bf16.xpose.msra.mxu0 0
  %1948 = vmatprep.subr.bf16.mxu0 0
  %1949 = vmatpush1.bf16.xpose.msra.mxu0 0
  %1950 = vmatprep.subr.bf16.mxu0 0
  %1951 = vmatpush1.bf16.xpose.msra.mxu0 0
  %1952 = vmatprep.subr.bf16.mxu0 0
  %1953 = vmatpush1.bf16.xpose.msra.mxu0 0
  %1954 = vmatprep.subr.bf16.mxu0 0
  %1955 = vmatpush1.bf16.xpose.msra.mxu0 0
  %1956 = vmatprep.subr.bf16.mxu0 0
  %1957 = vmatpush1.bf16.xpose.msra.mxu0 %v1942
  %1958 = vmatprep.subr.bf16.mxu0 0
  %1959 = vmatpush1.bf16.xpose.msra.mxu0 %v1939
  %1960 = vmatprep.subr.bf16.mxu0 0
  %1961 = vmatpush2.bf16.xpose.msra.mxu0 0
  %1962 = vmatprep.subr.bf16.mxu0 0
  %1963 = vmatpush2.bf16.xpose.msra.mxu0 0
  %1964 = vmatprep.subr.bf16.mxu0 0
  %1965 = vmatpush2.bf16.xpose.msra.mxu0 0
  %1966 = vmatprep.subr.bf16.mxu0 0
  %1967 = vmatpush2.bf16.xpose.msra.mxu0 0
  %1968 = vmatprep.subr.bf16.mxu0 0
  %1969 = vmatpush2.bf16.xpose.msra.mxu0 0
  %1970 = vmatprep.subr.bf16.mxu0 0
  %1971 = vmatpush2.bf16.xpose.msra.mxu0 0
  %1972 = vmatprep.subr.bf16.mxu0 0
  %1973 = vmatpush2.bf16.xpose.msra.mxu0 0
  %1974 = vmatprep.subr.bf16.mxu0 0
  %1975 = vmatpush2.bf16.xpose.msra.mxu0 0
  %1976 = vmatprep.mubr.bf16.mxu0 0
  %1977 = vmatmul.mubr.bf16.gmra.mxu0 %v1933
  %v1978 = vpop.f32.mrf.mxu0
  %v1979 = vadd.f32 %v467, %v1978
  %v1980 = vpop.f32.mrf.mxu0
  %v1981 = vpop.f32.mrf.mxu0
  %v1982 = vadd.f32 %v469, %v1981
  %v1983 = vpop.f32.mrf.mxu0
  %1984 = vmatprep.mubr.bf16.mxu0 0
  %1985 = vmatmul.mubr.bf16.gmra.mxu0 %v1936
  %v1986 = vpop.f32.mrf.mxu0
  %v1987 = vadd.f32 %v471, %v1986
  %v1988 = vpop.f32.mrf.mxu0
  %v1989 = vpop.f32.mrf.mxu0
  %v1990 = vadd.f32 %v473, %v1989
  %v1991 = vpop.f32.mrf.mxu0
  %1992 = vdwg.mxu0
  %1995 = vrot.lane.b32.xlu0 %v1790, 96
  %v1996 = vpop.permute.xlu0 %1995
  %1997 = vrot.lane.b32.xlu0 %v1791, 96
  %v1998 = vpop.permute.xlu0 %1997
  %v2000 = vsel %vm478, %v1790, 0
  %v2003 = vsel %vm478, %v1791, 0
  %v2006 = vsel %vm478, %v1996, 0
  %v2009 = vsel %vm478, %v1998, 0
  %2011 = vmatprep.subr.bf16.mxu0 0
  %2012 = vmatpush1.bf16.xpose.msra.mxu0 0
  %2013 = vmatprep.subr.bf16.mxu0 0
  %2014 = vmatpush1.bf16.xpose.msra.mxu0 0
  %2015 = vmatprep.subr.bf16.mxu0 0
  %2016 = vmatpush1.bf16.xpose.msra.mxu0 0
  %2017 = vmatprep.subr.bf16.mxu0 0
  %2018 = vmatpush1.bf16.xpose.msra.mxu0 0
  %2019 = vmatprep.subr.bf16.mxu0 0
  %2020 = vmatpush1.bf16.xpose.msra.mxu0 0
  %2021 = vmatprep.subr.bf16.mxu0 0
  %2022 = vmatpush1.bf16.xpose.msra.mxu0 0
  %2023 = vmatprep.subr.bf16.mxu0 0
  %2024 = vmatpush1.bf16.xpose.msra.mxu0 %v2009
  %2025 = vmatprep.subr.bf16.mxu0 0
  %2026 = vmatpush1.bf16.xpose.msra.mxu0 %v2006
  %2027 = vmatprep.subr.bf16.mxu0 0
  %2028 = vmatpush2.bf16.xpose.msra.mxu0 0
  %2029 = vmatprep.subr.bf16.mxu0 0
  %2030 = vmatpush2.bf16.xpose.msra.mxu0 0
  %2031 = vmatprep.subr.bf16.mxu0 0
  %2032 = vmatpush2.bf16.xpose.msra.mxu0 0
  %2033 = vmatprep.subr.bf16.mxu0 0
  %2034 = vmatpush2.bf16.xpose.msra.mxu0 0
  %2035 = vmatprep.subr.bf16.mxu0 0
  %2036 = vmatpush2.bf16.xpose.msra.mxu0 0
  %2037 = vmatprep.subr.bf16.mxu0 0
  %2038 = vmatpush2.bf16.xpose.msra.mxu0 0
  %2039 = vmatprep.subr.bf16.mxu0 0
  %2040 = vmatpush2.bf16.xpose.msra.mxu0 0
  %2041 = vmatprep.subr.bf16.mxu0 0
  %2042 = vmatpush2.bf16.xpose.msra.mxu0 0
  %2043 = vmatprep.mubr.bf16.mxu0 0
  %2044 = vmatmul.mubr.bf16.gmra.mxu0 %v2000
  %v2045 = vpop.f32.mrf.mxu0
  %v2046 = vadd.f32 %v467, %v2045
  %v2047 = vpop.f32.mrf.mxu0
  %v2048 = vpop.f32.mrf.mxu0
  %v2049 = vadd.f32 %v469, %v2048
  %v2050 = vpop.f32.mrf.mxu0
  %2051 = vmatprep.mubr.bf16.mxu0 0
  %2052 = vmatmul.mubr.bf16.gmra.mxu0 %v2003
  %v2053 = vpop.f32.mrf.mxu0
  %v2054 = vadd.f32 %v471, %v2053
  %v2055 = vpop.f32.mrf.mxu0
  %v2056 = vpop.f32.mrf.mxu0
  %v2057 = vadd.f32 %v473, %v2056
  %v2058 = vpop.f32.mrf.mxu0
  %2059 = vdwg.mxu0
  %v2060 = vsel %vm50, %v1845, -inf
  %2061 = vmax.xlane.f32.xlu0 %v2060
  %v2062 = vpop.xlane.xlu0 %2061
  %v2063 = vsel %vm50, %v1848, -inf
  %2064 = vmax.xlane.f32.xlu0 %v2063
  %v2065 = vpop.xlane.xlu0 %2064
  %v2066 = vsel %vm50, %v1853, -inf
  %2067 = vmax.xlane.f32.xlu0 %v2066
  %v2068 = vpop.xlane.xlu0 %2067
  %v2069 = vsel %vm50, %v1856, -inf
  %2070 = vmax.xlane.f32.xlu0 %v2069
  %v2071 = vpop.xlane.xlu0 %2070
  %v2072 = vsel %vm50, %v1912, -inf
  %2073 = vmax.xlane.f32.xlu0 %v2072
  %v2074 = vpop.xlane.xlu0 %2073
  %v2075 = vsel %vm50, %v1915, -inf
  %2076 = vmax.xlane.f32.xlu0 %v2075
  %v2077 = vpop.xlane.xlu0 %2076
  %v2078 = vsel %vm50, %v1920, -inf
  %2079 = vmax.xlane.f32.xlu0 %v2078
  %v2080 = vpop.xlane.xlu0 %2079
  %v2081 = vsel %vm50, %v1923, -inf
  %2082 = vmax.xlane.f32.xlu0 %v2081
  %v2083 = vpop.xlane.xlu0 %2082
  %v2084 = vsel %vm50, %v1979, -inf
  %2085 = vmax.xlane.f32.xlu0 %v2084
  %v2086 = vpop.xlane.xlu0 %2085
  %v2087 = vsel %vm50, %v1982, -inf
  %2088 = vmax.xlane.f32.xlu0 %v2087
  %v2089 = vpop.xlane.xlu0 %2088
  %v2090 = vsel %vm50, %v1987, -inf
  %2091 = vmax.xlane.f32.xlu0 %v2090
  %v2092 = vpop.xlane.xlu0 %2091
  %v2093 = vsel %vm50, %v1990, -inf
  %2094 = vmax.xlane.f32.xlu0 %v2093
  %v2095 = vpop.xlane.xlu0 %2094
  %v2096 = vsel %vm50, %v2046, -inf
  %2097 = vmax.xlane.f32.xlu0 %v2096
  %v2098 = vpop.xlane.xlu0 %2097
  %v2099 = vsel %vm50, %v2049, -inf
  %2100 = vmax.xlane.f32.xlu0 %v2099
  %v2101 = vpop.xlane.xlu0 %2100
  %v2102 = vsel %vm50, %v2054, -inf
  %2103 = vmax.xlane.f32.xlu0 %v2102
  %v2104 = vpop.xlane.xlu0 %2103
  %v2105 = vsel %vm50, %v2057, -inf
  %2106 = vmax.xlane.f32.xlu0 %v2105
  %v2107 = vpop.xlane.xlu0 %2106
  %v2108 = vsub.f32 %v1845, %v2062
  %v2109 = vsub.f32 %v1848, %v2065
  %v2110 = vsub.f32 %v1853, %v2068
  %v2111 = vsub.f32 %v1856, %v2071
  %v2112 = vsub.f32 %v1912, %v2074
  %v2113 = vsub.f32 %v1915, %v2077
  %v2114 = vsub.f32 %v1920, %v2080
  %v2115 = vsub.f32 %v1923, %v2083
  %v2116 = vsub.f32 %v1979, %v2086
  %v2117 = vsub.f32 %v1982, %v2089
  %v2118 = vsub.f32 %v1987, %v2092
  %v2119 = vsub.f32 %v1990, %v2095
  %v2120 = vsub.f32 %v2046, %v2098
  %v2121 = vsub.f32 %v2049, %v2101
  %v2122 = vsub.f32 %v2054, %v2104
  %v2123 = vsub.f32 %v2057, %v2107
  %v2124 = vmul.f32 %v2108, 1.442695
  %v2125 = vpow.pop %v2124
  %v2126 = vmul.f32 %v2109, 1.442695
  %v2127 = vpow.pop %v2126
  %v2128 = vmul.f32 %v2110, 1.442695
  %v2129 = vpow.pop %v2128
  %v2130 = vmul.f32 %v2111, 1.442695
  %v2131 = vpow.pop %v2130
  %v2132 = vmul.f32 %v2112, 1.442695
  %v2133 = vpow.pop %v2132
  %v2134 = vmul.f32 %v2113, 1.442695
  %v2135 = vpow.pop %v2134
  %v2136 = vmul.f32 %v2114, 1.442695
  %v2137 = vpow.pop %v2136
  %v2138 = vmul.f32 %v2115, 1.442695
  %v2139 = vpow.pop %v2138
  %v2140 = vmul.f32 %v2116, 1.442695
  %v2141 = vpow.pop %v2140
  %v2142 = vmul.f32 %v2117, 1.442695
  %v2143 = vpow.pop %v2142
  %v2144 = vmul.f32 %v2118, 1.442695
  %v2145 = vpow.pop %v2144
  %v2146 = vmul.f32 %v2119, 1.442695
  %v2147 = vpow.pop %v2146
  %v2148 = vmul.f32 %v2120, 1.442695
  %v2149 = vpow.pop %v2148
  %v2150 = vmul.f32 %v2121, 1.442695
  %v2151 = vpow.pop %v2150
  %v2152 = vmul.f32 %v2122, 1.442695
  %v2153 = vpow.pop %v2152
  %v2154 = vmul.f32 %v2123, 1.442695
  %v2155 = vpow.pop %v2154
  %v2156 = vsel %vm50, %v2125, 0.0
  %2157 = vadd.xlane.f32.xlu0 %v2156
  %v2158 = vpop.xlane.xlu0 %2157
  %v2159 = vsel %vm50, %v2127, 0.0
  %2160 = vadd.xlane.f32.xlu0 %v2159
  %v2161 = vpop.xlane.xlu0 %2160
  %v2162 = vsel %vm50, %v2129, 0.0
  %2163 = vadd.xlane.f32.xlu0 %v2162
  %v2164 = vpop.xlane.xlu0 %2163
  %v2165 = vsel %vm50, %v2131, 0.0
  %2166 = vadd.xlane.f32.xlu0 %v2165
  %v2167 = vpop.xlane.xlu0 %2166
  %v2168 = vsel %vm50, %v2133, 0.0
  %2169 = vadd.xlane.f32.xlu0 %v2168
  %v2170 = vpop.xlane.xlu0 %2169
  %v2171 = vsel %vm50, %v2135, 0.0
  %2172 = vadd.xlane.f32.xlu0 %v2171
  %v2173 = vpop.xlane.xlu0 %2172
  %v2174 = vsel %vm50, %v2137, 0.0
  %2175 = vadd.xlane.f32.xlu0 %v2174
  %v2176 = vpop.xlane.xlu0 %2175
  %v2177 = vsel %vm50, %v2139, 0.0
  %2178 = vadd.xlane.f32.xlu0 %v2177
  %v2179 = vpop.xlane.xlu0 %2178
  %v2180 = vsel %vm50, %v2141, 0.0
  %2181 = vadd.xlane.f32.xlu0 %v2180
  %v2182 = vpop.xlane.xlu0 %2181
  %v2183 = vsel %vm50, %v2143, 0.0
  %2184 = vadd.xlane.f32.xlu0 %v2183
  %v2185 = vpop.xlane.xlu0 %2184
  %v2186 = vsel %vm50, %v2145, 0.0
  %2187 = vadd.xlane.f32.xlu0 %v2186
  %v2188 = vpop.xlane.xlu0 %2187
  %v2189 = vsel %vm50, %v2147, 0.0
  %2190 = vadd.xlane.f32.xlu0 %v2189
  %v2191 = vpop.xlane.xlu0 %2190
  %v2192 = vsel %vm50, %v2149, 0.0
  %2193 = vadd.xlane.f32.xlu0 %v2192
  %v2194 = vpop.xlane.xlu0 %2193
  %v2195 = vsel %vm50, %v2151, 0.0
  %2196 = vadd.xlane.f32.xlu0 %v2195
  %v2197 = vpop.xlane.xlu0 %2196
  %v2198 = vsel %vm50, %v2153, 0.0
  %2199 = vadd.xlane.f32.xlu0 %v2198
  %v2200 = vpop.xlane.xlu0 %2199
  %v2201 = vsel %vm50, %v2155, 0.0
  %2202 = vadd.xlane.f32.xlu0 %v2201
  %v2203 = vpop.xlane.xlu0 %2202
  %v2204 = vrcp.pop %v2158
  %v2205 = vrcp.pop %v2161
  %v2206 = vrcp.pop %v2164
  %v2207 = vrcp.pop %v2167
  %v2208 = vrcp.pop %v2170
  %v2209 = vrcp.pop %v2173
  %v2210 = vrcp.pop %v2176
  %v2211 = vrcp.pop %v2179
  %v2212 = vrcp.pop %v2182
  %v2213 = vrcp.pop %v2185
  %v2214 = vrcp.pop %v2188
  %v2215 = vrcp.pop %v2191
  %v2216 = vrcp.pop %v2194
  %v2217 = vrcp.pop %v2197
  %v2218 = vrcp.pop %v2200
  %v2219 = vrcp.pop %v2203
  %v2220 = vmul.f32 %v2125, %v2204
  %v2221 = vmul.f32 %v2127, %v2205
  %v2222 = vmul.f32 %v2129, %v2206
  %v2223 = vmul.f32 %v2131, %v2207
  %v2224 = vmul.f32 %v2133, %v2208
  %v2225 = vmul.f32 %v2135, %v2209
  %v2226 = vmul.f32 %v2137, %v2210
  %v2227 = vmul.f32 %v2139, %v2211
  %v2228 = vmul.f32 %v2141, %v2212
  %v2229 = vmul.f32 %v2143, %v2213
  %v2230 = vmul.f32 %v2145, %v2214
  %v2231 = vmul.f32 %v2147, %v2215
  %v2232 = vmul.f32 %v2149, %v2216
  %v2233 = vmul.f32 %v2151, %v2217
  %v2234 = vmul.f32 %v2153, %v2218
  %v2235 = vmul.f32 %v2155, %v2219
  %v2236 = vpack.c.bf16 %v2221, %v2220
  %v2237 = vpack.c.bf16 %v2223, %v2222
  %v2238 = vpack.c.bf16 %v2225, %v2224
  %v2239 = vpack.c.bf16 %v2227, %v2226
  %v2240 = vpack.c.bf16 %v2229, %v2228
  %v2241 = vpack.c.bf16 %v2231, %v2230
  %v2242 = vpack.c.bf16 %v2233, %v2232
  %v2243 = vpack.c.bf16 %v2235, %v2234
  %2244 = vrot.lane.b32.xlu0 %v1784, 64
  %v2245 = vpop.permute.xlu0 %2244
  %2246 = vrot.lane.b32.xlu0 %v1785, 64
  %v2247 = vpop.permute.xlu0 %2246
  %v2251 = vsel %vm50, %v2236, 0
  %v2254 = vsel %vm50, %v2237, 0
  %2256 = vmatprep.subr.bf16.mxu0 0
  %2257 = vmatpush1.bf16.msra.mxu0 0
  %2258 = vmatprep.subr.bf16.mxu0 0
  %2259 = vmatpush1.bf16.msra.mxu0 0
  %2260 = vmatprep.subr.bf16.mxu0 0
  %2261 = vmatpush1.bf16.msra.mxu0 0
  %2262 = vmatprep.subr.bf16.mxu0 0
  %2263 = vmatpush1.bf16.msra.mxu0 0
  %2264 = vmatprep.subr.bf16.mxu0 0
  %2265 = vmatpush1.bf16.msra.mxu0 0
  %2266 = vmatprep.subr.bf16.mxu0 0
  %2267 = vmatpush1.bf16.msra.mxu0 0
  %2268 = vmatprep.subr.bf16.mxu0 0
  %2269 = vmatpush1.bf16.msra.mxu0 %v2247
  %2270 = vmatprep.subr.bf16.mxu0 0
  %2271 = vmatpush1.bf16.msra.mxu0 %v2245
  %2272 = vmatprep.subr.bf16.mxu0 0
  %2273 = vmatpush2.bf16.msra.mxu0 0
  %2274 = vmatprep.subr.bf16.mxu0 0
  %2275 = vmatpush2.bf16.msra.mxu0 0
  %2276 = vmatprep.subr.bf16.mxu0 0
  %2277 = vmatpush2.bf16.msra.mxu0 0
  %2278 = vmatprep.subr.bf16.mxu0 0
  %2279 = vmatpush2.bf16.msra.mxu0 0
  %2280 = vmatprep.subr.bf16.mxu0 0
  %2281 = vmatpush2.bf16.msra.mxu0 0
  %2282 = vmatprep.subr.bf16.mxu0 0
  %2283 = vmatpush2.bf16.msra.mxu0 0
  %2284 = vmatprep.subr.bf16.mxu0 0
  %2285 = vmatpush2.bf16.msra.mxu0 0
  %2286 = vmatprep.subr.bf16.mxu0 0
  %2287 = vmatpush2.bf16.msra.mxu0 0
  %2288 = vmatprep.mubr.bf16.mxu0 0
  %2289 = vmatmul.mubr.bf16.gmra.mxu0 %v2251
  %v2290 = vpop.f32.mrf.mxu0
  %v2291 = vadd.f32 0.0, %v2290
  %v2292 = vpop.f32.mrf.mxu0
  %v2293 = vpop.f32.mrf.mxu0
  %v2294 = vadd.f32 0.0, %v2293
  %v2295 = vpop.f32.mrf.mxu0
  %2296 = vmatprep.mubr.bf16.mxu0 0
  %2297 = vmatmul.mubr.bf16.gmra.mxu0 %v2254
  %v2298 = vpop.f32.mrf.mxu0
  %v2299 = vadd.f32 0.0, %v2298
  %v2300 = vpop.f32.mrf.mxu0
  %v2301 = vpop.f32.mrf.mxu0
  %v2302 = vadd.f32 0.0, %v2301
  %v2303 = vpop.f32.mrf.mxu0
  %2304 = vdwg.mxu0
  %2305 = vrot.lane.b32.xlu0 %v1786, 64
  %v2306 = vpop.permute.xlu0 %2305
  %2307 = vrot.lane.b32.xlu0 %v1787, 64
  %v2308 = vpop.permute.xlu0 %2307
  %v2312 = vsel %vm50, %v2238, 0
  %v2315 = vsel %vm50, %v2239, 0
  %2317 = vmatprep.subr.bf16.mxu0 0
  %2318 = vmatpush1.bf16.msra.mxu0 0
  %2319 = vmatprep.subr.bf16.mxu0 0
  %2320 = vmatpush1.bf16.msra.mxu0 0
  %2321 = vmatprep.subr.bf16.mxu0 0
  %2322 = vmatpush1.bf16.msra.mxu0 0
  %2323 = vmatprep.subr.bf16.mxu0 0
  %2324 = vmatpush1.bf16.msra.mxu0 0
  %2325 = vmatprep.subr.bf16.mxu0 0
  %2326 = vmatpush1.bf16.msra.mxu0 0
  %2327 = vmatprep.subr.bf16.mxu0 0
  %2328 = vmatpush1.bf16.msra.mxu0 0
  %2329 = vmatprep.subr.bf16.mxu0 0
  %2330 = vmatpush1.bf16.msra.mxu0 %v2308
  %2331 = vmatprep.subr.bf16.mxu0 0
  %2332 = vmatpush1.bf16.msra.mxu0 %v2306
  %2333 = vmatprep.subr.bf16.mxu0 0
  %2334 = vmatpush2.bf16.msra.mxu0 0
  %2335 = vmatprep.subr.bf16.mxu0 0
  %2336 = vmatpush2.bf16.msra.mxu0 0
  %2337 = vmatprep.subr.bf16.mxu0 0
  %2338 = vmatpush2.bf16.msra.mxu0 0
  %2339 = vmatprep.subr.bf16.mxu0 0
  %2340 = vmatpush2.bf16.msra.mxu0 0
  %2341 = vmatprep.subr.bf16.mxu0 0
  %2342 = vmatpush2.bf16.msra.mxu0 0
  %2343 = vmatprep.subr.bf16.mxu0 0
  %2344 = vmatpush2.bf16.msra.mxu0 0
  %2345 = vmatprep.subr.bf16.mxu0 0
  %2346 = vmatpush2.bf16.msra.mxu0 0
  %2347 = vmatprep.subr.bf16.mxu0 0
  %2348 = vmatpush2.bf16.msra.mxu0 0
  %2349 = vmatprep.mubr.bf16.mxu0 0
  %2350 = vmatmul.mubr.bf16.gmra.mxu0 %v2312
  %v2351 = vpop.f32.mrf.mxu0
  %v2352 = vadd.f32 0.0, %v2351
  %v2353 = vpop.f32.mrf.mxu0
  %v2354 = vpop.f32.mrf.mxu0
  %v2355 = vadd.f32 0.0, %v2354
  %v2356 = vpop.f32.mrf.mxu0
  %2357 = vmatprep.mubr.bf16.mxu0 0
  %2358 = vmatmul.mubr.bf16.gmra.mxu0 %v2315
  %v2359 = vpop.f32.mrf.mxu0
  %v2360 = vadd.f32 0.0, %v2359
  %v2361 = vpop.f32.mrf.mxu0
  %v2362 = vpop.f32.mrf.mxu0
  %v2363 = vadd.f32 0.0, %v2362
  %v2364 = vpop.f32.mrf.mxu0
  %2365 = vdwg.mxu0
  %2366 = vrot.lane.b32.xlu0 %v1788, 64
  %v2367 = vpop.permute.xlu0 %2366
  %2368 = vrot.lane.b32.xlu0 %v1789, 64
  %v2369 = vpop.permute.xlu0 %2368
  %v2373 = vsel %vm50, %v2240, 0
  %v2376 = vsel %vm50, %v2241, 0
  %2378 = vmatprep.subr.bf16.mxu0 0
  %2379 = vmatpush1.bf16.msra.mxu0 0
  %2380 = vmatprep.subr.bf16.mxu0 0
  %2381 = vmatpush1.bf16.msra.mxu0 0
  %2382 = vmatprep.subr.bf16.mxu0 0
  %2383 = vmatpush1.bf16.msra.mxu0 0
  %2384 = vmatprep.subr.bf16.mxu0 0
  %2385 = vmatpush1.bf16.msra.mxu0 0
  %2386 = vmatprep.subr.bf16.mxu0 0
  %2387 = vmatpush1.bf16.msra.mxu0 0
  %2388 = vmatprep.subr.bf16.mxu0 0
  %2389 = vmatpush1.bf16.msra.mxu0 0
  %2390 = vmatprep.subr.bf16.mxu0 0
  %2391 = vmatpush1.bf16.msra.mxu0 %v2369
  %2392 = vmatprep.subr.bf16.mxu0 0
  %2393 = vmatpush1.bf16.msra.mxu0 %v2367
  %2394 = vmatprep.subr.bf16.mxu0 0
  %2395 = vmatpush2.bf16.msra.mxu0 0
  %2396 = vmatprep.subr.bf16.mxu0 0
  %2397 = vmatpush2.bf16.msra.mxu0 0
  %2398 = vmatprep.subr.bf16.mxu0 0
  %2399 = vmatpush2.bf16.msra.mxu0 0
  %2400 = vmatprep.subr.bf16.mxu0 0
  %2401 = vmatpush2.bf16.msra.mxu0 0
  %2402 = vmatprep.subr.bf16.mxu0 0
  %2403 = vmatpush2.bf16.msra.mxu0 0
  %2404 = vmatprep.subr.bf16.mxu0 0
  %2405 = vmatpush2.bf16.msra.mxu0 0
  %2406 = vmatprep.subr.bf16.mxu0 0
  %2407 = vmatpush2.bf16.msra.mxu0 0
  %2408 = vmatprep.subr.bf16.mxu0 0
  %2409 = vmatpush2.bf16.msra.mxu0 0
  %2410 = vmatprep.mubr.bf16.mxu0 0
  %2411 = vmatmul.mubr.bf16.gmra.mxu0 %v2373
  %v2412 = vpop.f32.mrf.mxu0
  %v2413 = vadd.f32 0.0, %v2412
  %v2414 = vpop.f32.mrf.mxu0
  %v2415 = vpop.f32.mrf.mxu0
  %v2416 = vadd.f32 0.0, %v2415
  %v2417 = vpop.f32.mrf.mxu0
  %2418 = vmatprep.mubr.bf16.mxu0 0
  %2419 = vmatmul.mubr.bf16.gmra.mxu0 %v2376
  %v2420 = vpop.f32.mrf.mxu0
  %v2421 = vadd.f32 0.0, %v2420
  %v2422 = vpop.f32.mrf.mxu0
  %v2423 = vpop.f32.mrf.mxu0
  %v2424 = vadd.f32 0.0, %v2423
  %v2425 = vpop.f32.mrf.mxu0
  %2426 = vdwg.mxu0
  %2427 = vrot.lane.b32.xlu0 %v1790, 64
  %v2428 = vpop.permute.xlu0 %2427
  %2429 = vrot.lane.b32.xlu0 %v1791, 64
  %v2430 = vpop.permute.xlu0 %2429
  %v2434 = vsel %vm50, %v2242, 0
  %v2437 = vsel %vm50, %v2243, 0
  %2439 = vmatprep.subr.bf16.mxu0 0
  %2440 = vmatpush1.bf16.msra.mxu0 0
  %2441 = vmatprep.subr.bf16.mxu0 0
  %2442 = vmatpush1.bf16.msra.mxu0 0
  %2443 = vmatprep.subr.bf16.mxu0 0
  %2444 = vmatpush1.bf16.msra.mxu0 0
  %2445 = vmatprep.subr.bf16.mxu0 0
  %2446 = vmatpush1.bf16.msra.mxu0 0
  %2447 = vmatprep.subr.bf16.mxu0 0
  %2448 = vmatpush1.bf16.msra.mxu0 0
  %2449 = vmatprep.subr.bf16.mxu0 0
  %2450 = vmatpush1.bf16.msra.mxu0 0
  %2451 = vmatprep.subr.bf16.mxu0 0
  %2452 = vmatpush1.bf16.msra.mxu0 %v2430
  %2453 = vmatprep.subr.bf16.mxu0 0
  %2454 = vmatpush1.bf16.msra.mxu0 %v2428
  %2455 = vmatprep.subr.bf16.mxu0 0
  %2456 = vmatpush2.bf16.msra.mxu0 0
  %2457 = vmatprep.subr.bf16.mxu0 0
  %2458 = vmatpush2.bf16.msra.mxu0 0
  %2459 = vmatprep.subr.bf16.mxu0 0
  %2460 = vmatpush2.bf16.msra.mxu0 0
  %2461 = vmatprep.subr.bf16.mxu0 0
  %2462 = vmatpush2.bf16.msra.mxu0 0
  %2463 = vmatprep.subr.bf16.mxu0 0
  %2464 = vmatpush2.bf16.msra.mxu0 0
  %2465 = vmatprep.subr.bf16.mxu0 0
  %2466 = vmatpush2.bf16.msra.mxu0 0
  %2467 = vmatprep.subr.bf16.mxu0 0
  %2468 = vmatpush2.bf16.msra.mxu0 0
  %2469 = vmatprep.subr.bf16.mxu0 0
  %2470 = vmatpush2.bf16.msra.mxu0 0
  %2471 = vmatprep.mubr.bf16.mxu0 0
  %2472 = vmatmul.mubr.bf16.gmra.mxu0 %v2434
  %v2473 = vpop.f32.mrf.mxu0
  %v2474 = vadd.f32 0.0, %v2473
  %v2475 = vpop.f32.mrf.mxu0
  %v2476 = vpop.f32.mrf.mxu0
  %v2477 = vadd.f32 0.0, %v2476
  %v2478 = vpop.f32.mrf.mxu0
  %2479 = vmatprep.mubr.bf16.mxu0 0
  %2480 = vmatmul.mubr.bf16.gmra.mxu0 %v2437
  %v2481 = vpop.f32.mrf.mxu0
  %v2482 = vadd.f32 0.0, %v2481
  %v2483 = vpop.f32.mrf.mxu0
  %v2484 = vpop.f32.mrf.mxu0
  %v2485 = vadd.f32 0.0, %v2484
  %v2486 = vpop.f32.mrf.mxu0
  %2487 = vdwg.mxu0
  %2492 = vrot.lane.b32.xlu0 %v2352, 8
  %v2493 = vpop.permute.xlu0 %2492
  %2494 = vrot.lane.b32.xlu0 %v2355, 8
  %v2495 = vpop.permute.xlu0 %2494
  %2496 = vrot.lane.b32.xlu0 %v2360, 8
  %v2497 = vpop.permute.xlu0 %2496
  %2498 = vrot.lane.b32.xlu0 %v2363, 8
  %v2499 = vpop.permute.xlu0 %2498
  %2508 = vrot.lane.b32.xlu0 %v2413, 16
  %v2509 = vpop.permute.xlu0 %2508
  %2510 = vrot.lane.b32.xlu0 %v2416, 16
  %v2511 = vpop.permute.xlu0 %2510
  %2512 = vrot.lane.b32.xlu0 %v2421, 16
  %v2513 = vpop.permute.xlu0 %2512
  %2514 = vrot.lane.b32.xlu0 %v2424, 16
  %v2515 = vpop.permute.xlu0 %2514
  %2524 = vrot.lane.b32.xlu0 %v2474, 24
  %v2525 = vpop.permute.xlu0 %2524
  %2526 = vrot.lane.b32.xlu0 %v2477, 24
  %v2527 = vpop.permute.xlu0 %2526
  %2528 = vrot.lane.b32.xlu0 %v2482, 24
  %v2529 = vpop.permute.xlu0 %2528
  %2530 = vrot.lane.b32.xlu0 %v2485, 24
  %v2531 = vpop.permute.xlu0 %2530
  %v2536 = vsel %vm478, %v2291, %v2493
  %v2537 = vsel %vm478, %v2294, %v2495
  %v2538 = vsel %vm478, %v2299, %v2497
  %v2539 = vsel %vm478, %v2302, %v2499
  %v2540 = vsel %vm234, %v2536, %v2509
  %v2541 = vsel %vm234, %v2537, %v2511
  %v2542 = vsel %vm234, %v2538, %v2513
  %v2543 = vsel %vm234, %v2539, %v2515
  %v2544 = vsel %vm1225, %v2540, %v2525
  %v2545 = vsel %vm1225, %v2541, %v2527
  %v2546 = vsel %vm1225, %v2542, %v2529
  %v2547 = vsel %vm1225, %v2543, %v2531
  %v2548 = vld [vmem:[%s1 + $0x88] sm:$0xf]
  %v2549 = vld [vmem:[%s1 + $0x8c] sm:$0xf]
  %v2550 = vld [vmem:[%s1 + $0x90] sm:$0xf]
  %v2551 = vld [vmem:[%s1 + $0x94] sm:$0xf]
  %v2552 = vpack.c.bf16 %v2545, %v2544
  %v2553 = vpack.c.bf16 %v2547, %v2546
  %v2554 = vld [vmem:[%s2 + $0xb] sm:$0x1]
  %v2555 = vlaneseq
  %v2556 = vshrl.u32 %v2555, 7
  %v2557 = vsub.s32 0, %v2556
  %v2558 = vrot.slane %v2554, %v2557
  %v2563 = vunpack.c.l.b16 %v2548
  %v2564 = vunpack.c.l.b16 %v2549
  %v2565 = vunpack.c.l.b16 %v2550
  %v2566 = vunpack.c.l.b16 %v2551
  %v2567 = vpack.c.b16 %v2564, %v2563
  %v2568 = vpack.c.b16 %v2566, %v2565
  %v2572 = vsel %vm50, %v2552, 0
  %v2575 = vsel %vm50, %v2553, 0
  %2577 = vmatprep.subr.bf16.mxu0 0
  %2578 = vmatpush1.bf16.msra.mxu0 0
  %2579 = vmatprep.subr.bf16.mxu0 0
  %2580 = vmatpush1.bf16.msra.mxu0 0
  %2581 = vmatprep.subr.bf16.mxu0 0
  %2582 = vmatpush1.bf16.msra.mxu0 0
  %2583 = vmatprep.subr.bf16.mxu0 0
  %2584 = vmatpush1.bf16.msra.mxu0 0
  %2585 = vmatprep.subr.bf16.mxu0 0
  %2586 = vmatpush1.bf16.msra.mxu0 0
  %2587 = vmatprep.subr.bf16.mxu0 0
  %2588 = vmatpush1.bf16.msra.mxu0 0
  %2589 = vmatprep.subr.bf16.mxu0 0
  %2590 = vmatpush1.bf16.msra.mxu0 %v2568
  %2591 = vmatprep.subr.bf16.mxu0 0
  %2592 = vmatpush1.bf16.msra.mxu0 %v2567
  %2593 = vmatprep.subr.bf16.mxu0 0
  %2594 = vmatpush2.bf16.msra.mxu0 0
  %2595 = vmatprep.subr.bf16.mxu0 0
  %2596 = vmatpush2.bf16.msra.mxu0 0
  %2597 = vmatprep.subr.bf16.mxu0 0
  %2598 = vmatpush2.bf16.msra.mxu0 0
  %2599 = vmatprep.subr.bf16.mxu0 0
  %2600 = vmatpush2.bf16.msra.mxu0 0
  %2601 = vmatprep.subr.bf16.mxu0 0
  %2602 = vmatpush2.bf16.msra.mxu0 0
  %2603 = vmatprep.subr.bf16.mxu0 0
  %2604 = vmatpush2.bf16.msra.mxu0 0
  %2605 = vmatprep.subr.bf16.mxu0 0
  %2606 = vmatpush2.bf16.msra.mxu0 0
  %2607 = vmatprep.subr.bf16.mxu0 0
  %2608 = vmatpush2.bf16.msra.mxu0 0
  %2609 = vmatprep.mubr.bf16.mxu0 0
  %2610 = vmatmul.mubr.bf16.gmra.mxu0 %v2572
  %v2611 = vpop.f32.mrf.mxu0
  %v2612 = vadd.f32 %v2558, %v2611
  %v2613 = vpop.f32.mrf.mxu0
  %v2614 = vpop.f32.mrf.mxu0
  %v2615 = vadd.f32 %v2558, %v2614
  %v2616 = vpop.f32.mrf.mxu0
  %2617 = vmatprep.mubr.bf16.mxu0 0
  %2618 = vmatmul.mubr.bf16.gmra.mxu0 %v2575
  %v2619 = vpop.f32.mrf.mxu0
  %v2620 = vadd.f32 %v2558, %v2619
  %v2621 = vpop.f32.mrf.mxu0
  %v2622 = vpop.f32.mrf.mxu0
  %v2623 = vadd.f32 %v2558, %v2622
  %v2624 = vpop.f32.mrf.mxu0
  %2625 = vdwg.mxu0
  %v2626 = vadd.f32 %v1662, %v2612
  %v2627 = vadd.f32 %v1663, %v2615
  %v2628 = vadd.f32 %v1664, %v2620
  %v2629 = vadd.f32 %v1665, %v2623
  %v2630 = vld [vmem:[%s2 + $0xe] sm:$0x1]
  %v2631 = vld [vmem:[%s2 + $0xf] sm:$0x1]
  %v2632 = vsel %vm50, %v2626, 0.0
  %2633 = vadd.xlane.f32.xlu0 %v2632
  %v2634 = vpop.xlane.xlu0 %2633
  %v2635 = vsel %vm50, %v2627, 0.0
  %2636 = vadd.xlane.f32.xlu0 %v2635
  %v2637 = vpop.xlane.xlu0 %2636
  %v2638 = vsel %vm50, %v2628, 0.0
  %2639 = vadd.xlane.f32.xlu0 %v2638
  %v2640 = vpop.xlane.xlu0 %2639
  %v2641 = vsel %vm50, %v2629, 0.0
  %2642 = vadd.xlane.f32.xlu0 %v2641
  %v2643 = vpop.xlane.xlu0 %2642
  %v2644 = vmul.f32 %v2634, %v1326
  %v2645 = vmul.f32 %v2637, %v1326
  %v2646 = vmul.f32 %v2640, %v1326
  %v2647 = vmul.f32 %v2643, %v1326
  %v2648 = vsub.f32 %v2626, %v2644
  %v2649 = vsub.f32 %v2627, %v2645
  %v2650 = vsub.f32 %v2628, %v2646
  %v2651 = vsub.f32 %v2629, %v2647
  %v2652 = vmul.f32 %v2648, %v2648
  %v2653 = vmul.f32 %v2649, %v2649
  %v2654 = vmul.f32 %v2650, %v2650
  %v2655 = vmul.f32 %v2651, %v2651
  %v2656 = vsel %vm50, %v2652, 0.0
  %2657 = vadd.xlane.f32.xlu0 %v2656
  %v2658 = vpop.xlane.xlu0 %2657
  %v2659 = vsel %vm50, %v2653, 0.0
  %2660 = vadd.xlane.f32.xlu0 %v2659
  %v2661 = vpop.xlane.xlu0 %2660
  %v2662 = vsel %vm50, %v2654, 0.0
  %2663 = vadd.xlane.f32.xlu0 %v2662
  %v2664 = vpop.xlane.xlu0 %2663
  %v2665 = vsel %vm50, %v2655, 0.0
  %2666 = vadd.xlane.f32.xlu0 %v2665
  %v2667 = vpop.xlane.xlu0 %2666
  %v2668 = vmul.f32 %v2658, %v1326
  %v2669 = vmul.f32 %v2661, %v1326
  %v2670 = vmul.f32 %v2664, %v1326
  %v2671 = vmul.f32 %v2667, %v1326
  %v2672 = vadd.f32 %v2668, 1e-05
  %v2673 = vadd.f32 %v2669, 1e-05
  %v2674 = vadd.f32 %v2670, 1e-05
  %v2675 = vadd.f32 %v2671, 1e-05
  %v2676 = vrsqrt.pop %v2672
  %v2677 = vrsqrt.pop %v2673
  %v2678 = vrsqrt.pop %v2674
  %v2679 = vrsqrt.pop %v2675
  %v2680 = vmul.f32 %v2648, %v2676
  %v2681 = vmul.f32 %v2649, %v2677
  %v2682 = vmul.f32 %v2650, %v2678
  %v2683 = vmul.f32 %v2651, %v2679
  %v2684 = vlaneseq
  %v2685 = vshrl.u32 %v2684, 7
  %v2686 = vsub.s32 0, %v2685
  %v2687 = vrot.slane %v2630, %v2686
  %v2688 = vmul.f32 %v2680, %v2687
  %v2689 = vmul.f32 %v2681, %v2687
  %v2690 = vmul.f32 %v2682, %v2687
  %v2691 = vmul.f32 %v2683, %v2687
  %v2692 = vlaneseq
  %v2693 = vshrl.u32 %v2692, 7
  %v2694 = vsub.s32 0, %v2693
  %v2695 = vrot.slane %v2631, %v2694
  %v2696 = vadd.f32 %v2688, %v2695
  %v2697 = vadd.f32 %v2689, %v2695
  %v2698 = vadd.f32 %v2690, %v2695
  %v2699 = vadd.f32 %v2691, %v2695
  %v2700 = vld [vmem:[%s1 + $0x98] sm:$0xf]
  %v2701 = vld [vmem:[%s1 + $0x9c] sm:$0xf]
  %v2702 = vld [vmem:[%s1 + $0xa0] sm:$0xf]
  %v2703 = vld [vmem:[%s1 + $0xa4] sm:$0xf]
  %v2704 = vpack.c.bf16 %v2697, %v2696
  %v2705 = vpack.c.bf16 %v2699, %v2698
  %v2706 = vld [vmem:[%s2 + $0xc] sm:$0x1]
  %v2707 = vlaneseq
  %v2708 = vshrl.u32 %v2707, 7
  %v2709 = vsub.s32 0, %v2708
  %v2710 = vrot.slane %v2706, %v2709
  %v2715 = vunpack.c.l.b16 %v2700
  %v2716 = vunpack.c.l.b16 %v2701
  %v2717 = vunpack.c.l.b16 %v2702
  %v2718 = vunpack.c.l.b16 %v2703
  %v2719 = vpack.c.b16 %v2716, %v2715
  %v2720 = vpack.c.b16 %v2718, %v2717
  %v2724 = vsel %vm50, %v2704, 0
  %v2727 = vsel %vm50, %v2705, 0
  %2729 = vmatprep.subr.bf16.mxu0 0
  %2730 = vmatpush1.bf16.msra.mxu0 0
  %2731 = vmatprep.subr.bf16.mxu0 0
  %2732 = vmatpush1.bf16.msra.mxu0 0
  %2733 = vmatprep.subr.bf16.mxu0 0
  %2734 = vmatpush1.bf16.msra.mxu0 0
  %2735 = vmatprep.subr.bf16.mxu0 0
  %2736 = vmatpush1.bf16.msra.mxu0 0
  %2737 = vmatprep.subr.bf16.mxu0 0
  %2738 = vmatpush1.bf16.msra.mxu0 0
  %2739 = vmatprep.subr.bf16.mxu0 0
  %2740 = vmatpush1.bf16.msra.mxu0 0
  %2741 = vmatprep.subr.bf16.mxu0 0
  %2742 = vmatpush1.bf16.msra.mxu0 %v2720
  %2743 = vmatprep.subr.bf16.mxu0 0
  %2744 = vmatpush1.bf16.msra.mxu0 %v2719
  %2745 = vmatprep.subr.bf16.mxu0 0
  %2746 = vmatpush2.bf16.msra.mxu0 0
  %2747 = vmatprep.subr.bf16.mxu0 0
  %2748 = vmatpush2.bf16.msra.mxu0 0
  %2749 = vmatprep.subr.bf16.mxu0 0
  %2750 = vmatpush2.bf16.msra.mxu0 0
  %2751 = vmatprep.subr.bf16.mxu0 0
  %2752 = vmatpush2.bf16.msra.mxu0 0
  %2753 = vmatprep.subr.bf16.mxu0 0
  %2754 = vmatpush2.bf16.msra.mxu0 0
  %2755 = vmatprep.subr.bf16.mxu0 0
  %2756 = vmatpush2.bf16.msra.mxu0 0
  %2757 = vmatprep.subr.bf16.mxu0 0
  %2758 = vmatpush2.bf16.msra.mxu0 0
  %2759 = vmatprep.subr.bf16.mxu0 0
  %2760 = vmatpush2.bf16.msra.mxu0 0
  %2761 = vmatprep.mubr.bf16.mxu0 0
  %2762 = vmatmul.mubr.bf16.gmra.mxu0 %v2724
  %v2763 = vpop.f32.mrf.mxu0
  %v2764 = vadd.f32 %v2710, %v2763
  %v2765 = vpop.f32.mrf.mxu0
  %v2766 = vpop.f32.mrf.mxu0
  %v2767 = vadd.f32 %v2710, %v2766
  %v2768 = vpop.f32.mrf.mxu0
  %2769 = vmatprep.mubr.bf16.mxu0 0
  %2770 = vmatmul.mubr.bf16.gmra.mxu0 %v2727
  %v2771 = vpop.f32.mrf.mxu0
  %v2772 = vadd.f32 %v2710, %v2771
  %v2773 = vpop.f32.mrf.mxu0
  %v2774 = vpop.f32.mrf.mxu0
  %v2775 = vadd.f32 %v2710, %v2774
  %v2776 = vpop.f32.mrf.mxu0
  %2777 = vdwg.mxu0
  %v2778 = vmul.f32 %v2764, %v2764
  %v2779 = vmul.f32 %v2767, %v2767
  %v2780 = vmul.f32 %v2772, %v2772
  %v2781 = vmul.f32 %v2775, %v2775
  %v2782 = vmul.f32 %v2764, %v2778
  %v2783 = vmul.f32 %v2767, %v2779
  %v2784 = vmul.f32 %v2772, %v2780
  %v2785 = vmul.f32 %v2775, %v2781
  %v2786 = vmul.f32 %v2782, 0.044715
  %v2787 = vmul.f32 %v2783, 0.044715
  %v2788 = vmul.f32 %v2784, 0.044715
  %v2789 = vmul.f32 %v2785, 0.044715
  %v2790 = vadd.f32 %v2764, %v2786
  %v2791 = vadd.f32 %v2767, %v2787
  %v2792 = vadd.f32 %v2772, %v2788
  %v2793 = vadd.f32 %v2775, %v2789
  %v2794 = vmul.f32 %v2790, 0.7978846
  %v2795 = vmul.f32 %v2791, 0.7978846
  %v2796 = vmul.f32 %v2792, 0.7978846
  %v2797 = vmul.f32 %v2793, 0.7978846
  %v2798 = vtanh.pop %v2794
  %v2799 = vtanh.pop %v2795
  %v2800 = vtanh.pop %v2796
  %v2801 = vtanh.pop %v2797
  %v2802 = vadd.f32 %v2798, 1.0
  %v2803 = vadd.f32 %v2799, 1.0
  %v2804 = vadd.f32 %v2800, 1.0
  %v2805 = vadd.f32 %v2801, 1.0
  %v2806 = vmul.f32 %v2802, 0.5
  %v2807 = vmul.f32 %v2803, 0.5
  %v2808 = vmul.f32 %v2804, 0.5
  %v2809 = vmul.f32 %v2805, 0.5
  %v2810 = vmul.f32 %v2764, %v2806
  %v2811 = vmul.f32 %v2767, %v2807
  %v2812 = vmul.f32 %v2772, %v2808
  %v2813 = vmul.f32 %v2775, %v2809
  %v2814 = vld [vmem:[%s1 + $0xa8] sm:$0xf]
  %v2815 = vld [vmem:[%s1 + $0xac] sm:$0xf]
  %v2816 = vld [vmem:[%s1 + $0xb0] sm:$0xf]
  %v2817 = vld [vmem:[%s1 + $0xb4] sm:$0xf]
  %v2818 = vld [vmem:[%s1 + $0xb8] sm:$0xf]
  %v2819 = vld [vmem:[%s1 + $0xbc] sm:$0xf]
  %v2820 = vld [vmem:[%s1 + $0xc0] sm:$0xf]
  %v2821 = vld [vmem:[%s1 + $0xc4] sm:$0xf]
  %v2822 = vpack.c.bf16 %v2811, %v2810
  %v2823 = vpack.c.bf16 %v2813, %v2812
  %v2824 = vld [vmem:[%s2 + $0xd] sm:$0x1]
  %v2825 = vlaneseq
  %v2826 = vshrl.u32 %v2825, 7
  %v2827 = vsub.s32 0, %v2826
  %v2828 = vrot.slane %v2824, %v2827
  %v2837 = vunpack.c.l.b16 %v2814
  %v2838 = vunpack.c.l.b16 %v2815
  %v2839 = vunpack.c.l.b16 %v2816
  %v2840 = vunpack.c.l.b16 %v2817
  %v2841 = vunpack.c.l.b16 %v2818
  %v2842 = vunpack.c.l.b16 %v2819
  %v2843 = vunpack.c.l.b16 %v2820
  %v2844 = vunpack.c.l.b16 %v2821
  %v2845 = vpack.c.b16 %v2838, %v2837
  %v2846 = vpack.c.b16 %v2840, %v2839
  %v2847 = vpack.c.b16 %v2842, %v2841
  %v2848 = vpack.c.b16 %v2844, %v2843
  %v2854 = vsel %vm1536, %v2822, 0
  %v2857 = vsel %vm1536, %v2823, 0
  %2859 = vmatprep.subr.bf16.mxu0 0
  %2860 = vmatpush1.bf16.msra.mxu0 0
  %2861 = vmatprep.subr.bf16.mxu0 0
  %2862 = vmatpush1.bf16.msra.mxu0 0
  %2863 = vmatprep.subr.bf16.mxu0 0
  %2864 = vmatpush1.bf16.msra.mxu0 0
  %2865 = vmatprep.subr.bf16.mxu0 0
  %2866 = vmatpush1.bf16.msra.mxu0 0
  %2867 = vmatprep.subr.bf16.mxu0 0
  %2868 = vmatpush1.bf16.msra.mxu0 %v2848
  %2869 = vmatprep.subr.bf16.mxu0 0
  %2870 = vmatpush1.bf16.msra.mxu0 %v2847
  %2871 = vmatprep.subr.bf16.mxu0 0
  %2872 = vmatpush1.bf16.msra.mxu0 %v2846
  %2873 = vmatprep.subr.bf16.mxu0 0
  %2874 = vmatpush1.bf16.msra.mxu0 %v2845
  %2875 = vmatprep.subr.bf16.mxu0 0
  %2876 = vmatpush2.bf16.msra.mxu0 0
  %2877 = vmatprep.subr.bf16.mxu0 0
  %2878 = vmatpush2.bf16.msra.mxu0 0
  %2879 = vmatprep.subr.bf16.mxu0 0
  %2880 = vmatpush2.bf16.msra.mxu0 0
  %2881 = vmatprep.subr.bf16.mxu0 0
  %2882 = vmatpush2.bf16.msra.mxu0 0
  %2883 = vmatprep.subr.bf16.mxu0 0
  %2884 = vmatpush2.bf16.msra.mxu0 0
  %2885 = vmatprep.subr.bf16.mxu0 0
  %2886 = vmatpush2.bf16.msra.mxu0 0
  %2887 = vmatprep.subr.bf16.mxu0 0
  %2888 = vmatpush2.bf16.msra.mxu0 0
  %2889 = vmatprep.subr.bf16.mxu0 0
  %2890 = vmatpush2.bf16.msra.mxu0 0
  %2891 = vmatprep.mubr.bf16.mxu0 0
  %2892 = vmatmul.mubr.bf16.gmra.mxu0 %v2854
  %v2893 = vpop.f32.mrf.mxu0
  %v2894 = vadd.f32 %v2828, %v2893
  %v2895 = vpop.f32.mrf.mxu0
  %v2896 = vpop.f32.mrf.mxu0
  %v2897 = vadd.f32 %v2828, %v2896
  %v2898 = vpop.f32.mrf.mxu0
  %2899 = vmatprep.mubr.bf16.mxu0 0
  %2900 = vmatmul.mubr.bf16.gmra.mxu0 %v2857
  %v2901 = vpop.f32.mrf.mxu0
  %v2902 = vadd.f32 %v2828, %v2901
  %v2903 = vpop.f32.mrf.mxu0
  %v2904 = vpop.f32.mrf.mxu0
  %v2905 = vadd.f32 %v2828, %v2904
  %v2906 = vpop.f32.mrf.mxu0
  %2907 = vdwg.mxu0
  %v2908 = vadd.f32 %v2696, %v2894
  %v2909 = vadd.f32 %v2697, %v2897
  %v2910 = vadd.f32 %v2698, %v2902
  %v2911 = vadd.f32 %v2699, %v2905
  %v2912 = vld [vmem:[%s2 + $0x10] sm:$0x1]
  %v2913 = vld [vmem:[%s2 + $0x11] sm:$0x1]
  %v2914 = vsel %vm50, %v2908, 0.0
  %2915 = vadd.xlane.f32.xlu0 %v2914
  %v2916 = vpop.xlane.xlu0 %2915
  %v2917 = vsel %vm50, %v2909, 0.0
  %2918 = vadd.xlane.f32.xlu0 %v2917
  %v2919 = vpop.xlane.xlu0 %2918
  %v2920 = vsel %vm50, %v2910, 0.0
  %2921 = vadd.xlane.f32.xlu0 %v2920
  %v2922 = vpop.xlane.xlu0 %2921
  %v2923 = vsel %vm50, %v2911, 0.0
  %2924 = vadd.xlane.f32.xlu0 %v2923
  %v2925 = vpop.xlane.xlu0 %2924
  %v2926 = vmul.f32 %v2916, %v1326
  %v2927 = vmul.f32 %v2919, %v1326
  %v2928 = vmul.f32 %v2922, %v1326
  %v2929 = vmul.f32 %v2925, %v1326
  %v2930 = vsub.f32 %v2908, %v2926
  %v2931 = vsub.f32 %v2909, %v2927
  %v2932 = vsub.f32 %v2910, %v2928
  %v2933 = vsub.f32 %v2911, %v2929
  %v2934 = vmul.f32 %v2930, %v2930
  %v2935 = vmul.f32 %v2931, %v2931
  %v2936 = vmul.f32 %v2932, %v2932
  %v2937 = vmul.f32 %v2933, %v2933
  %v2938 = vsel %vm50, %v2934, 0.0
  %2939 = vadd.xlane.f32.xlu0 %v2938
  %v2940 = vpop.xlane.xlu0 %2939
  %v2941 = vsel %vm50, %v2935, 0.0
  %2942 = vadd.xlane.f32.xlu0 %v2941
  %v2943 = vpop.xlane.xlu0 %2942
  %v2944 = vsel %vm50, %v2936, 0.0
  %2945 = vadd.xlane.f32.xlu0 %v2944
  %v2946 = vpop.xlane.xlu0 %2945
  %v2947 = vsel %vm50, %v2937, 0.0
  %2948 = vadd.xlane.f32.xlu0 %v2947
  %v2949 = vpop.xlane.xlu0 %2948
  %v2950 = vmul.f32 %v2940, %v1326
  %v2951 = vmul.f32 %v2943, %v1326
  %v2952 = vmul.f32 %v2946, %v1326
  %v2953 = vmul.f32 %v2949, %v1326
  %v2954 = vadd.f32 %v2950, 1e-05
  %v2955 = vadd.f32 %v2951, 1e-05
  %v2956 = vadd.f32 %v2952, 1e-05
  %v2957 = vadd.f32 %v2953, 1e-05
  %v2958 = vrsqrt.pop %v2954
  %v2959 = vrsqrt.pop %v2955
  %v2960 = vrsqrt.pop %v2956
  %v2961 = vrsqrt.pop %v2957
  %v2962 = vmul.f32 %v2930, %v2958
  %v2963 = vmul.f32 %v2931, %v2959
  %v2964 = vmul.f32 %v2932, %v2960
  %v2965 = vmul.f32 %v2933, %v2961
  %v2966 = vlaneseq
  %v2967 = vshrl.u32 %v2966, 7
  %v2968 = vsub.s32 0, %v2967
  %v2969 = vrot.slane %v2912, %v2968
  %v2970 = vmul.f32 %v2962, %v2969
  %v2971 = vmul.f32 %v2963, %v2969
  %v2972 = vmul.f32 %v2964, %v2969
  %v2973 = vmul.f32 %v2965, %v2969
  %v2974 = vlaneseq
  %v2975 = vshrl.u32 %v2974, 7
  %v2976 = vsub.s32 0, %v2975
  %v2977 = vrot.slane %v2913, %v2976
  %v2978 = vadd.f32 %v2970, %v2977
  %v2979 = vadd.f32 %v2971, %v2977
  %v2980 = vadd.f32 %v2972, %v2977
  %v2981 = vadd.f32 %v2973, %v2977
  %v2982 = vld [vmem:[%s1 + $0xc8] sm:$0xf]
  %v2983 = vld [vmem:[%s1 + $0xcc] sm:$0xf]
  %v2984 = vld [vmem:[%s1 + $0xd0] sm:$0xf]
  %v2985 = vld [vmem:[%s1 + $0xd4] sm:$0xf]
  %v2986 = vpack.c.bf16 %v2979, %v2978
  %v2987 = vpack.c.bf16 %v2981, %v2980
  %v2988 = vld [vmem:[%s2 + $0x12] sm:$0x1]
  %v2989 = vlaneseq
  %v2990 = vshrl.u32 %v2989, 7
  %v2991 = vsub.s32 0, %v2990
  %v2992 = vrot.slane %v2988, %v2991
  %v2997 = vunpack.c.l.b16 %v2982
  %v2998 = vunpack.c.l.b16 %v2983
  %v2999 = vunpack.c.l.b16 %v2984
  %v3000 = vunpack.c.l.b16 %v2985
  %v3001 = vpack.c.b16 %v2998, %v2997
  %v3002 = vpack.c.b16 %v3000, %v2999
  %v3006 = vsel %vm50, %v2986, 0
  %v3009 = vsel %vm50, %v2987, 0
  %3011 = vmatprep.subr.bf16.mxu0 0
  %3012 = vmatpush1.bf16.msra.mxu0 0
  %3013 = vmatprep.subr.bf16.mxu0 0
  %3014 = vmatpush1.bf16.msra.mxu0 0
  %3015 = vmatprep.subr.bf16.mxu0 0
  %3016 = vmatpush1.bf16.msra.mxu0 0
  %3017 = vmatprep.subr.bf16.mxu0 0
  %3018 = vmatpush1.bf16.msra.mxu0 0
  %3019 = vmatprep.subr.bf16.mxu0 0
  %3020 = vmatpush1.bf16.msra.mxu0 0
  %3021 = vmatprep.subr.bf16.mxu0 0
  %3022 = vmatpush1.bf16.msra.mxu0 0
  %3023 = vmatprep.subr.bf16.mxu0 0
  %3024 = vmatpush1.bf16.msra.mxu0 %v3002
  %3025 = vmatprep.subr.bf16.mxu0 0
  %3026 = vmatpush1.bf16.msra.mxu0 %v3001
  %3027 = vmatprep.subr.bf16.mxu0 0
  %3028 = vmatpush2.bf16.msra.mxu0 0
  %3029 = vmatprep.subr.bf16.mxu0 0
  %3030 = vmatpush2.bf16.msra.mxu0 0
  %3031 = vmatprep.subr.bf16.mxu0 0
  %3032 = vmatpush2.bf16.msra.mxu0 0
  %3033 = vmatprep.subr.bf16.mxu0 0
  %3034 = vmatpush2.bf16.msra.mxu0 0
  %3035 = vmatprep.subr.bf16.mxu0 0
  %3036 = vmatpush2.bf16.msra.mxu0 0
  %3037 = vmatprep.subr.bf16.mxu0 0
  %3038 = vmatpush2.bf16.msra.mxu0 0
  %3039 = vmatprep.subr.bf16.mxu0 0
  %3040 = vmatpush2.bf16.msra.mxu0 0
  %3041 = vmatprep.subr.bf16.mxu0 0
  %3042 = vmatpush2.bf16.msra.mxu0 0
  %3043 = vmatprep.mubr.bf16.mxu0 0
  %3044 = vmatmul.mubr.bf16.gmra.mxu0 %v3006
  %v3045 = vpop.f32.mrf.mxu0
  %v3046 = vadd.f32 %v2992, %v3045
  %v3047 = vpop.f32.mrf.mxu0
  %v3048 = vpop.f32.mrf.mxu0
  %v3049 = vadd.f32 %v2992, %v3048
  %v3050 = vpop.f32.mrf.mxu0
  %3051 = vmatprep.mubr.bf16.mxu0 0
  %3052 = vmatmul.mubr.bf16.gmra.mxu0 %v3009
  %v3053 = vpop.f32.mrf.mxu0
  %v3054 = vadd.f32 %v2992, %v3053
  %v3055 = vpop.f32.mrf.mxu0
  %v3056 = vpop.f32.mrf.mxu0
  %v3057 = vadd.f32 %v2992, %v3056
  %v3058 = vpop.f32.mrf.mxu0
  %3059 = vdwg.mxu0
  %v3060 = vmul.f32 %v3046, %v3046
  %v3061 = vmul.f32 %v3049, %v3049
  %v3062 = vmul.f32 %v3054, %v3054
  %v3063 = vmul.f32 %v3057, %v3057
  %v3064 = vmul.f32 %v3046, %v3060
  %v3065 = vmul.f32 %v3049, %v3061
  %v3066 = vmul.f32 %v3054, %v3062
  %v3067 = vmul.f32 %v3057, %v3063
  %v3068 = vmul.f32 %v3064, 0.044715
  %v3069 = vmul.f32 %v3065, 0.044715
  %v3070 = vmul.f32 %v3066, 0.044715
  %v3071 = vmul.f32 %v3067, 0.044715
  %v3072 = vadd.f32 %v3046, %v3068
  %v3073 = vadd.f32 %v3049, %v3069
  %v3074 = vadd.f32 %v3054, %v3070
  %v3075 = vadd.f32 %v3057, %v3071
  %v3076 = vmul.f32 %v3072, 0.7978846
  %v3077 = vmul.f32 %v3073, 0.7978846
  %v3078 = vmul.f32 %v3074, 0.7978846
  %v3079 = vmul.f32 %v3075, 0.7978846
  %v3080 = vtanh.pop %v3076
  %v3081 = vtanh.pop %v3077
  %v3082 = vtanh.pop %v3078
  %v3083 = vtanh.pop %v3079
  %v3084 = vadd.f32 %v3080, 1.0
  %v3085 = vadd.f32 %v3081, 1.0
  %v3086 = vadd.f32 %v3082, 1.0
  %v3087 = vadd.f32 %v3083, 1.0
  %v3088 = vmul.f32 %v3084, 0.5
  %v3089 = vmul.f32 %v3085, 0.5
  %v3090 = vmul.f32 %v3086, 0.5
  %v3091 = vmul.f32 %v3087, 0.5
  %v3092 = vmul.f32 %v3046, %v3088
  %v3093 = vmul.f32 %v3049, %v3089
  %v3094 = vmul.f32 %v3054, %v3090
  %v3095 = vmul.f32 %v3057, %v3091
  %v3096 = vld [vmem:[%s1 + $0xd8] sm:$0xf]
  %v3097 = vld [vmem:[%s1 + $0xdc] sm:$0xf]
  %v3098 = vld [vmem:[%s1 + $0xe0] sm:$0xf]
  %v3099 = vld [vmem:[%s1 + $0xe4] sm:$0xf]
  %v3100 = vpack.c.bf16 %v3093, %v3092
  %v3101 = vpack.c.bf16 %v3095, %v3094
  %v3102 = vld [vmem:[%s2 + $0x13] sm:$0x1]
  %v3103 = vlaneseq
  %v3104 = vshrl.u32 %v3103, 7
  %v3105 = vsub.s32 0, %v3104
  %v3106 = vrot.slane %v3102, %v3105
  %v3111 = vunpack.c.l.b16 %v3096
  %v3112 = vunpack.c.l.b16 %v3097
  %v3113 = vunpack.c.l.b16 %v3098
  %v3114 = vunpack.c.l.b16 %v3099
  %v3115 = vpack.c.b16 %v3112, %v3111
  %v3116 = vpack.c.b16 %v3114, %v3113
  %v3120 = vsel %vm50, %v3100, 0
  %v3123 = vsel %vm50, %v3101, 0
  %3125 = vmatprep.subr.bf16.mxu0 0
  %3126 = vmatpush1.bf16.msra.mxu0 0
  %3127 = vmatprep.subr.bf16.mxu0 0
  %3128 = vmatpush1.bf16.msra.mxu0 0
  %3129 = vmatprep.subr.bf16.mxu0 0
  %3130 = vmatpush1.bf16.msra.mxu0 0
  %3131 = vmatprep.subr.bf16.mxu0 0
  %3132 = vmatpush1.bf16.msra.mxu0 0
  %3133 = vmatprep.subr.bf16.mxu0 0
  %3134 = vmatpush1.bf16.msra.mxu0 0
  %3135 = vmatprep.subr.bf16.mxu0 0
  %3136 = vmatpush1.bf16.msra.mxu0 0
  %3137 = vmatprep.subr.bf16.mxu0 0
  %3138 = vmatpush1.bf16.msra.mxu0 %v3116
  %3139 = vmatprep.subr.bf16.mxu0 0
  %3140 = vmatpush1.bf16.msra.mxu0 %v3115
  %3141 = vmatprep.subr.bf16.mxu0 0
  %3142 = vmatpush2.bf16.msra.mxu0 0
  %3143 = vmatprep.subr.bf16.mxu0 0
  %3144 = vmatpush2.bf16.msra.mxu0 0
  %3145 = vmatprep.subr.bf16.mxu0 0
  %3146 = vmatpush2.bf16.msra.mxu0 0
  %3147 = vmatprep.subr.bf16.mxu0 0
  %3148 = vmatpush2.bf16.msra.mxu0 0
  %3149 = vmatprep.subr.bf16.mxu0 0
  %3150 = vmatpush2.bf16.msra.mxu0 0
  %3151 = vmatprep.subr.bf16.mxu0 0
  %3152 = vmatpush2.bf16.msra.mxu0 0
  %3153 = vmatprep.subr.bf16.mxu0 0
  %3154 = vmatpush2.bf16.msra.mxu0 0
  %3155 = vmatprep.subr.bf16.mxu0 0
  %3156 = vmatpush2.bf16.msra.mxu0 0
  %3157 = vmatprep.mubr.bf16.mxu0 0
  %3158 = vmatmul.mubr.bf16.gmra.mxu0 %v3120
  %v3159 = vpop.f32.mrf.mxu0
  %v3160 = vadd.f32 %v3106, %v3159
  %v3161 = vpop.f32.mrf.mxu0
  %v3162 = vpop.f32.mrf.mxu0
  %v3163 = vadd.f32 %v3106, %v3162
  %v3164 = vpop.f32.mrf.mxu0
  %3165 = vmatprep.mubr.bf16.mxu0 0
  %3166 = vmatmul.mubr.bf16.gmra.mxu0 %v3123
  %v3167 = vpop.f32.mrf.mxu0
  %v3168 = vadd.f32 %v3106, %v3167
  %v3169 = vpop.f32.mrf.mxu0
  %v3170 = vpop.f32.mrf.mxu0
  %v3171 = vadd.f32 %v3106, %v3170
  %v3172 = vpop.f32.mrf.mxu0
  %3173 = vdwg.mxu0
  %v3174 = vmul.f32 %v3160, %v3160
  %v3175 = vmul.f32 %v3163, %v3163
  %v3176 = vmul.f32 %v3168, %v3168
  %v3177 = vmul.f32 %v3171, %v3171
  %v3178 = vmul.f32 %v3160, %v3174
  %v3179 = vmul.f32 %v3163, %v3175
  %v3180 = vmul.f32 %v3168, %v3176
  %v3181 = vmul.f32 %v3171, %v3177
  %v3182 = vmul.f32 %v3178, 0.044715
  %v3183 = vmul.f32 %v3179, 0.044715
  %v3184 = vmul.f32 %v3180, 0.044715
  %v3185 = vmul.f32 %v3181, 0.044715
  %v3186 = vadd.f32 %v3160, %v3182
  %v3187 = vadd.f32 %v3163, %v3183
  %v3188 = vadd.f32 %v3168, %v3184
  %v3189 = vadd.f32 %v3171, %v3185
  %v3190 = vmul.f32 %v3186, 0.7978846
  %v3191 = vmul.f32 %v3187, 0.7978846
  %v3192 = vmul.f32 %v3188, 0.7978846
  %v3193 = vmul.f32 %v3189, 0.7978846
  %v3194 = vtanh.pop %v3190
  %v3195 = vtanh.pop %v3191
  %v3196 = vtanh.pop %v3192
  %v3197 = vtanh.pop %v3193
  %v3198 = vadd.f32 %v3194, 1.0
  %v3199 = vadd.f32 %v3195, 1.0
  %v3200 = vadd.f32 %v3196, 1.0
  %v3201 = vadd.f32 %v3197, 1.0
  %v3202 = vmul.f32 %v3198, 0.5
  %v3203 = vmul.f32 %v3199, 0.5
  %v3204 = vmul.f32 %v3200, 0.5
  %v3205 = vmul.f32 %v3201, 0.5
  %v3206 = vmul.f32 %v3160, %v3202
  %v3207 = vmul.f32 %v3163, %v3203
  %v3208 = vmul.f32 %v3168, %v3204
  %v3209 = vmul.f32 %v3171, %v3205
  %v3210 = vld [vmem:[%s1 + $0xe8] sm:$0xf]
  %v3211 = vld [vmem:[%s1 + $0xec] sm:$0xf]
  %v3212 = vld [vmem:[%s1 + $0xf0] sm:$0xf]
  %v3213 = vld [vmem:[%s1 + $0xf4] sm:$0xf]
  %v3214 = vpack.c.bf16 %v3207, %v3206
  %v3215 = vpack.c.bf16 %v3209, %v3208
  %v3216 = vld [vmem:[%s2 + $0x14] sm:$0x1]
  %v3217 = vlaneseq
  %v3218 = vshrl.u32 %v3217, 7
  %v3219 = vsub.s32 0, %v3218
  %v3220 = vrot.slane %v3216, %v3219
  %v3225 = vunpack.c.l.b16 %v3210
  %v3226 = vunpack.c.l.b16 %v3211
  %v3227 = vunpack.c.l.b16 %v3212
  %v3228 = vunpack.c.l.b16 %v3213
  %v3229 = vpack.c.b16 %v3226, %v3225
  %v3230 = vpack.c.b16 %v3228, %v3227
  %v3234 = vsel %vm50, %v3214, 0
  %v3237 = vsel %vm50, %v3215, 0
  %3239 = vmatprep.subr.bf16.mxu0 0
  %3240 = vmatpush1.bf16.msra.mxu0 0
  %3241 = vmatprep.subr.bf16.mxu0 0
  %3242 = vmatpush1.bf16.msra.mxu0 0
  %3243 = vmatprep.subr.bf16.mxu0 0
  %3244 = vmatpush1.bf16.msra.mxu0 0
  %3245 = vmatprep.subr.bf16.mxu0 0
  %3246 = vmatpush1.bf16.msra.mxu0 0
  %3247 = vmatprep.subr.bf16.mxu0 0
  %3248 = vmatpush1.bf16.msra.mxu0 0
  %3249 = vmatprep.subr.bf16.mxu0 0
  %3250 = vmatpush1.bf16.msra.mxu0 0
  %3251 = vmatprep.subr.bf16.mxu0 0
  %3252 = vmatpush1.bf16.msra.mxu0 %v3230
  %3253 = vmatprep.subr.bf16.mxu0 0
  %3254 = vmatpush1.bf16.msra.mxu0 %v3229
  %3255 = vmatprep.subr.bf16.mxu0 0
  %3256 = vmatpush2.bf16.msra.mxu0 0
  %3257 = vmatprep.subr.bf16.mxu0 0
  %3258 = vmatpush2.bf16.msra.mxu0 0
  %3259 = vmatprep.subr.bf16.mxu0 0
  %3260 = vmatpush2.bf16.msra.mxu0 0
  %3261 = vmatprep.subr.bf16.mxu0 0
  %3262 = vmatpush2.bf16.msra.mxu0 0
  %3263 = vmatprep.subr.bf16.mxu0 0
  %3264 = vmatpush2.bf16.msra.mxu0 0
  %3265 = vmatprep.subr.bf16.mxu0 0
  %3266 = vmatpush2.bf16.msra.mxu0 0
  %3267 = vmatprep.subr.bf16.mxu0 0
  %3268 = vmatpush2.bf16.msra.mxu0 0
  %3269 = vmatprep.subr.bf16.mxu0 0
  %3270 = vmatpush2.bf16.msra.mxu0 0
  %3271 = vmatprep.mubr.bf16.mxu0 0
  %3272 = vmatmul.mubr.bf16.gmra.mxu0 %v3234
  %v3273 = vpop.f32.mrf.mxu0
  %v3274 = vadd.f32 %v3220, %v3273
  %v3275 = vpop.f32.mrf.mxu0
  %v3276 = vpop.f32.mrf.mxu0
  %v3277 = vadd.f32 %v3220, %v3276
  %v3278 = vpop.f32.mrf.mxu0
  %3279 = vmatprep.mubr.bf16.mxu0 0
  %3280 = vmatmul.mubr.bf16.gmra.mxu0 %v3237
  %v3281 = vpop.f32.mrf.mxu0
  %v3282 = vadd.f32 %v3220, %v3281
  %v3283 = vpop.f32.mrf.mxu0
  %v3284 = vpop.f32.mrf.mxu0
  %v3285 = vadd.f32 %v3220, %v3284
  %v3286 = vpop.f32.mrf.mxu0
  %3287 = vdwg.mxu0
  %3288 = vst [vmem:[%s3] sm:$0xff] %v3274
  %3289 = vst [vmem:[%s3 + $0x8] sm:$0xff] %v3277
  %3290 = vst [vmem:[%s3 + $0x10] sm:$0xff] %v3282
  %3291 = vst [vmem:[%s3 + $0x18] sm:$0xff] %v3285
  // Predicated region
  $region14: #{transformer_predictor_forward.1} parent=0 // pred_check
    _
  $region15: #{transformer_predictor_forward.1} parent=0 // pred_check_branch
    %3293 = sbr.rel (0) target = $region17
  $region16: #{transformer_predictor_forward.1} parent=0 // pred_region
    _
  $region17: #{transformer_predictor_forward.1} parent=0 // pred_fallthru
    _
  // Predicated region
  $region18: #{transformer_predictor_forward.1} parent=0 // pred_check
    _
  $region19: #{transformer_predictor_forward.1} parent=0 // pred_check_branch
    %3295 = sbr.rel (0) target = $region21
  $region20: #{transformer_predictor_forward.1} parent=0 // pred_region
    _
  $region21: #{transformer_predictor_forward.1} parent=0 // pred_fallthru
    _

</llo_original>
